<compile_context>
chip_gen: v7x
topology: tpu7x:2x2x1
jax: 0.10.0
libtpu: 0.0.40
codegen_flags: <defaults>
</compile_context>

<pallas_src>
import functools

import jax
import jax.numpy as jnp
from jax import lax
from jax.experimental import pallas as pl
from jax.experimental.pallas import tpu as pltpu


_VMEM = pl.BlockSpec(memory_space=pltpu.MemorySpace.VMEM)


# ---------------------------------------------------------------- in-kernel helpers
def _gelu(x):
    # TODO(synk): tanh-approximate GELU; PyTorch nn.GELU default is the exact erf form.
    c = jnp.float32(0.7978845608028654)  # sqrt(2/pi)
    return 0.5 * x * (1.0 + jnp.tanh(c * (x + 0.044715 * x * x * x)))


def _layernorm(x, g, b, eps=1e-5):
    mu = jnp.mean(x, axis=-1, keepdims=True)
    var = jnp.mean((x - mu) ** 2, axis=-1, keepdims=True)
    return (x - mu) * lax.rsqrt(var + eps) * g + b


def _softmax(s):
    m = jnp.max(s, axis=-1, keepdims=True)
    p = jnp.exp(s - m)
    return p * pl.reciprocal(jnp.sum(p, axis=-1, keepdims=True), approx=True)


# ---------------------------------------------------------------- fully fused forward kernel
def _network_kernel(
    # graph inputs
    src_ref, dst_ref, x_ref,
    # encoder embedding
    emb_w_ref, emb_b_ref,
    # stacked per-layer transformer weights (leading dim = layer)
    ln1_g_ref, ln1_b_ref, wqkv_ref, bqkv_ref, wo_ref, bo_ref,
    ln2_g_ref, ln2_b_ref, w1_ref, b1_ref, w2_ref, b2_ref,
    # final encoder LN
    lnf_g_ref, lnf_b_ref,
    # DINO head
    hw1_ref, hb1_ref, hw2_ref, hb2_ref, hw3_ref, hb3_ref, wn_ref,
    # output
    o_ref,
    *, n_layers, n_heads, head_dim, n_nodes,
):
    dim = n_heads * head_dim
    scale = jnp.float32(1.0 / (head_dim ** 0.5))
    n_edges = src_ref.shape[0]

    # --- adjacency bias, built once in VMEM (0 where edge or self-loop, -1e9 elsewhere).
    # TODO(synk): edge_attr unused; edge direction assumed query=edge_index[0] -> key=edge_index[1].
    iota_en = lax.broadcasted_iota(jnp.int32, (n_edges, n_nodes), 1)
    src_oh = (iota_en == src_ref[...]).astype(jnp.float32)          # (E, N)
    dst_oh = (iota_en == dst_ref[...]).astype(jnp.float32)          # (E, N)
    adj = lax.dot_general(src_oh, dst_oh, (((0,), (0,)), ((), ())),
                          preferred_element_type=jnp.float32)       # (N, N)
    eye = (lax.broadcasted_iota(jnp.int32, (n_nodes, n_nodes), 0)
           == lax.broadcasted_iota(jnp.int32, (n_nodes, n_nodes), 1))
    bias = jnp.where((adj > 0.0) | eye, 0.0, -1e9).astype(jnp.float32)

    # --- node-feature embedding
    h = jnp.dot(x_ref[...].astype(jnp.float32), emb_w_ref[...],
                preferred_element_type=jnp.float32) + emb_b_ref[...]

    # --- transformer blocks (Python-unrolled; weights indexed by static layer id)
    for l in range(n_layers):
        hn = _layernorm(h, ln1_g_ref[l], ln1_b_ref[l])
        qkv = jnp.dot(hn, wqkv_ref[l], preferred_element_type=jnp.float32) + bqkv_ref[l]
        q = qkv[:, 0 * dim:1 * dim]
        k = qkv[:, 1 * dim:2 * dim]
        v = qkv[:, 2 * dim:3 * dim]

        # attention + output projection fused per head (no lane-axis concat of 8-wide slices)
        attn_out = jnp.zeros((n_nodes, dim), jnp.float32)
        for hh in range(n_heads):
            lo, hi = hh * head_dim, (hh + 1) * head_dim
            qh, kh, vh = q[:, lo:hi], k[:, lo:hi], v[:, lo:hi]       # (N, head_dim)
            s = lax.dot_general(qh, kh, (((1,), (1,)), ((), ())),
                                preferred_element_type=jnp.float32) * scale + bias
            p = _softmax(s)
            oh = jnp.dot(p, vh, preferred_element_type=jnp.float32)  # (N, head_dim)
            attn_out = attn_out + jnp.dot(oh, wo_ref[l, lo:hi, :],
                                          preferred_element_type=jnp.float32)

        h = h + attn_out + bo_ref[l]

        hn2 = _layernorm(h, ln2_g_ref[l], ln2_b_ref[l])
        m1 = _gelu(jnp.dot(hn2, w1_ref[l], preferred_element_type=jnp.float32) + b1_ref[l])
        h = h + jnp.dot(m1, w2_ref[l], preferred_element_type=jnp.float32) + b2_ref[l]

    h = _layernorm(h, lnf_g_ref[...], lnf_b_ref[...])

    # --- DINO head (3-layer MLP -> bottleneck -> L2 norm -> precomputed weight-normed linear)
    z = _gelu(jnp.dot(h, hw1_ref[...], preferred_element_type=jnp.float32) + hb1_ref[...])
    z = _gelu(jnp.dot(z, hw2_ref[...], preferred_element_type=jnp.float32) + hb2_ref[...])
    z = jnp.dot(z, hw3_ref[...], preferred_element_type=jnp.float32) + hb3_ref[...]
    zn = z * lax.rsqrt(jnp.sum(z * z, axis=-1, keepdims=True) + 1e-12)
    o_ref[...] = jnp.dot(zn, wn_ref[...], preferred_element_type=jnp.float32).astype(o_ref.dtype)


# ---------------------------------------------------------------- parameters
def init_params(key, cfg, in_feat):
    dim = cfg["encoder"]["dim"]
    n_layers = cfg["encoder"]["n_layers"]
    mlp_hidden = int(dim * cfg["encoder"]["mlp_ratio"])
    h_hidden = cfg["head"]["hidden_dim"]
    h_bottle = cfg["head"]["bottleneck_dim"]
    h_out = cfg["head"]["out_dim"]

    keys = iter(jax.random.split(key, 64))

    def nrm(shape, scale=0.02):
        return (scale * jax.random.normal(next(keys), shape)).astype(jnp.float32)

    def zeros(shape):
        return jnp.zeros(shape, jnp.float32)

    def ones(shape):
        return jnp.ones(shape, jnp.float32)

    p = {
        "embed_w": nrm((in_feat, dim)),
        "embed_b": zeros((1, dim)),
        # stacked per-layer transformer weights (leading layer axis)
        "ln1_g": ones((n_layers, 1, dim)), "ln1_b": zeros((n_layers, 1, dim)),
        "wqkv": nrm((n_layers, dim, 3 * dim)), "bqkv": zeros((n_layers, 1, 3 * dim)),
        "wo": nrm((n_layers, dim, dim)), "bo": zeros((n_layers, 1, dim)),
        "ln2_g": ones((n_layers, 1, dim)), "ln2_b": zeros((n_layers, 1, dim)),
        "w1": nrm((n_layers, dim, mlp_hidden)), "b1": zeros((n_layers, 1, mlp_hidden)),
        "w2": nrm((n_layers, mlp_hidden, dim)), "b2": zeros((n_layers, 1, dim)),
        "lnf_g": ones((1, dim)), "lnf_b": zeros((1, dim)),
    }

    # DINO head. The weight-normalized last layer (wn = g * v / ||v||, g fixed at 1 since
    # norm_last_layer=True) is input-independent -> precompute once and cache as a parameter.
    last_v = nrm((h_bottle, h_out))
    last_g = jnp.ones((1, h_out), jnp.float32)
    wn = last_v * lax.rsqrt(jnp.sum(last_v * last_v, axis=0, keepdims=True) + 1e-12) * last_g
    p["head"] = {
        "w1": nrm((dim, h_hidden)), "b1": zeros((1, h_hidden)),
        "w2": nrm((h_hidden, h_hidden)), "b2": zeros((1, h_hidden)),
        "w3": nrm((h_hidden, h_bottle)), "b3": zeros((1, h_bottle)),
        "wn": wn.astype(jnp.float32),
    }
    return p


# ---------------------------------------------------------------- forward (single fused pallas_call)
def network_forward(params, cfg, x, edge_index, edge_attr=None):
    # TODO(synk): edge_attr is not used (Encoder source unavailable); edges only gate attention.
    n_nodes = x.shape[0]
    dim = cfg["encoder"]["dim"]
    n_heads = cfg["encoder"]["n_heads"]
    head_dim = dim // n_heads
    out_dim = cfg["head"]["out_dim"]

    # glue: present edge endpoints as lane-friendly (E, 1) int32 columns.
    src = edge_index[0].astype(jnp.int32).reshape(-1, 1)
    dst = edge_index[1].astype(jnp.int32).reshape(-1, 1)

    hp = params["head"]
    inputs = (
        src, dst, x,
        params["embed_w"], params["embed_b"],
        params["ln1_g"], params["ln1_b"], params["wqkv"], params["bqkv"],
        params["wo"], params["bo"],
        params["ln2_g"], params["ln2_b"], params["w1"], params["b1"],
        params["w2"], params["b2"],
        params["lnf_g"], params["lnf_b"],
        hp["w1"], hp["b1"], hp["w2"], hp["b2"], hp["w3"], hp["b3"], hp["wn"],
    )

    kernel = functools.partial(
        _network_kernel,
        n_layers=cfg["encoder"]["n_layers"],
        n_heads=n_heads,
        head_dim=head_dim,
        n_nodes=n_nodes,
    )

    return pl.pallas_call(
        kernel,
        out_shape=jax.ShapeDtypeStruct((n_nodes, out_dim), x.dtype),
        in_specs=[_VMEM] * len(inputs),
        out_specs=_VMEM,
        compiler_params=pltpu.CompilerParams(vmem_limit_bytes=32 * 1024 * 1024),
    )(*inputs)


# ---------------------------------------------------------------- main
if __name__ == "__main__":
    config = {
        "model": "graph_transformer",
        "embedding": "linear",
        "encoder": {"layer": "attention", "dim": 32, "n_layers": 2, "n_heads": 4,
                    "mlp_ratio": 4, "drop_rate": 0.0, "attn_drop_rate": 0.0,
                    "norm_layer": "layernorm", "act_layer": "gelu"},
        "head": {"out_dim": 64, "use_bn": False, "norm_last_layer": True,
                 "n_layers": 3, "hidden_dim": 64, "bottleneck_dim": 32},
        "loader": {"batch_size": 1},
    }

    key = jax.random.PRNGKey(0)
    k_param, k_x, k_e = jax.random.split(key, 3)

    n_nodes, in_feat, n_edges = 16, 8, 32
    x = jax.random.normal(k_x, (n_nodes, in_feat), dtype=jnp.float32)
    edge_index = jax.random.randint(k_e, (2, n_edges), 0, n_nodes, dtype=jnp.int32)
    edge_attr = None

    params = init_params(k_param, config, in_feat)

    fwd = jax.jit(functools.partial(network_forward, params, config))
    out = fwd(x, edge_index, edge_attr)
    jax.block_until_ready(out)

    assert out.shape == (n_nodes, config["head"]["out_dim"])
    assert jnp.all(jnp.isfinite(out))
    print("KERNEL_OK")
</pallas_src>

<mosaic_0001>
module attributes {stable_mosaic.version = 11 : i64} {
  func.func @_network_kernel(%arg0: memref<32x1xi32, #tpu.memory_space<vmem>>, %arg1: memref<32x1xi32, #tpu.memory_space<vmem>>, %arg2: memref<16x8xf32, #tpu.memory_space<vmem>>, %arg3: memref<8x32xf32, #tpu.memory_space<vmem>>, %arg4: memref<1x32xf32, #tpu.memory_space<vmem>>, %arg5: memref<2x1x32xf32, #tpu.memory_space<vmem>>, %arg6: memref<2x1x32xf32, #tpu.memory_space<vmem>>, %arg7: memref<2x32x96xf32, #tpu.memory_space<vmem>>, %arg8: memref<2x1x96xf32, #tpu.memory_space<vmem>>, %arg9: memref<2x32x32xf32, #tpu.memory_space<vmem>>, %arg10: memref<2x1x32xf32, #tpu.memory_space<vmem>>, %arg11: memref<2x1x32xf32, #tpu.memory_space<vmem>>, %arg12: memref<2x1x32xf32, #tpu.memory_space<vmem>>, %arg13: memref<2x32x128xf32, #tpu.memory_space<vmem>>, %arg14: memref<2x1x128xf32, #tpu.memory_space<vmem>>, %arg15: memref<2x128x32xf32, #tpu.memory_space<vmem>>, %arg16: memref<2x1x32xf32, #tpu.memory_space<vmem>>, %arg17: memref<1x32xf32, #tpu.memory_space<vmem>>, %arg18: memref<1x32xf32, #tpu.memory_space<vmem>>, %arg19: memref<32x64xf32, #tpu.memory_space<vmem>>, %arg20: memref<1x64xf32, #tpu.memory_space<vmem>>, %arg21: memref<64x64xf32, #tpu.memory_space<vmem>>, %arg22: memref<1x64xf32, #tpu.memory_space<vmem>>, %arg23: memref<64x32xf32, #tpu.memory_space<vmem>>, %arg24: memref<1x32xf32, #tpu.memory_space<vmem>>, %arg25: memref<32x64xf32, #tpu.memory_space<vmem>>, %arg26: memref<16x64xf32, #tpu.memory_space<vmem>>) attributes {dimension_semantics = [], scalar_prefetch = 0 : i64, scratch_operands = 0 : i64, tpu.core_type = #tpu.core_type<tc>} {
    %0 = tpu.iota {dimensions = array<i32: 1>} : vector<32x16xi32>
    %c0 = arith.constant 0 : index
    %c0_0 = arith.constant 0 : index
    %1 = vector.load %arg0[%c0, %c0_0] : memref<32x1xi32, #tpu.memory_space<vmem>>, vector<32x1xi32>
    %2 = vector.broadcast %1 : vector<32x1xi32> to vector<32x16xi32>
    %3 = arith.cmpi eq, %0, %2 : vector<32x16xi32>
    %4 = arith.extui %3 : vector<32x16xi1> to vector<32x16xi32>
    %5 = arith.sitofp %4 : vector<32x16xi32> to vector<32x16xf32>
    %c0_1 = arith.constant 0 : index
    %c0_2 = arith.constant 0 : index
    %6 = vector.load %arg1[%c0_1, %c0_2] : memref<32x1xi32, #tpu.memory_space<vmem>>, vector<32x1xi32>
    %7 = vector.broadcast %6 : vector<32x1xi32> to vector<32x16xi32>
    %8 = arith.cmpi eq, %0, %7 : vector<32x16xi32>
    %9 = arith.extui %8 : vector<32x16xi1> to vector<32x16xi32>
    %10 = arith.sitofp %9 : vector<32x16xi32> to vector<32x16xf32>
    %cst = arith.constant dense<0.000000e+00> : vector<16x16xf32>
    %11 = tpu.matmul %5, %10, %cst {dimension_numbers = #tpu.dot_dimension_numbers<[0], [0], [1], [1], [0, 1, 1, 1], [], []>} : vector<32x16xf32>, vector<32x16xf32>, vector<16x16xf32> -> vector<16x16xf32>
    %12 = tpu.iota {dimensions = array<i32: 0>} : vector<16x16xi32>
    %13 = tpu.iota {dimensions = array<i32: 1>} : vector<16x16xi32>
    %14 = arith.cmpi eq, %12, %13 : vector<16x16xi32>
    %cst_3 = arith.constant 0.000000e+00 : f32
    %15 = vector.broadcast %cst_3 : f32 to vector<16x16xf32>
    %16 = arith.cmpf ogt, %11, %15 : vector<16x16xf32>
    %17 = arith.ori %16, %14 : vector<16x16xi1>
    %cst_4 = arith.constant 0.000000e+00 : f32
    %cst_5 = arith.constant -1.000000e+09 : f32
    %18 = vector.broadcast %cst_4 : f32 to vector<16x16xf32>
    %19 = vector.broadcast %cst_5 : f32 to vector<16x16xf32>
    %20 = arith.select %17, %18, %19 : vector<16x16xi1>, vector<16x16xf32>
    %c0_6 = arith.constant 0 : index
    %c0_7 = arith.constant 0 : index
    %21 = vector.load %arg2[%c0_6, %c0_7] : memref<16x8xf32, #tpu.memory_space<vmem>>, vector<16x8xf32>
    %c0_8 = arith.constant 0 : index
    %c0_9 = arith.constant 0 : index
    %22 = vector.load %arg3[%c0_8, %c0_9] : memref<8x32xf32, #tpu.memory_space<vmem>>, vector<8x32xf32>
    %cst_10 = arith.constant dense<0.000000e+00> : vector<16x32xf32>
    %23 = tpu.matmul %21, %22, %cst_10 {dimension_numbers = #tpu.dot_dimension_numbers<[1], [0], [0], [1], [0, 0, 1, 1], [], []>} : vector<16x8xf32>, vector<8x32xf32>, vector<16x32xf32> -> vector<16x32xf32>
    %c0_11 = arith.constant 0 : index
    %c0_12 = arith.constant 0 : index
    %24 = vector.load %arg4[%c0_11, %c0_12] : memref<1x32xf32, #tpu.memory_space<vmem>>, vector<1x32xf32>
    %25 = vector.broadcast %24 : vector<1x32xf32> to vector<16x32xf32>
    %26 = arith.addf %23, %25 : vector<16x32xf32>
    %c0_13 = arith.constant 0 : index
    %c0_14 = arith.constant 0 : index
    %c0_15 = arith.constant 0 : index
    %27 = vector.load %arg5[%c0_13, %c0_14, %c0_15] : memref<2x1x32xf32, #tpu.memory_space<vmem>>, vector<1x1x32xf32>
    %28 = vector.shape_cast %27 : vector<1x1x32xf32> to vector<1x32xf32>
    %c0_16 = arith.constant 0 : index
    %c0_17 = arith.constant 0 : index
    %c0_18 = arith.constant 0 : index
    %29 = vector.load %arg6[%c0_16, %c0_17, %c0_18] : memref<2x1x32xf32, #tpu.memory_space<vmem>>, vector<1x1x32xf32>
    %30 = vector.shape_cast %29 : vector<1x1x32xf32> to vector<1x32xf32>
    %cst_19 = arith.constant dense<0.000000e+00> : vector<16xf32>
    %31 = vector.multi_reduction <add>, %26, %cst_19 [1] : vector<16x32xf32> to vector<16xf32>
    %32 = vector.shape_cast %31 : vector<16xf32> to vector<16x1xf32>
    %cst_20 = arith.constant 3.200000e+01 : f32
    %33 = vector.broadcast %cst_20 : f32 to vector<16x1xf32>
    %34 = arith.divf %32, %33 : vector<16x1xf32>
    %35 = vector.broadcast %34 : vector<16x1xf32> to vector<16x32xf32>
    %36 = arith.subf %26, %35 : vector<16x32xf32>
    %37 = arith.mulf %36, %36 : vector<16x32xf32>
    %cst_21 = arith.constant dense<0.000000e+00> : vector<16xf32>
    %38 = vector.multi_reduction <add>, %37, %cst_21 [1] : vector<16x32xf32> to vector<16xf32>
    %39 = vector.shape_cast %38 : vector<16xf32> to vector<16x1xf32>
    %cst_22 = arith.constant 3.200000e+01 : f32
    %40 = vector.broadcast %cst_22 : f32 to vector<16x1xf32>
    %41 = arith.divf %39, %40 : vector<16x1xf32>
    %42 = vector.broadcast %34 : vector<16x1xf32> to vector<16x32xf32>
    %43 = arith.subf %26, %42 : vector<16x32xf32>
    %cst_23 = arith.constant 9.99999974E-6 : f32
    %44 = vector.broadcast %cst_23 : f32 to vector<16x1xf32>
    %45 = arith.addf %41, %44 : vector<16x1xf32>
    %46 = math.rsqrt %45 : vector<16x1xf32>
    %47 = vector.broadcast %46 : vector<16x1xf32> to vector<16x32xf32>
    %48 = arith.mulf %43, %47 : vector<16x32xf32>
    %49 = vector.broadcast %28 : vector<1x32xf32> to vector<16x32xf32>
    %50 = arith.mulf %48, %49 : vector<16x32xf32>
    %51 = vector.broadcast %30 : vector<1x32xf32> to vector<16x32xf32>
    %52 = arith.addf %50, %51 : vector<16x32xf32>
    %c0_24 = arith.constant 0 : index
    %c0_25 = arith.constant 0 : index
    %c0_26 = arith.constant 0 : index
    %53 = vector.load %arg7[%c0_24, %c0_25, %c0_26] : memref<2x32x96xf32, #tpu.memory_space<vmem>>, vector<1x32x96xf32>
    %54 = vector.shape_cast %53 : vector<1x32x96xf32> to vector<32x96xf32>
    %cst_27 = arith.constant dense<0.000000e+00> : vector<16x96xf32>
    %55 = tpu.matmul %52, %54, %cst_27 {dimension_numbers = #tpu.dot_dimension_numbers<[1], [0], [0], [1], [0, 0, 1, 1], [], []>} : vector<16x32xf32>, vector<32x96xf32>, vector<16x96xf32> -> vector<16x96xf32>
    %c0_28 = arith.constant 0 : index
    %c0_29 = arith.constant 0 : index
    %c0_30 = arith.constant 0 : index
    %56 = vector.load %arg8[%c0_28, %c0_29, %c0_30] : memref<2x1x96xf32, #tpu.memory_space<vmem>>, vector<1x1x96xf32>
    %57 = vector.shape_cast %56 : vector<1x1x96xf32> to vector<1x96xf32>
    %58 = vector.broadcast %57 : vector<1x96xf32> to vector<16x96xf32>
    %59 = arith.addf %55, %58 : vector<16x96xf32>
    %60 = vector.extract_strided_slice %59 {offsets = [0, 0], sizes = [16, 32], strides = [1, 1]} : vector<16x96xf32> to vector<16x32xf32>
    %61 = vector.extract_strided_slice %59 {offsets = [0, 32], sizes = [16, 32], strides = [1, 1]} : vector<16x96xf32> to vector<16x32xf32>
    %62 = vector.extract_strided_slice %59 {offsets = [0, 64], sizes = [16, 32], strides = [1, 1]} : vector<16x96xf32> to vector<16x32xf32>
    %cst_31 = arith.constant 0.000000e+00 : f32
    %63 = vector.broadcast %cst_31 : f32 to vector<16x32xf32>
    %64 = vector.extract_strided_slice %60 {offsets = [0, 0], sizes = [16, 8], strides = [1, 1]} : vector<16x32xf32> to vector<16x8xf32>
    %65 = vector.extract_strided_slice %61 {offsets = [0, 0], sizes = [16, 8], strides = [1, 1]} : vector<16x32xf32> to vector<16x8xf32>
    %66 = vector.extract_strided_slice %62 {offsets = [0, 0], sizes = [16, 8], strides = [1, 1]} : vector<16x32xf32> to vector<16x8xf32>
    %cst_32 = arith.constant dense<0.000000e+00> : vector<16x16xf32>
    %67 = tpu.matmul %64, %65, %cst_32 {dimension_numbers = #tpu.dot_dimension_numbers<[1], [1], [0], [0], [0, 0, 1, 0], [], []>} : vector<16x8xf32>, vector<16x8xf32>, vector<16x16xf32> -> vector<16x16xf32>
    %cst_33 = arith.constant 0.353553385 : f32
    %68 = vector.broadcast %cst_33 : f32 to vector<16x16xf32>
    %69 = arith.mulf %67, %68 : vector<16x16xf32>
    %70 = arith.addf %69, %20 : vector<16x16xf32>
    %cst_34 = arith.constant dense<0xFF800000> : vector<16xf32>
    %71 = vector.multi_reduction <maximumf>, %70, %cst_34 [1] : vector<16x16xf32> to vector<16xf32>
    %72 = vector.shape_cast %71 : vector<16xf32> to vector<16x1xf32>
    %73 = vector.broadcast %72 : vector<16x1xf32> to vector<16x16xf32>
    %74 = arith.subf %70, %73 : vector<16x16xf32>
    %75 = math.exp %74 : vector<16x16xf32>
    %cst_35 = arith.constant dense<0.000000e+00> : vector<16xf32>
    %76 = vector.multi_reduction <add>, %75, %cst_35 [1] : vector<16x16xf32> to vector<16xf32>
    %77 = vector.shape_cast %76 : vector<16xf32> to vector<16x1xf32>
    %78 = tpu.reciprocal %77 {approx = true} : vector<16x1xf32> -> vector<16x1xf32>
    %79 = vector.broadcast %78 : vector<16x1xf32> to vector<16x16xf32>
    %80 = arith.mulf %75, %79 : vector<16x16xf32>
    %cst_36 = arith.constant dense<0.000000e+00> : vector<16x8xf32>
    %81 = tpu.matmul %80, %66, %cst_36 {dimension_numbers = #tpu.dot_dimension_numbers<[1], [0], [0], [1], [0, 0, 1, 1], [], []>} : vector<16x16xf32>, vector<16x8xf32>, vector<16x8xf32> -> vector<16x8xf32>
    %c0_37 = arith.constant 0 : index
    %c0_38 = arith.constant 0 : index
    %c0_39 = arith.constant 0 : index
    %82 = vector.load %arg9[%c0_37, %c0_38, %c0_39] : memref<2x32x32xf32, #tpu.memory_space<vmem>>, vector<1x8x32xf32>
    %83 = vector.shape_cast %82 : vector<1x8x32xf32> to vector<8x32xf32>
    %cst_40 = arith.constant dense<0.000000e+00> : vector<16x32xf32>
    %84 = tpu.matmul %81, %83, %cst_40 {dimension_numbers = #tpu.dot_dimension_numbers<[1], [0], [0], [1], [0, 0, 1, 1], [], []>} : vector<16x8xf32>, vector<8x32xf32>, vector<16x32xf32> -> vector<16x32xf32>
    %85 = arith.addf %63, %84 : vector<16x32xf32>
    %86 = vector.extract_strided_slice %60 {offsets = [0, 8], sizes = [16, 8], strides = [1, 1]} : vector<16x32xf32> to vector<16x8xf32>
    %87 = vector.extract_strided_slice %61 {offsets = [0, 8], sizes = [16, 8], strides = [1, 1]} : vector<16x32xf32> to vector<16x8xf32>
    %88 = vector.extract_strided_slice %62 {offsets = [0, 8], sizes = [16, 8], strides = [1, 1]} : vector<16x32xf32> to vector<16x8xf32>
    %cst_41 = arith.constant dense<0.000000e+00> : vector<16x16xf32>
    %89 = tpu.matmul %86, %87, %cst_41 {dimension_numbers = #tpu.dot_dimension_numbers<[1], [1], [0], [0], [0, 0, 1, 0], [], []>} : vector<16x8xf32>, vector<16x8xf32>, vector<16x16xf32> -> vector<16x16xf32>
    %cst_42 = arith.constant 0.353553385 : f32
    %90 = vector.broadcast %cst_42 : f32 to vector<16x16xf32>
    %91 = arith.mulf %89, %90 : vector<16x16xf32>
    %92 = arith.addf %91, %20 : vector<16x16xf32>
    %cst_43 = arith.constant dense<0xFF800000> : vector<16xf32>
    %93 = vector.multi_reduction <maximumf>, %92, %cst_43 [1] : vector<16x16xf32> to vector<16xf32>
    %94 = vector.shape_cast %93 : vector<16xf32> to vector<16x1xf32>
    %95 = vector.broadcast %94 : vector<16x1xf32> to vector<16x16xf32>
    %96 = arith.subf %92, %95 : vector<16x16xf32>
    %97 = math.exp %96 : vector<16x16xf32>
    %cst_44 = arith.constant dense<0.000000e+00> : vector<16xf32>
    %98 = vector.multi_reduction <add>, %97, %cst_44 [1] : vector<16x16xf32> to vector<16xf32>
    %99 = vector.shape_cast %98 : vector<16xf32> to vector<16x1xf32>
    %100 = tpu.reciprocal %99 {approx = true} : vector<16x1xf32> -> vector<16x1xf32>
    %101 = vector.broadcast %100 : vector<16x1xf32> to vector<16x16xf32>
    %102 = arith.mulf %97, %101 : vector<16x16xf32>
    %cst_45 = arith.constant dense<0.000000e+00> : vector<16x8xf32>
    %103 = tpu.matmul %102, %88, %cst_45 {dimension_numbers = #tpu.dot_dimension_numbers<[1], [0], [0], [1], [0, 0, 1, 1], [], []>} : vector<16x16xf32>, vector<16x8xf32>, vector<16x8xf32> -> vector<16x8xf32>
    %c0_46 = arith.constant 0 : index
    %c8 = arith.constant 8 : index
    %c0_47 = arith.constant 0 : index
    %104 = vector.load %arg9[%c0_46, %c8, %c0_47] : memref<2x32x32xf32, #tpu.memory_space<vmem>>, vector<1x8x32xf32>
    %105 = vector.shape_cast %104 : vector<1x8x32xf32> to vector<8x32xf32>
    %cst_48 = arith.constant dense<0.000000e+00> : vector<16x32xf32>
    %106 = tpu.matmul %103, %105, %cst_48 {dimension_numbers = #tpu.dot_dimension_numbers<[1], [0], [0], [1], [0, 0, 1, 1], [], []>} : vector<16x8xf32>, vector<8x32xf32>, vector<16x32xf32> -> vector<16x32xf32>
    %107 = arith.addf %85, %106 : vector<16x32xf32>
    %108 = vector.extract_strided_slice %60 {offsets = [0, 16], sizes = [16, 8], strides = [1, 1]} : vector<16x32xf32> to vector<16x8xf32>
    %109 = vector.extract_strided_slice %61 {offsets = [0, 16], sizes = [16, 8], strides = [1, 1]} : vector<16x32xf32> to vector<16x8xf32>
    %110 = vector.extract_strided_slice %62 {offsets = [0, 16], sizes = [16, 8], strides = [1, 1]} : vector<16x32xf32> to vector<16x8xf32>
    %cst_49 = arith.constant dense<0.000000e+00> : vector<16x16xf32>
    %111 = tpu.matmul %108, %109, %cst_49 {dimension_numbers = #tpu.dot_dimension_numbers<[1], [1], [0], [0], [0, 0, 1, 0], [], []>} : vector<16x8xf32>, vector<16x8xf32>, vector<16x16xf32> -> vector<16x16xf32>
    %cst_50 = arith.constant 0.353553385 : f32
    %112 = vector.broadcast %cst_50 : f32 to vector<16x16xf32>
    %113 = arith.mulf %111, %112 : vector<16x16xf32>
    %114 = arith.addf %113, %20 : vector<16x16xf32>
    %cst_51 = arith.constant dense<0xFF800000> : vector<16xf32>
    %115 = vector.multi_reduction <maximumf>, %114, %cst_51 [1] : vector<16x16xf32> to vector<16xf32>
    %116 = vector.shape_cast %115 : vector<16xf32> to vector<16x1xf32>
    %117 = vector.broadcast %116 : vector<16x1xf32> to vector<16x16xf32>
    %118 = arith.subf %114, %117 : vector<16x16xf32>
    %119 = math.exp %118 : vector<16x16xf32>
    %cst_52 = arith.constant dense<0.000000e+00> : vector<16xf32>
    %120 = vector.multi_reduction <add>, %119, %cst_52 [1] : vector<16x16xf32> to vector<16xf32>
    %121 = vector.shape_cast %120 : vector<16xf32> to vector<16x1xf32>
    %122 = tpu.reciprocal %121 {approx = true} : vector<16x1xf32> -> vector<16x1xf32>
    %123 = vector.broadcast %122 : vector<16x1xf32> to vector<16x16xf32>
    %124 = arith.mulf %119, %123 : vector<16x16xf32>
    %cst_53 = arith.constant dense<0.000000e+00> : vector<16x8xf32>
    %125 = tpu.matmul %124, %110, %cst_53 {dimension_numbers = #tpu.dot_dimension_numbers<[1], [0], [0], [1], [0, 0, 1, 1], [], []>} : vector<16x16xf32>, vector<16x8xf32>, vector<16x8xf32> -> vector<16x8xf32>
    %c0_54 = arith.constant 0 : index
    %c16 = arith.constant 16 : index
    %c0_55 = arith.constant 0 : index
    %126 = vector.load %arg9[%c0_54, %c16, %c0_55] : memref<2x32x32xf32, #tpu.memory_space<vmem>>, vector<1x8x32xf32>
    %127 = vector.shape_cast %126 : vector<1x8x32xf32> to vector<8x32xf32>
    %cst_56 = arith.constant dense<0.000000e+00> : vector<16x32xf32>
    %128 = tpu.matmul %125, %127, %cst_56 {dimension_numbers = #tpu.dot_dimension_numbers<[1], [0], [0], [1], [0, 0, 1, 1], [], []>} : vector<16x8xf32>, vector<8x32xf32>, vector<16x32xf32> -> vector<16x32xf32>
    %129 = arith.addf %107, %128 : vector<16x32xf32>
    %130 = vector.extract_strided_slice %60 {offsets = [0, 24], sizes = [16, 8], strides = [1, 1]} : vector<16x32xf32> to vector<16x8xf32>
    %131 = vector.extract_strided_slice %61 {offsets = [0, 24], sizes = [16, 8], strides = [1, 1]} : vector<16x32xf32> to vector<16x8xf32>
    %132 = vector.extract_strided_slice %62 {offsets = [0, 24], sizes = [16, 8], strides = [1, 1]} : vector<16x32xf32> to vector<16x8xf32>
    %cst_57 = arith.constant dense<0.000000e+00> : vector<16x16xf32>
    %133 = tpu.matmul %130, %131, %cst_57 {dimension_numbers = #tpu.dot_dimension_numbers<[1], [1], [0], [0], [0, 0, 1, 0], [], []>} : vector<16x8xf32>, vector<16x8xf32>, vector<16x16xf32> -> vector<16x16xf32>
    %cst_58 = arith.constant 0.353553385 : f32
    %134 = vector.broadcast %cst_58 : f32 to vector<16x16xf32>
    %135 = arith.mulf %133, %134 : vector<16x16xf32>
    %136 = arith.addf %135, %20 : vector<16x16xf32>
    %cst_59 = arith.constant dense<0xFF800000> : vector<16xf32>
    %137 = vector.multi_reduction <maximumf>, %136, %cst_59 [1] : vector<16x16xf32> to vector<16xf32>
    %138 = vector.shape_cast %137 : vector<16xf32> to vector<16x1xf32>
    %139 = vector.broadcast %138 : vector<16x1xf32> to vector<16x16xf32>
    %140 = arith.subf %136, %139 : vector<16x16xf32>
    %141 = math.exp %140 : vector<16x16xf32>
    %cst_60 = arith.constant dense<0.000000e+00> : vector<16xf32>
    %142 = vector.multi_reduction <add>, %141, %cst_60 [1] : vector<16x16xf32> to vector<16xf32>
    %143 = vector.shape_cast %142 : vector<16xf32> to vector<16x1xf32>
    %144 = tpu.reciprocal %143 {approx = true} : vector<16x1xf32> -> vector<16x1xf32>
    %145 = vector.broadcast %144 : vector<16x1xf32> to vector<16x16xf32>
    %146 = arith.mulf %141, %145 : vector<16x16xf32>
    %cst_61 = arith.constant dense<0.000000e+00> : vector<16x8xf32>
    %147 = tpu.matmul %146, %132, %cst_61 {dimension_numbers = #tpu.dot_dimension_numbers<[1], [0], [0], [1], [0, 0, 1, 1], [], []>} : vector<16x16xf32>, vector<16x8xf32>, vector<16x8xf32> -> vector<16x8xf32>
    %c0_62 = arith.constant 0 : index
    %c24 = arith.constant 24 : index
    %c0_63 = arith.constant 0 : index
    %148 = vector.load %arg9[%c0_62, %c24, %c0_63] : memref<2x32x32xf32, #tpu.memory_space<vmem>>, vector<1x8x32xf32>
    %149 = vector.shape_cast %148 : vector<1x8x32xf32> to vector<8x32xf32>
    %cst_64 = arith.constant dense<0.000000e+00> : vector<16x32xf32>
    %150 = tpu.matmul %147, %149, %cst_64 {dimension_numbers = #tpu.dot_dimension_numbers<[1], [0], [0], [1], [0, 0, 1, 1], [], []>} : vector<16x8xf32>, vector<8x32xf32>, vector<16x32xf32> -> vector<16x32xf32>
    %151 = arith.addf %129, %150 : vector<16x32xf32>
    %152 = arith.addf %26, %151 : vector<16x32xf32>
    %c0_65 = arith.constant 0 : index
    %c0_66 = arith.constant 0 : index
    %c0_67 = arith.constant 0 : index
    %153 = vector.load %arg10[%c0_65, %c0_66, %c0_67] : memref<2x1x32xf32, #tpu.memory_space<vmem>>, vector<1x1x32xf32>
    %154 = vector.shape_cast %153 : vector<1x1x32xf32> to vector<1x32xf32>
    %155 = vector.broadcast %154 : vector<1x32xf32> to vector<16x32xf32>
    %156 = arith.addf %152, %155 : vector<16x32xf32>
    %c0_68 = arith.constant 0 : index
    %c0_69 = arith.constant 0 : index
    %c0_70 = arith.constant 0 : index
    %157 = vector.load %arg11[%c0_68, %c0_69, %c0_70] : memref<2x1x32xf32, #tpu.memory_space<vmem>>, vector<1x1x32xf32>
    %158 = vector.shape_cast %157 : vector<1x1x32xf32> to vector<1x32xf32>
    %c0_71 = arith.constant 0 : index
    %c0_72 = arith.constant 0 : index
    %c0_73 = arith.constant 0 : index
    %159 = vector.load %arg12[%c0_71, %c0_72, %c0_73] : memref<2x1x32xf32, #tpu.memory_space<vmem>>, vector<1x1x32xf32>
    %160 = vector.shape_cast %159 : vector<1x1x32xf32> to vector<1x32xf32>
    %cst_74 = arith.constant dense<0.000000e+00> : vector<16xf32>
    %161 = vector.multi_reduction <add>, %156, %cst_74 [1] : vector<16x32xf32> to vector<16xf32>
    %162 = vector.shape_cast %161 : vector<16xf32> to vector<16x1xf32>
    %cst_75 = arith.constant 3.200000e+01 : f32
    %163 = vector.broadcast %cst_75 : f32 to vector<16x1xf32>
    %164 = arith.divf %162, %163 : vector<16x1xf32>
    %165 = vector.broadcast %164 : vector<16x1xf32> to vector<16x32xf32>
    %166 = arith.subf %156, %165 : vector<16x32xf32>
    %167 = arith.mulf %166, %166 : vector<16x32xf32>
    %cst_76 = arith.constant dense<0.000000e+00> : vector<16xf32>
    %168 = vector.multi_reduction <add>, %167, %cst_76 [1] : vector<16x32xf32> to vector<16xf32>
    %169 = vector.shape_cast %168 : vector<16xf32> to vector<16x1xf32>
    %cst_77 = arith.constant 3.200000e+01 : f32
    %170 = vector.broadcast %cst_77 : f32 to vector<16x1xf32>
    %171 = arith.divf %169, %170 : vector<16x1xf32>
    %172 = vector.broadcast %164 : vector<16x1xf32> to vector<16x32xf32>
    %173 = arith.subf %156, %172 : vector<16x32xf32>
    %cst_78 = arith.constant 9.99999974E-6 : f32
    %174 = vector.broadcast %cst_78 : f32 to vector<16x1xf32>
    %175 = arith.addf %171, %174 : vector<16x1xf32>
    %176 = math.rsqrt %175 : vector<16x1xf32>
    %177 = vector.broadcast %176 : vector<16x1xf32> to vector<16x32xf32>
    %178 = arith.mulf %173, %177 : vector<16x32xf32>
    %179 = vector.broadcast %158 : vector<1x32xf32> to vector<16x32xf32>
    %180 = arith.mulf %178, %179 : vector<16x32xf32>
    %181 = vector.broadcast %160 : vector<1x32xf32> to vector<16x32xf32>
    %182 = arith.addf %180, %181 : vector<16x32xf32>
    %c0_79 = arith.constant 0 : index
    %c0_80 = arith.constant 0 : index
    %c0_81 = arith.constant 0 : index
    %183 = vector.load %arg13[%c0_79, %c0_80, %c0_81] : memref<2x32x128xf32, #tpu.memory_space<vmem>>, vector<1x32x128xf32>
    %184 = vector.shape_cast %183 : vector<1x32x128xf32> to vector<32x128xf32>
    %cst_82 = arith.constant dense<0.000000e+00> : vector<16x128xf32>
    %185 = tpu.matmul %182, %184, %cst_82 {dimension_numbers = #tpu.dot_dimension_numbers<[1], [0], [0], [1], [0, 0, 1, 1], [], []>} : vector<16x32xf32>, vector<32x128xf32>, vector<16x128xf32> -> vector<16x128xf32>
    %c0_83 = arith.constant 0 : index
    %c0_84 = arith.constant 0 : index
    %c0_85 = arith.constant 0 : index
    %186 = vector.load %arg14[%c0_83, %c0_84, %c0_85] : memref<2x1x128xf32, #tpu.memory_space<vmem>>, vector<1x1x128xf32>
    %187 = vector.shape_cast %186 : vector<1x1x128xf32> to vector<1x128xf32>
    %188 = vector.broadcast %187 : vector<1x128xf32> to vector<16x128xf32>
    %189 = arith.addf %185, %188 : vector<16x128xf32>
    %cst_86 = arith.constant 5.000000e-01 : f32
    %190 = vector.broadcast %cst_86 : f32 to vector<16x128xf32>
    %191 = arith.mulf %190, %189 : vector<16x128xf32>
    %cst_87 = arith.constant 4.471500e-02 : f32
    %192 = vector.broadcast %cst_87 : f32 to vector<16x128xf32>
    %193 = arith.mulf %192, %189 : vector<16x128xf32>
    %194 = arith.mulf %193, %189 : vector<16x128xf32>
    %195 = arith.mulf %194, %189 : vector<16x128xf32>
    %196 = arith.addf %189, %195 : vector<16x128xf32>
    %cst_88 = arith.constant 0.797884583 : f32
    %197 = vector.broadcast %cst_88 : f32 to vector<16x128xf32>
    %198 = arith.mulf %197, %196 : vector<16x128xf32>
    %199 = math.tanh %198 : vector<16x128xf32>
    %cst_89 = arith.constant 1.000000e+00 : f32
    %200 = vector.broadcast %cst_89 : f32 to vector<16x128xf32>
    %201 = arith.addf %200, %199 : vector<16x128xf32>
    %202 = arith.mulf %191, %201 : vector<16x128xf32>
    %c0_90 = arith.constant 0 : index
    %c0_91 = arith.constant 0 : index
    %c0_92 = arith.constant 0 : index
    %203 = vector.load %arg15[%c0_90, %c0_91, %c0_92] : memref<2x128x32xf32, #tpu.memory_space<vmem>>, vector<1x128x32xf32>
    %204 = vector.shape_cast %203 : vector<1x128x32xf32> to vector<128x32xf32>
    %cst_93 = arith.constant dense<0.000000e+00> : vector<16x32xf32>
    %205 = tpu.matmul %202, %204, %cst_93 {dimension_numbers = #tpu.dot_dimension_numbers<[1], [0], [0], [1], [0, 0, 1, 1], [], []>} : vector<16x128xf32>, vector<128x32xf32>, vector<16x32xf32> -> vector<16x32xf32>
    %206 = arith.addf %156, %205 : vector<16x32xf32>
    %c0_94 = arith.constant 0 : index
    %c0_95 = arith.constant 0 : index
    %c0_96 = arith.constant 0 : index
    %207 = vector.load %arg16[%c0_94, %c0_95, %c0_96] : memref<2x1x32xf32, #tpu.memory_space<vmem>>, vector<1x1x32xf32>
    %208 = vector.shape_cast %207 : vector<1x1x32xf32> to vector<1x32xf32>
    %209 = vector.broadcast %208 : vector<1x32xf32> to vector<16x32xf32>
    %210 = arith.addf %206, %209 : vector<16x32xf32>
    %c1 = arith.constant 1 : index
    %c0_97 = arith.constant 0 : index
    %c0_98 = arith.constant 0 : index
    %211 = vector.load %arg5[%c1, %c0_97, %c0_98] : memref<2x1x32xf32, #tpu.memory_space<vmem>>, vector<1x1x32xf32>
    %212 = vector.shape_cast %211 : vector<1x1x32xf32> to vector<1x32xf32>
    %c1_99 = arith.constant 1 : index
    %c0_100 = arith.constant 0 : index
    %c0_101 = arith.constant 0 : index
    %213 = vector.load %arg6[%c1_99, %c0_100, %c0_101] : memref<2x1x32xf32, #tpu.memory_space<vmem>>, vector<1x1x32xf32>
    %214 = vector.shape_cast %213 : vector<1x1x32xf32> to vector<1x32xf32>
    %cst_102 = arith.constant dense<0.000000e+00> : vector<16xf32>
    %215 = vector.multi_reduction <add>, %210, %cst_102 [1] : vector<16x32xf32> to vector<16xf32>
    %216 = vector.shape_cast %215 : vector<16xf32> to vector<16x1xf32>
    %cst_103 = arith.constant 3.200000e+01 : f32
    %217 = vector.broadcast %cst_103 : f32 to vector<16x1xf32>
    %218 = arith.divf %216, %217 : vector<16x1xf32>
    %219 = vector.broadcast %218 : vector<16x1xf32> to vector<16x32xf32>
    %220 = arith.subf %210, %219 : vector<16x32xf32>
    %221 = arith.mulf %220, %220 : vector<16x32xf32>
    %cst_104 = arith.constant dense<0.000000e+00> : vector<16xf32>
    %222 = vector.multi_reduction <add>, %221, %cst_104 [1] : vector<16x32xf32> to vector<16xf32>
    %223 = vector.shape_cast %222 : vector<16xf32> to vector<16x1xf32>
    %cst_105 = arith.constant 3.200000e+01 : f32
    %224 = vector.broadcast %cst_105 : f32 to vector<16x1xf32>
    %225 = arith.divf %223, %224 : vector<16x1xf32>
    %226 = vector.broadcast %218 : vector<16x1xf32> to vector<16x32xf32>
    %227 = arith.subf %210, %226 : vector<16x32xf32>
    %cst_106 = arith.constant 9.99999974E-6 : f32
    %228 = vector.broadcast %cst_106 : f32 to vector<16x1xf32>
    %229 = arith.addf %225, %228 : vector<16x1xf32>
    %230 = math.rsqrt %229 : vector<16x1xf32>
    %231 = vector.broadcast %230 : vector<16x1xf32> to vector<16x32xf32>
    %232 = arith.mulf %227, %231 : vector<16x32xf32>
    %233 = vector.broadcast %212 : vector<1x32xf32> to vector<16x32xf32>
    %234 = arith.mulf %232, %233 : vector<16x32xf32>
    %235 = vector.broadcast %214 : vector<1x32xf32> to vector<16x32xf32>
    %236 = arith.addf %234, %235 : vector<16x32xf32>
    %c1_107 = arith.constant 1 : index
    %c0_108 = arith.constant 0 : index
    %c0_109 = arith.constant 0 : index
    %237 = vector.load %arg7[%c1_107, %c0_108, %c0_109] : memref<2x32x96xf32, #tpu.memory_space<vmem>>, vector<1x32x96xf32>
    %238 = vector.shape_cast %237 : vector<1x32x96xf32> to vector<32x96xf32>
    %cst_110 = arith.constant dense<0.000000e+00> : vector<16x96xf32>
    %239 = tpu.matmul %236, %238, %cst_110 {dimension_numbers = #tpu.dot_dimension_numbers<[1], [0], [0], [1], [0, 0, 1, 1], [], []>} : vector<16x32xf32>, vector<32x96xf32>, vector<16x96xf32> -> vector<16x96xf32>
    %c1_111 = arith.constant 1 : index
    %c0_112 = arith.constant 0 : index
    %c0_113 = arith.constant 0 : index
    %240 = vector.load %arg8[%c1_111, %c0_112, %c0_113] : memref<2x1x96xf32, #tpu.memory_space<vmem>>, vector<1x1x96xf32>
    %241 = vector.shape_cast %240 : vector<1x1x96xf32> to vector<1x96xf32>
    %242 = vector.broadcast %241 : vector<1x96xf32> to vector<16x96xf32>
    %243 = arith.addf %239, %242 : vector<16x96xf32>
    %244 = vector.extract_strided_slice %243 {offsets = [0, 0], sizes = [16, 32], strides = [1, 1]} : vector<16x96xf32> to vector<16x32xf32>
    %245 = vector.extract_strided_slice %243 {offsets = [0, 32], sizes = [16, 32], strides = [1, 1]} : vector<16x96xf32> to vector<16x32xf32>
    %246 = vector.extract_strided_slice %243 {offsets = [0, 64], sizes = [16, 32], strides = [1, 1]} : vector<16x96xf32> to vector<16x32xf32>
    %cst_114 = arith.constant 0.000000e+00 : f32
    %247 = vector.broadcast %cst_114 : f32 to vector<16x32xf32>
    %248 = vector.extract_strided_slice %244 {offsets = [0, 0], sizes = [16, 8], strides = [1, 1]} : vector<16x32xf32> to vector<16x8xf32>
    %249 = vector.extract_strided_slice %245 {offsets = [0, 0], sizes = [16, 8], strides = [1, 1]} : vector<16x32xf32> to vector<16x8xf32>
    %250 = vector.extract_strided_slice %246 {offsets = [0, 0], sizes = [16, 8], strides = [1, 1]} : vector<16x32xf32> to vector<16x8xf32>
    %cst_115 = arith.constant dense<0.000000e+00> : vector<16x16xf32>
    %251 = tpu.matmul %248, %249, %cst_115 {dimension_numbers = #tpu.dot_dimension_numbers<[1], [1], [0], [0], [0, 0, 1, 0], [], []>} : vector<16x8xf32>, vector<16x8xf32>, vector<16x16xf32> -> vector<16x16xf32>
    %cst_116 = arith.constant 0.353553385 : f32
    %252 = vector.broadcast %cst_116 : f32 to vector<16x16xf32>
    %253 = arith.mulf %251, %252 : vector<16x16xf32>
    %254 = arith.addf %253, %20 : vector<16x16xf32>
    %cst_117 = arith.constant dense<0xFF800000> : vector<16xf32>
    %255 = vector.multi_reduction <maximumf>, %254, %cst_117 [1] : vector<16x16xf32> to vector<16xf32>
    %256 = vector.shape_cast %255 : vector<16xf32> to vector<16x1xf32>
    %257 = vector.broadcast %256 : vector<16x1xf32> to vector<16x16xf32>
    %258 = arith.subf %254, %257 : vector<16x16xf32>
    %259 = math.exp %258 : vector<16x16xf32>
    %cst_118 = arith.constant dense<0.000000e+00> : vector<16xf32>
    %260 = vector.multi_reduction <add>, %259, %cst_118 [1] : vector<16x16xf32> to vector<16xf32>
    %261 = vector.shape_cast %260 : vector<16xf32> to vector<16x1xf32>
    %262 = tpu.reciprocal %261 {approx = true} : vector<16x1xf32> -> vector<16x1xf32>
    %263 = vector.broadcast %262 : vector<16x1xf32> to vector<16x16xf32>
    %264 = arith.mulf %259, %263 : vector<16x16xf32>
    %cst_119 = arith.constant dense<0.000000e+00> : vector<16x8xf32>
    %265 = tpu.matmul %264, %250, %cst_119 {dimension_numbers = #tpu.dot_dimension_numbers<[1], [0], [0], [1], [0, 0, 1, 1], [], []>} : vector<16x16xf32>, vector<16x8xf32>, vector<16x8xf32> -> vector<16x8xf32>
    %c1_120 = arith.constant 1 : index
    %c0_121 = arith.constant 0 : index
    %c0_122 = arith.constant 0 : index
    %266 = vector.load %arg9[%c1_120, %c0_121, %c0_122] : memref<2x32x32xf32, #tpu.memory_space<vmem>>, vector<1x8x32xf32>
    %267 = vector.shape_cast %266 : vector<1x8x32xf32> to vector<8x32xf32>
    %cst_123 = arith.constant dense<0.000000e+00> : vector<16x32xf32>
    %268 = tpu.matmul %265, %267, %cst_123 {dimension_numbers = #tpu.dot_dimension_numbers<[1], [0], [0], [1], [0, 0, 1, 1], [], []>} : vector<16x8xf32>, vector<8x32xf32>, vector<16x32xf32> -> vector<16x32xf32>
    %269 = arith.addf %247, %268 : vector<16x32xf32>
    %270 = vector.extract_strided_slice %244 {offsets = [0, 8], sizes = [16, 8], strides = [1, 1]} : vector<16x32xf32> to vector<16x8xf32>
    %271 = vector.extract_strided_slice %245 {offsets = [0, 8], sizes = [16, 8], strides = [1, 1]} : vector<16x32xf32> to vector<16x8xf32>
    %272 = vector.extract_strided_slice %246 {offsets = [0, 8], sizes = [16, 8], strides = [1, 1]} : vector<16x32xf32> to vector<16x8xf32>
    %cst_124 = arith.constant dense<0.000000e+00> : vector<16x16xf32>
    %273 = tpu.matmul %270, %271, %cst_124 {dimension_numbers = #tpu.dot_dimension_numbers<[1], [1], [0], [0], [0, 0, 1, 0], [], []>} : vector<16x8xf32>, vector<16x8xf32>, vector<16x16xf32> -> vector<16x16xf32>
    %cst_125 = arith.constant 0.353553385 : f32
    %274 = vector.broadcast %cst_125 : f32 to vector<16x16xf32>
    %275 = arith.mulf %273, %274 : vector<16x16xf32>
    %276 = arith.addf %275, %20 : vector<16x16xf32>
    %cst_126 = arith.constant dense<0xFF800000> : vector<16xf32>
    %277 = vector.multi_reduction <maximumf>, %276, %cst_126 [1] : vector<16x16xf32> to vector<16xf32>
    %278 = vector.shape_cast %277 : vector<16xf32> to vector<16x1xf32>
    %279 = vector.broadcast %278 : vector<16x1xf32> to vector<16x16xf32>
    %280 = arith.subf %276, %279 : vector<16x16xf32>
    %281 = math.exp %280 : vector<16x16xf32>
    %cst_127 = arith.constant dense<0.000000e+00> : vector<16xf32>
    %282 = vector.multi_reduction <add>, %281, %cst_127 [1] : vector<16x16xf32> to vector<16xf32>
    %283 = vector.shape_cast %282 : vector<16xf32> to vector<16x1xf32>
    %284 = tpu.reciprocal %283 {approx = true} : vector<16x1xf32> -> vector<16x1xf32>
    %285 = vector.broadcast %284 : vector<16x1xf32> to vector<16x16xf32>
    %286 = arith.mulf %281, %285 : vector<16x16xf32>
    %cst_128 = arith.constant dense<0.000000e+00> : vector<16x8xf32>
    %287 = tpu.matmul %286, %272, %cst_128 {dimension_numbers = #tpu.dot_dimension_numbers<[1], [0], [0], [1], [0, 0, 1, 1], [], []>} : vector<16x16xf32>, vector<16x8xf32>, vector<16x8xf32> -> vector<16x8xf32>
    %c1_129 = arith.constant 1 : index
    %c8_130 = arith.constant 8 : index
    %c0_131 = arith.constant 0 : index
    %288 = vector.load %arg9[%c1_129, %c8_130, %c0_131] : memref<2x32x32xf32, #tpu.memory_space<vmem>>, vector<1x8x32xf32>
    %289 = vector.shape_cast %288 : vector<1x8x32xf32> to vector<8x32xf32>
    %cst_132 = arith.constant dense<0.000000e+00> : vector<16x32xf32>
    %290 = tpu.matmul %287, %289, %cst_132 {dimension_numbers = #tpu.dot_dimension_numbers<[1], [0], [0], [1], [0, 0, 1, 1], [], []>} : vector<16x8xf32>, vector<8x32xf32>, vector<16x32xf32> -> vector<16x32xf32>
    %291 = arith.addf %269, %290 : vector<16x32xf32>
    %292 = vector.extract_strided_slice %244 {offsets = [0, 16], sizes = [16, 8], strides = [1, 1]} : vector<16x32xf32> to vector<16x8xf32>
    %293 = vector.extract_strided_slice %245 {offsets = [0, 16], sizes = [16, 8], strides = [1, 1]} : vector<16x32xf32> to vector<16x8xf32>
    %294 = vector.extract_strided_slice %246 {offsets = [0, 16], sizes = [16, 8], strides = [1, 1]} : vector<16x32xf32> to vector<16x8xf32>
    %cst_133 = arith.constant dense<0.000000e+00> : vector<16x16xf32>
    %295 = tpu.matmul %292, %293, %cst_133 {dimension_numbers = #tpu.dot_dimension_numbers<[1], [1], [0], [0], [0, 0, 1, 0], [], []>} : vector<16x8xf32>, vector<16x8xf32>, vector<16x16xf32> -> vector<16x16xf32>
    %cst_134 = arith.constant 0.353553385 : f32
    %296 = vector.broadcast %cst_134 : f32 to vector<16x16xf32>
    %297 = arith.mulf %295, %296 : vector<16x16xf32>
    %298 = arith.addf %297, %20 : vector<16x16xf32>
    %cst_135 = arith.constant dense<0xFF800000> : vector<16xf32>
    %299 = vector.multi_reduction <maximumf>, %298, %cst_135 [1] : vector<16x16xf32> to vector<16xf32>
    %300 = vector.shape_cast %299 : vector<16xf32> to vector<16x1xf32>
    %301 = vector.broadcast %300 : vector<16x1xf32> to vector<16x16xf32>
    %302 = arith.subf %298, %301 : vector<16x16xf32>
    %303 = math.exp %302 : vector<16x16xf32>
    %cst_136 = arith.constant dense<0.000000e+00> : vector<16xf32>
    %304 = vector.multi_reduction <add>, %303, %cst_136 [1] : vector<16x16xf32> to vector<16xf32>
    %305 = vector.shape_cast %304 : vector<16xf32> to vector<16x1xf32>
    %306 = tpu.reciprocal %305 {approx = true} : vector<16x1xf32> -> vector<16x1xf32>
    %307 = vector.broadcast %306 : vector<16x1xf32> to vector<16x16xf32>
    %308 = arith.mulf %303, %307 : vector<16x16xf32>
    %cst_137 = arith.constant dense<0.000000e+00> : vector<16x8xf32>
    %309 = tpu.matmul %308, %294, %cst_137 {dimension_numbers = #tpu.dot_dimension_numbers<[1], [0], [0], [1], [0, 0, 1, 1], [], []>} : vector<16x16xf32>, vector<16x8xf32>, vector<16x8xf32> -> vector<16x8xf32>
    %c1_138 = arith.constant 1 : index
    %c16_139 = arith.constant 16 : index
    %c0_140 = arith.constant 0 : index
    %310 = vector.load %arg9[%c1_138, %c16_139, %c0_140] : memref<2x32x32xf32, #tpu.memory_space<vmem>>, vector<1x8x32xf32>
    %311 = vector.shape_cast %310 : vector<1x8x32xf32> to vector<8x32xf32>
    %cst_141 = arith.constant dense<0.000000e+00> : vector<16x32xf32>
    %312 = tpu.matmul %309, %311, %cst_141 {dimension_numbers = #tpu.dot_dimension_numbers<[1], [0], [0], [1], [0, 0, 1, 1], [], []>} : vector<16x8xf32>, vector<8x32xf32>, vector<16x32xf32> -> vector<16x32xf32>
    %313 = arith.addf %291, %312 : vector<16x32xf32>
    %314 = vector.extract_strided_slice %244 {offsets = [0, 24], sizes = [16, 8], strides = [1, 1]} : vector<16x32xf32> to vector<16x8xf32>
    %315 = vector.extract_strided_slice %245 {offsets = [0, 24], sizes = [16, 8], strides = [1, 1]} : vector<16x32xf32> to vector<16x8xf32>
    %316 = vector.extract_strided_slice %246 {offsets = [0, 24], sizes = [16, 8], strides = [1, 1]} : vector<16x32xf32> to vector<16x8xf32>
    %cst_142 = arith.constant dense<0.000000e+00> : vector<16x16xf32>
    %317 = tpu.matmul %314, %315, %cst_142 {dimension_numbers = #tpu.dot_dimension_numbers<[1], [1], [0], [0], [0, 0, 1, 0], [], []>} : vector<16x8xf32>, vector<16x8xf32>, vector<16x16xf32> -> vector<16x16xf32>
    %cst_143 = arith.constant 0.353553385 : f32
    %318 = vector.broadcast %cst_143 : f32 to vector<16x16xf32>
    %319 = arith.mulf %317, %318 : vector<16x16xf32>
    %320 = arith.addf %319, %20 : vector<16x16xf32>
    %cst_144 = arith.constant dense<0xFF800000> : vector<16xf32>
    %321 = vector.multi_reduction <maximumf>, %320, %cst_144 [1] : vector<16x16xf32> to vector<16xf32>
    %322 = vector.shape_cast %321 : vector<16xf32> to vector<16x1xf32>
    %323 = vector.broadcast %322 : vector<16x1xf32> to vector<16x16xf32>
    %324 = arith.subf %320, %323 : vector<16x16xf32>
    %325 = math.exp %324 : vector<16x16xf32>
    %cst_145 = arith.constant dense<0.000000e+00> : vector<16xf32>
    %326 = vector.multi_reduction <add>, %325, %cst_145 [1] : vector<16x16xf32> to vector<16xf32>
    %327 = vector.shape_cast %326 : vector<16xf32> to vector<16x1xf32>
    %328 = tpu.reciprocal %327 {approx = true} : vector<16x1xf32> -> vector<16x1xf32>
    %329 = vector.broadcast %328 : vector<16x1xf32> to vector<16x16xf32>
    %330 = arith.mulf %325, %329 : vector<16x16xf32>
    %cst_146 = arith.constant dense<0.000000e+00> : vector<16x8xf32>
    %331 = tpu.matmul %330, %316, %cst_146 {dimension_numbers = #tpu.dot_dimension_numbers<[1], [0], [0], [1], [0, 0, 1, 1], [], []>} : vector<16x16xf32>, vector<16x8xf32>, vector<16x8xf32> -> vector<16x8xf32>
    %c1_147 = arith.constant 1 : index
    %c24_148 = arith.constant 24 : index
    %c0_149 = arith.constant 0 : index
    %332 = vector.load %arg9[%c1_147, %c24_148, %c0_149] : memref<2x32x32xf32, #tpu.memory_space<vmem>>, vector<1x8x32xf32>
    %333 = vector.shape_cast %332 : vector<1x8x32xf32> to vector<8x32xf32>
    %cst_150 = arith.constant dense<0.000000e+00> : vector<16x32xf32>
    %334 = tpu.matmul %331, %333, %cst_150 {dimension_numbers = #tpu.dot_dimension_numbers<[1], [0], [0], [1], [0, 0, 1, 1], [], []>} : vector<16x8xf32>, vector<8x32xf32>, vector<16x32xf32> -> vector<16x32xf32>
    %335 = arith.addf %313, %334 : vector<16x32xf32>
    %336 = arith.addf %210, %335 : vector<16x32xf32>
    %c1_151 = arith.constant 1 : index
    %c0_152 = arith.constant 0 : index
    %c0_153 = arith.constant 0 : index
    %337 = vector.load %arg10[%c1_151, %c0_152, %c0_153] : memref<2x1x32xf32, #tpu.memory_space<vmem>>, vector<1x1x32xf32>
    %338 = vector.shape_cast %337 : vector<1x1x32xf32> to vector<1x32xf32>
    %339 = vector.broadcast %338 : vector<1x32xf32> to vector<16x32xf32>
    %340 = arith.addf %336, %339 : vector<16x32xf32>
    %c1_154 = arith.constant 1 : index
    %c0_155 = arith.constant 0 : index
    %c0_156 = arith.constant 0 : index
    %341 = vector.load %arg11[%c1_154, %c0_155, %c0_156] : memref<2x1x32xf32, #tpu.memory_space<vmem>>, vector<1x1x32xf32>
    %342 = vector.shape_cast %341 : vector<1x1x32xf32> to vector<1x32xf32>
    %c1_157 = arith.constant 1 : index
    %c0_158 = arith.constant 0 : index
    %c0_159 = arith.constant 0 : index
    %343 = vector.load %arg12[%c1_157, %c0_158, %c0_159] : memref<2x1x32xf32, #tpu.memory_space<vmem>>, vector<1x1x32xf32>
    %344 = vector.shape_cast %343 : vector<1x1x32xf32> to vector<1x32xf32>
    %cst_160 = arith.constant dense<0.000000e+00> : vector<16xf32>
    %345 = vector.multi_reduction <add>, %340, %cst_160 [1] : vector<16x32xf32> to vector<16xf32>
    %346 = vector.shape_cast %345 : vector<16xf32> to vector<16x1xf32>
    %cst_161 = arith.constant 3.200000e+01 : f32
    %347 = vector.broadcast %cst_161 : f32 to vector<16x1xf32>
    %348 = arith.divf %346, %347 : vector<16x1xf32>
    %349 = vector.broadcast %348 : vector<16x1xf32> to vector<16x32xf32>
    %350 = arith.subf %340, %349 : vector<16x32xf32>
    %351 = arith.mulf %350, %350 : vector<16x32xf32>
    %cst_162 = arith.constant dense<0.000000e+00> : vector<16xf32>
    %352 = vector.multi_reduction <add>, %351, %cst_162 [1] : vector<16x32xf32> to vector<16xf32>
    %353 = vector.shape_cast %352 : vector<16xf32> to vector<16x1xf32>
    %cst_163 = arith.constant 3.200000e+01 : f32
    %354 = vector.broadcast %cst_163 : f32 to vector<16x1xf32>
    %355 = arith.divf %353, %354 : vector<16x1xf32>
    %356 = vector.broadcast %348 : vector<16x1xf32> to vector<16x32xf32>
    %357 = arith.subf %340, %356 : vector<16x32xf32>
    %cst_164 = arith.constant 9.99999974E-6 : f32
    %358 = vector.broadcast %cst_164 : f32 to vector<16x1xf32>
    %359 = arith.addf %355, %358 : vector<16x1xf32>
    %360 = math.rsqrt %359 : vector<16x1xf32>
    %361 = vector.broadcast %360 : vector<16x1xf32> to vector<16x32xf32>
    %362 = arith.mulf %357, %361 : vector<16x32xf32>
    %363 = vector.broadcast %342 : vector<1x32xf32> to vector<16x32xf32>
    %364 = arith.mulf %362, %363 : vector<16x32xf32>
    %365 = vector.broadcast %344 : vector<1x32xf32> to vector<16x32xf32>
    %366 = arith.addf %364, %365 : vector<16x32xf32>
    %c1_165 = arith.constant 1 : index
    %c0_166 = arith.constant 0 : index
    %c0_167 = arith.constant 0 : index
    %367 = vector.load %arg13[%c1_165, %c0_166, %c0_167] : memref<2x32x128xf32, #tpu.memory_space<vmem>>, vector<1x32x128xf32>
    %368 = vector.shape_cast %367 : vector<1x32x128xf32> to vector<32x128xf32>
    %cst_168 = arith.constant dense<0.000000e+00> : vector<16x128xf32>
    %369 = tpu.matmul %366, %368, %cst_168 {dimension_numbers = #tpu.dot_dimension_numbers<[1], [0], [0], [1], [0, 0, 1, 1], [], []>} : vector<16x32xf32>, vector<32x128xf32>, vector<16x128xf32> -> vector<16x128xf32>
    %c1_169 = arith.constant 1 : index
    %c0_170 = arith.constant 0 : index
    %c0_171 = arith.constant 0 : index
    %370 = vector.load %arg14[%c1_169, %c0_170, %c0_171] : memref<2x1x128xf32, #tpu.memory_space<vmem>>, vector<1x1x128xf32>
    %371 = vector.shape_cast %370 : vector<1x1x128xf32> to vector<1x128xf32>
    %372 = vector.broadcast %371 : vector<1x128xf32> to vector<16x128xf32>
    %373 = arith.addf %369, %372 : vector<16x128xf32>
    %cst_172 = arith.constant 5.000000e-01 : f32
    %374 = vector.broadcast %cst_172 : f32 to vector<16x128xf32>
    %375 = arith.mulf %374, %373 : vector<16x128xf32>
    %cst_173 = arith.constant 4.471500e-02 : f32
    %376 = vector.broadcast %cst_173 : f32 to vector<16x128xf32>
    %377 = arith.mulf %376, %373 : vector<16x128xf32>
    %378 = arith.mulf %377, %373 : vector<16x128xf32>
    %379 = arith.mulf %378, %373 : vector<16x128xf32>
    %380 = arith.addf %373, %379 : vector<16x128xf32>
    %cst_174 = arith.constant 0.797884583 : f32
    %381 = vector.broadcast %cst_174 : f32 to vector<16x128xf32>
    %382 = arith.mulf %381, %380 : vector<16x128xf32>
    %383 = math.tanh %382 : vector<16x128xf32>
    %cst_175 = arith.constant 1.000000e+00 : f32
    %384 = vector.broadcast %cst_175 : f32 to vector<16x128xf32>
    %385 = arith.addf %384, %383 : vector<16x128xf32>
    %386 = arith.mulf %375, %385 : vector<16x128xf32>
    %c1_176 = arith.constant 1 : index
    %c0_177 = arith.constant 0 : index
    %c0_178 = arith.constant 0 : index
    %387 = vector.load %arg15[%c1_176, %c0_177, %c0_178] : memref<2x128x32xf32, #tpu.memory_space<vmem>>, vector<1x128x32xf32>
    %388 = vector.shape_cast %387 : vector<1x128x32xf32> to vector<128x32xf32>
    %cst_179 = arith.constant dense<0.000000e+00> : vector<16x32xf32>
    %389 = tpu.matmul %386, %388, %cst_179 {dimension_numbers = #tpu.dot_dimension_numbers<[1], [0], [0], [1], [0, 0, 1, 1], [], []>} : vector<16x128xf32>, vector<128x32xf32>, vector<16x32xf32> -> vector<16x32xf32>
    %390 = arith.addf %340, %389 : vector<16x32xf32>
    %c1_180 = arith.constant 1 : index
    %c0_181 = arith.constant 0 : index
    %c0_182 = arith.constant 0 : index
    %391 = vector.load %arg16[%c1_180, %c0_181, %c0_182] : memref<2x1x32xf32, #tpu.memory_space<vmem>>, vector<1x1x32xf32>
    %392 = vector.shape_cast %391 : vector<1x1x32xf32> to vector<1x32xf32>
    %393 = vector.broadcast %392 : vector<1x32xf32> to vector<16x32xf32>
    %394 = arith.addf %390, %393 : vector<16x32xf32>
    %c0_183 = arith.constant 0 : index
    %c0_184 = arith.constant 0 : index
    %395 = vector.load %arg17[%c0_183, %c0_184] : memref<1x32xf32, #tpu.memory_space<vmem>>, vector<1x32xf32>
    %c0_185 = arith.constant 0 : index
    %c0_186 = arith.constant 0 : index
    %396 = vector.load %arg18[%c0_185, %c0_186] : memref<1x32xf32, #tpu.memory_space<vmem>>, vector<1x32xf32>
    %cst_187 = arith.constant dense<0.000000e+00> : vector<16xf32>
    %397 = vector.multi_reduction <add>, %394, %cst_187 [1] : vector<16x32xf32> to vector<16xf32>
    %398 = vector.shape_cast %397 : vector<16xf32> to vector<16x1xf32>
    %cst_188 = arith.constant 3.200000e+01 : f32
    %399 = vector.broadcast %cst_188 : f32 to vector<16x1xf32>
    %400 = arith.divf %398, %399 : vector<16x1xf32>
    %401 = vector.broadcast %400 : vector<16x1xf32> to vector<16x32xf32>
    %402 = arith.subf %394, %401 : vector<16x32xf32>
    %403 = arith.mulf %402, %402 : vector<16x32xf32>
    %cst_189 = arith.constant dense<0.000000e+00> : vector<16xf32>
    %404 = vector.multi_reduction <add>, %403, %cst_189 [1] : vector<16x32xf32> to vector<16xf32>
    %405 = vector.shape_cast %404 : vector<16xf32> to vector<16x1xf32>
    %cst_190 = arith.constant 3.200000e+01 : f32
    %406 = vector.broadcast %cst_190 : f32 to vector<16x1xf32>
    %407 = arith.divf %405, %406 : vector<16x1xf32>
    %408 = vector.broadcast %400 : vector<16x1xf32> to vector<16x32xf32>
    %409 = arith.subf %394, %408 : vector<16x32xf32>
    %cst_191 = arith.constant 9.99999974E-6 : f32
    %410 = vector.broadcast %cst_191 : f32 to vector<16x1xf32>
    %411 = arith.addf %407, %410 : vector<16x1xf32>
    %412 = math.rsqrt %411 : vector<16x1xf32>
    %413 = vector.broadcast %412 : vector<16x1xf32> to vector<16x32xf32>
    %414 = arith.mulf %409, %413 : vector<16x32xf32>
    %415 = vector.broadcast %395 : vector<1x32xf32> to vector<16x32xf32>
    %416 = arith.mulf %414, %415 : vector<16x32xf32>
    %417 = vector.broadcast %396 : vector<1x32xf32> to vector<16x32xf32>
    %418 = arith.addf %416, %417 : vector<16x32xf32>
    %c0_192 = arith.constant 0 : index
    %c0_193 = arith.constant 0 : index
    %419 = vector.load %arg19[%c0_192, %c0_193] : memref<32x64xf32, #tpu.memory_space<vmem>>, vector<32x64xf32>
    %cst_194 = arith.constant dense<0.000000e+00> : vector<16x64xf32>
    %420 = tpu.matmul %418, %419, %cst_194 {dimension_numbers = #tpu.dot_dimension_numbers<[1], [0], [0], [1], [0, 0, 1, 1], [], []>} : vector<16x32xf32>, vector<32x64xf32>, vector<16x64xf32> -> vector<16x64xf32>
    %c0_195 = arith.constant 0 : index
    %c0_196 = arith.constant 0 : index
    %421 = vector.load %arg20[%c0_195, %c0_196] : memref<1x64xf32, #tpu.memory_space<vmem>>, vector<1x64xf32>
    %422 = vector.broadcast %421 : vector<1x64xf32> to vector<16x64xf32>
    %423 = arith.addf %420, %422 : vector<16x64xf32>
    %cst_197 = arith.constant 5.000000e-01 : f32
    %424 = vector.broadcast %cst_197 : f32 to vector<16x64xf32>
    %425 = arith.mulf %424, %423 : vector<16x64xf32>
    %cst_198 = arith.constant 4.471500e-02 : f32
    %426 = vector.broadcast %cst_198 : f32 to vector<16x64xf32>
    %427 = arith.mulf %426, %423 : vector<16x64xf32>
    %428 = arith.mulf %427, %423 : vector<16x64xf32>
    %429 = arith.mulf %428, %423 : vector<16x64xf32>
    %430 = arith.addf %423, %429 : vector<16x64xf32>
    %cst_199 = arith.constant 0.797884583 : f32
    %431 = vector.broadcast %cst_199 : f32 to vector<16x64xf32>
    %432 = arith.mulf %431, %430 : vector<16x64xf32>
    %433 = math.tanh %432 : vector<16x64xf32>
    %cst_200 = arith.constant 1.000000e+00 : f32
    %434 = vector.broadcast %cst_200 : f32 to vector<16x64xf32>
    %435 = arith.addf %434, %433 : vector<16x64xf32>
    %436 = arith.mulf %425, %435 : vector<16x64xf32>
    %c0_201 = arith.constant 0 : index
    %c0_202 = arith.constant 0 : index
    %437 = vector.load %arg21[%c0_201, %c0_202] : memref<64x64xf32, #tpu.memory_space<vmem>>, vector<64x64xf32>
    %cst_203 = arith.constant dense<0.000000e+00> : vector<16x64xf32>
    %438 = tpu.matmul %436, %437, %cst_203 {dimension_numbers = #tpu.dot_dimension_numbers<[1], [0], [0], [1], [0, 0, 1, 1], [], []>} : vector<16x64xf32>, vector<64x64xf32>, vector<16x64xf32> -> vector<16x64xf32>
    %c0_204 = arith.constant 0 : index
    %c0_205 = arith.constant 0 : index
    %439 = vector.load %arg22[%c0_204, %c0_205] : memref<1x64xf32, #tpu.memory_space<vmem>>, vector<1x64xf32>
    %440 = vector.broadcast %439 : vector<1x64xf32> to vector<16x64xf32>
    %441 = arith.addf %438, %440 : vector<16x64xf32>
    %cst_206 = arith.constant 5.000000e-01 : f32
    %442 = vector.broadcast %cst_206 : f32 to vector<16x64xf32>
    %443 = arith.mulf %442, %441 : vector<16x64xf32>
    %cst_207 = arith.constant 4.471500e-02 : f32
    %444 = vector.broadcast %cst_207 : f32 to vector<16x64xf32>
    %445 = arith.mulf %444, %441 : vector<16x64xf32>
    %446 = arith.mulf %445, %441 : vector<16x64xf32>
    %447 = arith.mulf %446, %441 : vector<16x64xf32>
    %448 = arith.addf %441, %447 : vector<16x64xf32>
    %cst_208 = arith.constant 0.797884583 : f32
    %449 = vector.broadcast %cst_208 : f32 to vector<16x64xf32>
    %450 = arith.mulf %449, %448 : vector<16x64xf32>
    %451 = math.tanh %450 : vector<16x64xf32>
    %cst_209 = arith.constant 1.000000e+00 : f32
    %452 = vector.broadcast %cst_209 : f32 to vector<16x64xf32>
    %453 = arith.addf %452, %451 : vector<16x64xf32>
    %454 = arith.mulf %443, %453 : vector<16x64xf32>
    %c0_210 = arith.constant 0 : index
    %c0_211 = arith.constant 0 : index
    %455 = vector.load %arg23[%c0_210, %c0_211] : memref<64x32xf32, #tpu.memory_space<vmem>>, vector<64x32xf32>
    %cst_212 = arith.constant dense<0.000000e+00> : vector<16x32xf32>
    %456 = tpu.matmul %454, %455, %cst_212 {dimension_numbers = #tpu.dot_dimension_numbers<[1], [0], [0], [1], [0, 0, 1, 1], [], []>} : vector<16x64xf32>, vector<64x32xf32>, vector<16x32xf32> -> vector<16x32xf32>
    %c0_213 = arith.constant 0 : index
    %c0_214 = arith.constant 0 : index
    %457 = vector.load %arg24[%c0_213, %c0_214] : memref<1x32xf32, #tpu.memory_space<vmem>>, vector<1x32xf32>
    %458 = vector.broadcast %457 : vector<1x32xf32> to vector<16x32xf32>
    %459 = arith.addf %456, %458 : vector<16x32xf32>
    %460 = arith.mulf %459, %459 : vector<16x32xf32>
    %cst_215 = arith.constant dense<0.000000e+00> : vector<16xf32>
    %461 = vector.multi_reduction <add>, %460, %cst_215 [1] : vector<16x32xf32> to vector<16xf32>
    %462 = vector.shape_cast %461 : vector<16xf32> to vector<16x1xf32>
    %cst_216 = arith.constant 9.99999996E-13 : f32
    %463 = vector.broadcast %cst_216 : f32 to vector<16x1xf32>
    %464 = arith.addf %462, %463 : vector<16x1xf32>
    %465 = math.rsqrt %464 : vector<16x1xf32>
    %466 = vector.broadcast %465 : vector<16x1xf32> to vector<16x32xf32>
    %467 = arith.mulf %459, %466 : vector<16x32xf32>
    %c0_217 = arith.constant 0 : index
    %c0_218 = arith.constant 0 : index
    %468 = vector.load %arg25[%c0_217, %c0_218] : memref<32x64xf32, #tpu.memory_space<vmem>>, vector<32x64xf32>
    %cst_219 = arith.constant dense<0.000000e+00> : vector<16x64xf32>
    %469 = tpu.matmul %467, %468, %cst_219 {dimension_numbers = #tpu.dot_dimension_numbers<[1], [0], [0], [1], [0, 0, 1, 1], [], []>} : vector<16x32xf32>, vector<32x64xf32>, vector<16x64xf32> -> vector<16x64xf32>
    %c0_220 = arith.constant 0 : index
    %c0_221 = arith.constant 0 : index
    %470 = vector.load %arg26[%c0_220, %c0_221] : memref<16x64xf32, #tpu.memory_space<vmem>>, vector<16x64xf32>
    tpu.vector_store %arg26[%c0_220, %c0_221], %469 {strides = array<i32>} : memref<16x64xf32, #tpu.memory_space<vmem>>, vector<16x64xf32>,
    return
  }
}

</mosaic_0001>

<llo_original>
// kernel: network_forward.1
$region0: #{network_forward.1}
  #allocation0 [shape = 'u32[]', space=smem, size = 0x4, offset = 0x4, fixed_abs, tag = 'smem constant byte address 0x4 - core index']
  #allocation1 [shape = 'u32[144,128]{1,0:T(1,128)}', space=vmem, size = 0x12000, scoped, tag = 'internal scratch']
  %s0 = inlined_call_operand.vmem [shape: s32[32,1], index: 0, kind: input, shape index: {}]
  %s1 = inlined_call_operand.vmem [shape: s32[32,1], index: 1, kind: input, shape index: {}]
  %s2 = inlined_call_operand.vmem [shape: f32[16,8], index: 2, kind: input, shape index: {}]
  %s3 = inlined_call_operand.hbm [shape: f32[8,32], index: 3, kind: input, shape index: {}]
  %s4 = inlined_call_operand.vmem [shape: f32[1,32], index: 4, kind: input, shape index: {}, may-alias: {4,18,24}]
  %s5 = inlined_call_operand.vmem [shape: f32[2,1,32], index: 5, kind: input, shape index: {}, may-alias: {5,11}]
  %s6 = inlined_call_operand.vmem [shape: f32[2,1,32], index: 6, kind: input, shape index: {}, may-alias: {6,10,12,16}]
  %s7 = inlined_call_operand.hbm [shape: f32[2,32,96], index: 7, kind: input, shape index: {}]
  %s8 = inlined_call_operand.vmem [shape: f32[2,1,96], index: 8, kind: input, shape index: {}]
  %s9 = inlined_call_operand.hbm [shape: f32[2,32,32], index: 9, kind: input, shape index: {}]
  %s10 = inlined_call_operand.vmem [shape: f32[2,1,32], index: 10, kind: input, shape index: {}, may-alias: {6,10,12,16}]
  %s11 = inlined_call_operand.vmem [shape: f32[2,1,32], index: 11, kind: input, shape index: {}, may-alias: {5,11}]
  %s12 = inlined_call_operand.vmem [shape: f32[2,1,32], index: 12, kind: input, shape index: {}, may-alias: {6,10,12,16}]
  %s13 = inlined_call_operand.hbm [shape: f32[2,32,128], index: 13, kind: input, shape index: {}]
  %s14 = inlined_call_operand.vmem [shape: f32[2,1,128], index: 14, kind: input, shape index: {}]
  %s15 = inlined_call_operand.hbm [shape: f32[2,128,32], index: 15, kind: input, shape index: {}]
  %s16 = inlined_call_operand.vmem [shape: f32[2,1,32], index: 16, kind: input, shape index: {}, may-alias: {6,10,12,16}]
  %s17 = inlined_call_operand.vmem [shape: f32[1,32], index: 17, kind: input, shape index: {}]
  %s18 = inlined_call_operand.vmem [shape: f32[1,32], index: 18, kind: input, shape index: {}, may-alias: {4,18,24}]
  %s19 = inlined_call_operand.hbm [shape: f32[32,64], index: 19, kind: input, shape index: {}]
  %s20 = inlined_call_operand.vmem [shape: f32[1,64], index: 20, kind: input, shape index: {}, may-alias: {20,22}]
  %s21 = inlined_call_operand.vmem [shape: f32[64,64], index: 21, kind: input, shape index: {}]
  %s22 = inlined_call_operand.vmem [shape: f32[1,64], index: 22, kind: input, shape index: {}, may-alias: {20,22}]
  %s23 = inlined_call_operand.vmem [shape: f32[64,32], index: 23, kind: input, shape index: {}]
  %s24 = inlined_call_operand.vmem [shape: f32[1,32], index: 24, kind: input, shape index: {}, may-alias: {4,18,24}]
  %s25 = inlined_call_operand.vmem [shape: f32[32,64], index: 25, kind: input, shape index: {}]
  %s26 = inlined_call_operand.hbm [shape: f32[16,64], index: 26, kind: output, shape index: {}]
  %s27 = sld [smem:[#allocation0]]
  $region138: #{network_forward.1} parent=0
    _
  %s29 = ssub.s32 1, %s27
  %s30 = scalar_select 0, %s29, %s27
  $region1: #{network_forward.1} parent=0
    #allocation2 [shape = 'u8[4096]{0}', space=vmem, size = 0x1000, scoped, tag = 'input window, operand 3, single buffered']
    #allocation3 [shape = 's32[1]{0}', space=sflag, size = 0x4, scoped, tag = 'scoped memory for network_forward.1']
    #allocation4 [shape = 's32[1]{0}', space=sflag, size = 0x4, scoped, tag = 'scoped memory for network_forward.1']
    #allocation5 [shape = 'u8[32768]{0}', space=vmem, size = 0x8000, scoped, tag = 'input window, operand 7, single buffered']
    #allocation6 [shape = 's32[1]{0}', space=sflag, size = 0x4, scoped, tag = 'scoped memory for network_forward.1']
    #allocation7 [shape = 'u8[32768]{0}', space=vmem, size = 0x8000, scoped, tag = 'input window, operand 9, single buffered']
    #allocation8 [shape = 'u8[32768]{0}', space=vmem, size = 0x8000, scoped, tag = 'input window, operand 13, single buffered']
    #allocation9 [shape = 's32[1]{0}', space=sflag, size = 0x4, scoped, tag = 'scoped memory for network_forward.1']
    #allocation10 [shape = 'u8[131072]{0}', space=vmem, size = 0x20000, scoped, tag = 'input window, operand 15, single buffered']
    #allocation11 [shape = 'u8[16384]{0}', space=vmem, size = 0x4000, scoped, tag = 'input window, operand 19, single buffered']
    #allocation12 [shape = 's32[1]{0}', space=sflag, size = 0x4, scoped, tag = 'scoped memory for network_forward.1']
    #allocation13 [shape = 'u8[8192]{0}', space=vmem, size = 0x2000, scoped, tag = 'output window, operand 0, single buffered']
    %31 = vsyncpa [#allocation3], 0
    %32 = vsyncpa [#allocation6], 0
    %33 = vsyncpa [#allocation9], 0
    %34 = vsyncpa [#allocation12], 0
    %35 = vsyncpa [#allocation4], 0
    // Predicated region
    $region2: #{network_forward.1} parent=1 // pred_check
      _
    $region3: #{network_forward.1} parent=1 // pred_check_branch
      %37 = sbr.rel (0) target = $region5
    $region4: #{network_forward.1} parent=1 // pred_region
      _
    $region5: #{network_forward.1} parent=1 // pred_fallthru
      _
    // Predicated region
    $region6: #{network_forward.1} parent=1 // pred_check
      _
    $region7: #{network_forward.1} parent=1 // pred_check_branch
      %39 = sbr.rel (0) target = $region9
    $region8: #{network_forward.1} parent=1 // pred_region
      _
    $region9: #{network_forward.1} parent=1 // pred_fallthru
      _
    // Predicated region
    $region10: #{network_forward.1} parent=1 // pred_check
      _
    $region11: #{network_forward.1} parent=1 // pred_check_branch
      %41 = sbr.rel (0) target = $region13
    $region12: #{network_forward.1} parent=1 // pred_region
      _
    $region13: #{network_forward.1} parent=1 // pred_fallthru
      _
    // Predicated region
    $region14: #{network_forward.1} parent=1 // pred_check
      _
    $region15: #{network_forward.1} parent=1 // pred_check_branch
      %43 = sbr.rel (0) target = $region17
    $region16: #{network_forward.1} parent=1 // pred_region
      %s45 = ssub.s32 128, 128
      %46 = vsyncadd [#allocation3], %s45
      %s48 = sshll.u32 [#allocation2], 4
      %s49 = int_to_ptr.vmem [resolvable:$true] %s48
      %51 = dma.hbm_to_vmem [thread:$0]  %s3, 128, %s49, [#allocation3]
    $region17: #{network_forward.1} parent=1 // pred_fallthru
      _
    // Predicated region
    $region18: #{network_forward.1} parent=1 // pred_check
      _
    $region19: #{network_forward.1} parent=1 // pred_check_branch
      %53 = sbr.rel (0) target = $region21
    $region20: #{network_forward.1} parent=1 // pred_region
      _
    $region21: #{network_forward.1} parent=1 // pred_fallthru
      _
    // Predicated region
    $region22: #{network_forward.1} parent=1 // pred_check
      _
    $region23: #{network_forward.1} parent=1 // pred_check_branch
      %55 = sbr.rel (0) target = $region25
    $region24: #{network_forward.1} parent=1 // pred_region
      _
    $region25: #{network_forward.1} parent=1 // pred_fallthru
      _
    // Predicated region
    $region26: #{network_forward.1} parent=1 // pred_check
      _
    $region27: #{network_forward.1} parent=1 // pred_check_branch
      %57 = sbr.rel (0) target = $region29
    $region28: #{network_forward.1} parent=1 // pred_region
      _
    $region29: #{network_forward.1} parent=1 // pred_fallthru
      _
    // Predicated region
    $region30: #{network_forward.1} parent=1 // pred_check
      _
    $region31: #{network_forward.1} parent=1 // pred_check_branch
      %59 = sbr.rel (0) target = $region33
    $region32: #{network_forward.1} parent=1 // pred_region
      %s61 = ssub.s32 1024, 1024
      %62 = vsyncadd [#allocation6], %s61
      %s63 = sshll.u32 [#allocation5], 4
      %s64 = int_to_ptr.vmem [resolvable:$true] %s63
      %69 = dma.hbm_to_vmem [thread:$0]  %s7, 1024, %s64, [#allocation6], 128, 128, 8
    $region33: #{network_forward.1} parent=1 // pred_fallthru
      _
    // Predicated region
    $region34: #{network_forward.1} parent=1 // pred_check
      _
    $region35: #{network_forward.1} parent=1 // pred_check_branch
      %71 = sbr.rel (0) target = $region37
    $region36: #{network_forward.1} parent=1 // pred_region
      _
    $region37: #{network_forward.1} parent=1 // pred_fallthru
      _
    // Predicated region
    $region38: #{network_forward.1} parent=1 // pred_check
      _
    $region39: #{network_forward.1} parent=1 // pred_check_branch
      %73 = sbr.rel (0) target = $region41
    $region40: #{network_forward.1} parent=1 // pred_region
      %s75 = ssub.s32 1024, 1024
      %76 = vsyncadd [#allocation6], %s75
      %s77 = sshll.u32 [#allocation7], 4
      %s78 = int_to_ptr.vmem [resolvable:$true] %s77
      %83 = dma.hbm_to_vmem [thread:$0]  %s9, 1024, %s78, [#allocation6], 128, 128, 8
    $region41: #{network_forward.1} parent=1 // pred_fallthru
      _
    // Predicated region
    $region42: #{network_forward.1} parent=1 // pred_check
      _
    $region43: #{network_forward.1} parent=1 // pred_check_branch
      %85 = sbr.rel (0) target = $region45
    $region44: #{network_forward.1} parent=1 // pred_region
      _
    $region45: #{network_forward.1} parent=1 // pred_fallthru
      _
    // Predicated region
    $region46: #{network_forward.1} parent=1 // pred_check
      _
    $region47: #{network_forward.1} parent=1 // pred_check_branch
      %87 = sbr.rel (0) target = $region49
    $region48: #{network_forward.1} parent=1 // pred_region
      _
    $region49: #{network_forward.1} parent=1 // pred_fallthru
      _
    // Predicated region
    $region50: #{network_forward.1} parent=1 // pred_check
      _
    $region51: #{network_forward.1} parent=1 // pred_check_branch
      %89 = sbr.rel (0) target = $region53
    $region52: #{network_forward.1} parent=1 // pred_region
      _
    $region53: #{network_forward.1} parent=1 // pred_fallthru
      _
    // Predicated region
    $region54: #{network_forward.1} parent=1 // pred_check
      _
    $region55: #{network_forward.1} parent=1 // pred_check_branch
      %91 = sbr.rel (0) target = $region57
    $region56: #{network_forward.1} parent=1 // pred_region
      %s93 = ssub.s32 1024, 1024
      %94 = vsyncadd [#allocation9], %s93
      %s95 = sshll.u32 [#allocation8], 4
      %s96 = int_to_ptr.vmem [resolvable:$true] %s95
      %101 = dma.hbm_to_vmem [thread:$0]  %s13, 1024, %s96, [#allocation9], 128, 128, 8
    $region57: #{network_forward.1} parent=1 // pred_fallthru
      _
    // Predicated region
    $region58: #{network_forward.1} parent=1 // pred_check
      _
    $region59: #{network_forward.1} parent=1 // pred_check_branch
      %103 = sbr.rel (0) target = $region61
    $region60: #{network_forward.1} parent=1 // pred_region
      _
    $region61: #{network_forward.1} parent=1 // pred_fallthru
      _
    // Predicated region
    $region62: #{network_forward.1} parent=1 // pred_check
      _
    $region63: #{network_forward.1} parent=1 // pred_check_branch
      %105 = sbr.rel (0) target = $region65
    $region64: #{network_forward.1} parent=1 // pred_region
      %s107 = ssub.s32 4096, 4096
      %108 = vsyncadd [#allocation9], %s107
      %s109 = sshll.u32 [#allocation10], 4
      %s110 = int_to_ptr.vmem [resolvable:$true] %s109
      %115 = dma.hbm_to_vmem [thread:$0]  %s15, 4096, %s110, [#allocation9], 128, 128, 8
    $region65: #{network_forward.1} parent=1 // pred_fallthru
      _
    // Predicated region
    $region66: #{network_forward.1} parent=1 // pred_check
      _
    $region67: #{network_forward.1} parent=1 // pred_check_branch
      %117 = sbr.rel (0) target = $region69
    $region68: #{network_forward.1} parent=1 // pred_region
      _
    $region69: #{network_forward.1} parent=1 // pred_fallthru
      _
    // Predicated region
    $region70: #{network_forward.1} parent=1 // pred_check
      _
    $region71: #{network_forward.1} parent=1 // pred_check_branch
      %119 = sbr.rel (0) target = $region73
    $region72: #{network_forward.1} parent=1 // pred_region
      _
    $region73: #{network_forward.1} parent=1 // pred_fallthru
      _
    // Predicated region
    $region74: #{network_forward.1} parent=1 // pred_check
      _
    $region75: #{network_forward.1} parent=1 // pred_check_branch
      %121 = sbr.rel (0) target = $region77
    $region76: #{network_forward.1} parent=1 // pred_region
      _
    $region77: #{network_forward.1} parent=1 // pred_fallthru
      _
    // Predicated region
    $region78: #{network_forward.1} parent=1 // pred_check
      _
    $region79: #{network_forward.1} parent=1 // pred_check_branch
      %123 = sbr.rel (0) target = $region81
    $region80: #{network_forward.1} parent=1 // pred_region
      %s125 = ssub.s32 512, 512
      %126 = vsyncadd [#allocation12], %s125
      %s127 = sshll.u32 [#allocation11], 4
      %s128 = int_to_ptr.vmem [resolvable:$true] %s127
      %133 = dma.hbm_to_vmem [thread:$0]  %s19, 512, %s128, [#allocation12], 128, 128, 8
    $region81: #{network_forward.1} parent=1 // pred_fallthru
      _
    // Predicated region
    $region82: #{network_forward.1} parent=1 // pred_check
      _
    $region83: #{network_forward.1} parent=1 // pred_check_branch
      %135 = sbr.rel (0) target = $region85
    $region84: #{network_forward.1} parent=1 // pred_region
      _
    $region85: #{network_forward.1} parent=1 // pred_fallthru
      _
    // Predicated region
    $region86: #{network_forward.1} parent=1 // pred_check
      _
    $region87: #{network_forward.1} parent=1 // pred_check_branch
      %137 = sbr.rel (0) target = $region89
    $region88: #{network_forward.1} parent=1 // pred_region
      _
    $region89: #{network_forward.1} parent=1 // pred_fallthru
      _
    // Predicated region
    $region90: #{network_forward.1} parent=1 // pred_check
      _
    $region91: #{network_forward.1} parent=1 // pred_check_branch
      %139 = sbr.rel (0) target = $region93
    $region92: #{network_forward.1} parent=1 // pred_region
      _
    $region93: #{network_forward.1} parent=1 // pred_fallthru
      _
    // Predicated region
    $region94: #{network_forward.1} parent=1 // pred_check
      _
    $region95: #{network_forward.1} parent=1 // pred_check_branch
      %141 = sbr.rel (0) target = $region97
    $region96: #{network_forward.1} parent=1 // pred_region
      _
    $region97: #{network_forward.1} parent=1 // pred_fallthru
      _
    // Predicated region
    $region98: #{network_forward.1} parent=1 // pred_check
      _
    $region99: #{network_forward.1} parent=1 // pred_check_branch
      %143 = sbr.rel (0) target = $region101
    $region100: #{network_forward.1} parent=1 // pred_region
      _
    $region101: #{network_forward.1} parent=1 // pred_fallthru
      _
    // Predicated region
    $region102: #{network_forward.1} parent=1 // pred_check
      _
    $region103: #{network_forward.1} parent=1 // pred_check_branch
      %145 = sbr.rel (0) target = $region105
    $region104: #{network_forward.1} parent=1 // pred_region
      _
    $region105: #{network_forward.1} parent=1 // pred_fallthru
      _
    // Predicated region
    $region106: #{network_forward.1} parent=1 // pred_check
      _
    $region107: #{network_forward.1} parent=1 // pred_check_branch
      %147 = sbr.rel (0) target = $region109
    $region108: #{network_forward.1} parent=1 // pred_region
      %148 = dma.done [#allocation3], 128
    $region109: #{network_forward.1} parent=1 // pred_fallthru
      _
    // Predicated region
    $region110: #{network_forward.1} parent=1 // pred_check
      _
    $region111: #{network_forward.1} parent=1 // pred_check_branch
      %150 = sbr.rel (0) target = $region113
    $region112: #{network_forward.1} parent=1 // pred_region
      %151 = dma.done [#allocation6], 1024
    $region113: #{network_forward.1} parent=1 // pred_fallthru
      _
    // Predicated region
    $region114: #{network_forward.1} parent=1 // pred_check
      _
    $region115: #{network_forward.1} parent=1 // pred_check_branch
      %153 = sbr.rel (0) target = $region117
    $region116: #{network_forward.1} parent=1 // pred_region
      %154 = dma.done [#allocation6], 1024
    $region117: #{network_forward.1} parent=1 // pred_fallthru
      _
    // Predicated region
    $region118: #{network_forward.1} parent=1 // pred_check
      _
    $region119: #{network_forward.1} parent=1 // pred_check_branch
      %156 = sbr.rel (0) target = $region121
    $region120: #{network_forward.1} parent=1 // pred_region
      %157 = dma.done [#allocation9], 1024
    $region121: #{network_forward.1} parent=1 // pred_fallthru
      _
    // Predicated region
    $region122: #{network_forward.1} parent=1 // pred_check
      _
    $region123: #{network_forward.1} parent=1 // pred_check_branch
      %159 = sbr.rel (0) target = $region125
    $region124: #{network_forward.1} parent=1 // pred_region
      %160 = dma.done [#allocation9], 4096
    $region125: #{network_forward.1} parent=1 // pred_fallthru
      _
    // Predicated region
    $region126: #{network_forward.1} parent=1 // pred_check
      _
    $region127: #{network_forward.1} parent=1 // pred_check_branch
      %162 = sbr.rel (0) target = $region129
    $region128: #{network_forward.1} parent=1 // pred_region
      %163 = dma.done [#allocation12], 512
    $region129: #{network_forward.1} parent=1 // pred_fallthru
      _
    %v164 = vlaneseq
    %v165 = vand.u32 %v164, 127
    %v166 = vld [vmem:[%s0] sm:$0xff]
    %v167 = vld [vmem:[%s0 + $0x8] sm:$0xff]
    %v168 = vld [vmem:[%s0 + $0x10] sm:$0xff]
    %v169 = vld [vmem:[%s0 + $0x18] sm:$0xff]
    %170 = vset.pattern.permute.xlu0 0
    %171 = vperm.xlu0 %170, %v166
    %v172 = vpop.permute.xlu0 %171
    %173 = vset.pattern.permute.xlu0 0
    %174 = vperm.xlu0 %173, %v167
    %v175 = vpop.permute.xlu0 %174
    %176 = vset.pattern.permute.xlu0 0
    %177 = vperm.xlu0 %176, %v168
    %v178 = vpop.permute.xlu0 %177
    %179 = vset.pattern.permute.xlu0 0
    %180 = vperm.xlu0 %179, %v169
    %v181 = vpop.permute.xlu0 %180
    %vm182 = vcmp.eq.s32.totalorder %v165, %v172
    %vm183 = vcmp.eq.s32.totalorder %v165, %v175
    %vm184 = vcmp.eq.s32.totalorder %v165, %v178
    %vm185 = vcmp.eq.s32.totalorder %v165, %v181
    %v186 = vsel %vm182, 1, 0
    %v187 = vsel %vm183, 1, 0
    %v188 = vsel %vm184, 1, 0
    %v189 = vsel %vm185, 1, 0
    %v190 = vcvt.s32.f32 %v186
    %v191 = vcvt.s32.f32 %v187
    %v192 = vcvt.s32.f32 %v188
    %v193 = vcvt.s32.f32 %v189
    %v194 = vld [vmem:[%s1] sm:$0xff]
    %v195 = vld [vmem:[%s1 + $0x8] sm:$0xff]
    %v196 = vld [vmem:[%s1 + $0x10] sm:$0xff]
    %v197 = vld [vmem:[%s1 + $0x18] sm:$0xff]
    %198 = vset.pattern.permute.xlu0 0
    %199 = vperm.xlu0 %198, %v194
    %v200 = vpop.permute.xlu0 %199
    %201 = vset.pattern.permute.xlu0 0
    %202 = vperm.xlu0 %201, %v195
    %v203 = vpop.permute.xlu0 %202
    %204 = vset.pattern.permute.xlu0 0
    %205 = vperm.xlu0 %204, %v196
    %v206 = vpop.permute.xlu0 %205
    %207 = vset.pattern.permute.xlu0 0
    %208 = vperm.xlu0 %207, %v197
    %v209 = vpop.permute.xlu0 %208
    %vm210 = vcmp.eq.s32.totalorder %v165, %v200
    %vm211 = vcmp.eq.s32.totalorder %v165, %v203
    %vm212 = vcmp.eq.s32.totalorder %v165, %v206
    %vm213 = vcmp.eq.s32.totalorder %v165, %v209
    %v214 = vsel %vm210, 1, 0
    %v215 = vsel %vm211, 1, 0
    %v216 = vsel %vm212, 1, 0
    %v217 = vsel %vm213, 1, 0
    %v218 = vcvt.s32.f32 %v214
    %v219 = vcvt.s32.f32 %v215
    %v220 = vcvt.s32.f32 %v216
    %v221 = vcvt.s32.f32 %v217
    %222 = vxpose.xlu0.b32.start [1/16] %v190, 128
    %223 = vxpose.xlu0.b32.cont [2/16] %v191, 128
    %224 = vxpose.xlu0.b32.cont [3/16] %v192, 128
    %225 = vxpose.xlu0.b32.cont [4/16] %v193, 128
    %226 = vxpose.xlu0.b32.cont [5/16] 0.0, 128
    %227 = vxpose.xlu0.b32.cont [6/16] 0.0, 128
    %228 = vxpose.xlu0.b32.cont [7/16] 0.0, 128
    %229 = vxpose.xlu0.b32.cont [8/16] 0.0, 128
    %230 = vxpose.xlu0.b32.cont [9/16] 0.0, 128
    %231 = vxpose.xlu0.b32.cont [10/16] 0.0, 128
    %232 = vxpose.xlu0.b32.cont [11/16] 0.0, 128
    %233 = vxpose.xlu0.b32.cont [12/16] 0.0, 128
    %234 = vxpose.xlu0.b32.cont [13/16] 0.0, 128
    %235 = vxpose.xlu0.b32.cont [14/16] 0.0, 128
    %236 = vxpose.xlu0.b32.cont [15/16] 0.0, 128
    %237 = vxpose.xlu0.b32.end [16/16] 0.0, 128
    %v238 = vpop.trf.xlu0
    %v239 = vpop.trf.xlu0
    %v240 = vpop.trf.xlu0
    %v241 = vpop.trf.xlu0
    %v242 = vpop.trf.xlu0
    %v243 = vpop.trf.xlu0
    %v244 = vpop.trf.xlu0
    %v245 = vpop.trf.xlu0
    %v246 = vpop.trf.xlu0
    %v247 = vpop.trf.xlu0
    %v248 = vpop.trf.xlu0
    %v249 = vpop.trf.xlu0
    %v250 = vpop.trf.xlu0
    %v251 = vpop.trf.xlu0
    %v252 = vpop.trf.xlu0
    %v253 = vpop.trf.xlu0
    %vm254 = vcmask 261120
    %v256 = vsel %vm254, %v238, 0
    %v259 = vsel %vm254, %v239, 0
    %261 = vmatprep.subr.mxu0 0.0
    %262 = vmatpush1.msra.mxu0 %v218
    %263 = vmatprep.subr.mxu0 0.0
    %264 = vmatpush1.msra.mxu0 %v219
    %265 = vmatprep.subr.mxu0 0.0
    %266 = vmatpush1.msra.mxu0 %v220
    %267 = vmatprep.subr.mxu0 0.0
    %268 = vmatpush1.msra.mxu0 %v221
    %269 = vmatprep.subr.mxu0 0.0
    %270 = vmatpush1.msra.mxu0 0.0
    %271 = vmatprep.subr.mxu0 0.0
    %272 = vmatpush1.msra.mxu0 0.0
    %273 = vmatprep.subr.mxu0 0.0
    %274 = vmatpush1.msra.mxu0 0.0
    %275 = vmatprep.subr.mxu0 0.0
    %276 = vmatpush1.msra.mxu0 0.0
    %277 = vmatprep.subr.mxu0 0.0
    %278 = vmatpush1.msra.mxu0 0.0
    %279 = vmatprep.subr.mxu0 0.0
    %280 = vmatpush1.msra.mxu0 0.0
    %281 = vmatprep.subr.mxu0 0.0
    %282 = vmatpush1.msra.mxu0 0.0
    %283 = vmatprep.subr.mxu0 0.0
    %284 = vmatpush1.msra.mxu0 0.0
    %285 = vmatprep.subr.mxu0 0.0
    %286 = vmatpush1.msra.mxu0 0.0
    %287 = vmatprep.subr.mxu0 0.0
    %288 = vmatpush1.msra.mxu0 0.0
    %289 = vmatprep.subr.mxu0 0.0
    %290 = vmatpush1.msra.mxu0 0.0
    %291 = vmatprep.subr.mxu0 0.0
    %292 = vmatpush1.msra.mxu0 0.0
    %293 = vmatprep.subr.mxu0 0.0
    %294 = vmatpush1.msra.mxu0 0.0
    %295 = vmatprep.subr.mxu0 0.0
    %296 = vmatpush1.msra.mxu0 0.0
    %297 = vmatprep.subr.mxu0 0.0
    %298 = vmatpush1.msra.mxu0 0.0
    %299 = vmatprep.subr.mxu0 0.0
    %300 = vmatpush1.msra.mxu0 0.0
    %301 = vmatprep.subr.mxu0 0.0
    %302 = vmatpush1.msra.mxu0 0.0
    %303 = vmatprep.subr.mxu0 0.0
    %304 = vmatpush1.msra.mxu0 0.0
    %305 = vmatprep.subr.mxu0 0.0
    %306 = vmatpush1.msra.mxu0 0.0
    %307 = vmatprep.subr.mxu0 0.0
    %308 = vmatpush1.msra.mxu0 0.0
    %309 = vmatprep.subr.mxu0 0.0
    %310 = vmatpush1.msra.mxu0 0.0
    %311 = vmatprep.subr.mxu0 0.0
    %312 = vmatpush1.msra.mxu0 0.0
    %313 = vmatprep.subr.mxu0 0.0
    %314 = vmatpush1.msra.mxu0 0.0
    %315 = vmatprep.subr.mxu0 0.0
    %316 = vmatpush1.msra.mxu0 0.0
    %317 = vmatprep.subr.mxu0 0.0
    %318 = vmatpush1.msra.mxu0 0.0
    %319 = vmatprep.subr.mxu0 0.0
    %320 = vmatpush1.msra.mxu0 0.0
    %321 = vmatprep.subr.mxu0 0.0
    %322 = vmatpush1.msra.mxu0 0.0
    %323 = vmatprep.subr.mxu0 0.0
    %324 = vmatpush1.msra.mxu0 0.0
    %325 = vmatprep.mubr.f32.mxu0 0.0
    %326 = vmatmul.mubr.f32.gmra.mrb[0].mxu0 %v256
    %v327 = vpop.f32.mrb[0].mxu0
    %v328 = vadd.f32 0.0, %v327
    %v329 = vpop.f32.mrb[0].mxu0
    %330 = vmatprep.mubr.f32.mxu0 0.0
    %331 = vmatmul.mubr.f32.gmra.mrb[0].mxu0 %v259
    %v332 = vpop.f32.mrb[0].mxu0
    %v333 = vadd.f32 0.0, %v332
    %v334 = vpop.f32.mrb[0].mxu0
    %335 = vdwg.mxu0
    %v336 = vlaneseq
    %v337 = vshrl.u32 %v336, 7
    %v338 = vadd.s32 %v337, 8
    %vm339 = vcmp.eq.s32.totalorder %v337, %v165
    %vm340 = vcmp.eq.s32.totalorder %v338, %v165
    %vm341 = vcmp.gt.f32.partialorder %v328, 0.0
    %vm342 = vcmp.gt.f32.partialorder %v333, 0.0
    %vm343 = vmor %vm341, %vm339
    %vm344 = vmor %vm342, %vm340
    %v345 = vsel %vm343, 0.0, -1e+09
    %v346 = vsel %vm344, 0.0, -1e+09
    %v347 = vld [vmem:[%s2] sm:$0xff]
    %v348 = vld [vmem:[%s2 + $0x8] sm:$0xff]
    %v349 = vld [vmem:[#allocation2] sm:$0xff]
    %v350 = vld [vmem:[%s4] sm:$0x1]
    %v352 = vlaneseq
    %v353 = vshrl.u32 %v352, 7
    %v354 = vsub.s32 0, %v353
    %v355 = vrot.slane %v350, %v354
    %vm357 = vcmask 64512
    %v359 = vsel %vm357, %v347, 0
    %v362 = vsel %vm357, %v348, 0
    %364 = vmatprep.subr.mxu0 0.0
    %365 = vmatpush1.msra.mxu0 %v349
    %366 = vmatprep.subr.mxu0 0.0
    %367 = vmatpush1.msra.mxu0 0.0
    %368 = vmatprep.subr.mxu0 0.0
    %369 = vmatpush1.msra.mxu0 0.0
    %370 = vmatprep.subr.mxu0 0.0
    %371 = vmatpush1.msra.mxu0 0.0
    %372 = vmatprep.subr.mxu0 0.0
    %373 = vmatpush1.msra.mxu0 0.0
    %374 = vmatprep.subr.mxu0 0.0
    %375 = vmatpush1.msra.mxu0 0.0
    %376 = vmatprep.subr.mxu0 0.0
    %377 = vmatpush1.msra.mxu0 0.0
    %378 = vmatprep.subr.mxu0 0.0
    %379 = vmatpush1.msra.mxu0 0.0
    %380 = vmatprep.subr.mxu0 0.0
    %381 = vmatpush1.msra.mxu0 0.0
    %382 = vmatprep.subr.mxu0 0.0
    %383 = vmatpush1.msra.mxu0 0.0
    %384 = vmatprep.subr.mxu0 0.0
    %385 = vmatpush1.msra.mxu0 0.0
    %386 = vmatprep.subr.mxu0 0.0
    %387 = vmatpush1.msra.mxu0 0.0
    %388 = vmatprep.subr.mxu0 0.0
    %389 = vmatpush1.msra.mxu0 0.0
    %390 = vmatprep.subr.mxu0 0.0
    %391 = vmatpush1.msra.mxu0 0.0
    %392 = vmatprep.subr.mxu0 0.0
    %393 = vmatpush1.msra.mxu0 0.0
    %394 = vmatprep.subr.mxu0 0.0
    %395 = vmatpush1.msra.mxu0 0.0
    %396 = vmatprep.subr.mxu0 0.0
    %397 = vmatpush1.msra.mxu0 0.0
    %398 = vmatprep.subr.mxu0 0.0
    %399 = vmatpush1.msra.mxu0 0.0
    %400 = vmatprep.subr.mxu0 0.0
    %401 = vmatpush1.msra.mxu0 0.0
    %402 = vmatprep.subr.mxu0 0.0
    %403 = vmatpush1.msra.mxu0 0.0
    %404 = vmatprep.subr.mxu0 0.0
    %405 = vmatpush1.msra.mxu0 0.0
    %406 = vmatprep.subr.mxu0 0.0
    %407 = vmatpush1.msra.mxu0 0.0
    %408 = vmatprep.subr.mxu0 0.0
    %409 = vmatpush1.msra.mxu0 0.0
    %410 = vmatprep.subr.mxu0 0.0
    %411 = vmatpush1.msra.mxu0 0.0
    %412 = vmatprep.subr.mxu0 0.0
    %413 = vmatpush1.msra.mxu0 0.0
    %414 = vmatprep.subr.mxu0 0.0
    %415 = vmatpush1.msra.mxu0 0.0
    %416 = vmatprep.subr.mxu0 0.0
    %417 = vmatpush1.msra.mxu0 0.0
    %418 = vmatprep.subr.mxu0 0.0
    %419 = vmatpush1.msra.mxu0 0.0
    %420 = vmatprep.subr.mxu0 0.0
    %421 = vmatpush1.msra.mxu0 0.0
    %422 = vmatprep.subr.mxu0 0.0
    %423 = vmatpush1.msra.mxu0 0.0
    %424 = vmatprep.subr.mxu0 0.0
    %425 = vmatpush1.msra.mxu0 0.0
    %426 = vmatprep.subr.mxu0 0.0
    %427 = vmatpush1.msra.mxu0 0.0
    %428 = vmatprep.mubr.f32.mxu0 0.0
    %429 = vmatmul.mubr.f32.gmra.mrb[0].mxu0 %v359
    %v430 = vpop.f32.mrb[0].mxu0
    %v431 = vadd.f32 %v355, %v430
    %v432 = vpop.f32.mrb[0].mxu0
    %433 = vmatprep.mubr.f32.mxu0 0.0
    %434 = vmatmul.mubr.f32.gmra.mrb[0].mxu0 %v362
    %v435 = vpop.f32.mrb[0].mxu0
    %v436 = vadd.f32 %v355, %v435
    %v437 = vpop.f32.mrb[0].mxu0
    %438 = vdwg.mxu0
    %v439 = vld [vmem:[%s5] sm:$0x1]
    %v440 = vld [vmem:[%s6] sm:$0x1]
    %v441 = vsel %vm254, %v431, 0.0
    %442 = vadd.xlane.f32.xlu0 %v441
    %v443 = vpop.xlane.xlu0 %442
    %v444 = vsel %vm254, %v436, 0.0
    %445 = vadd.xlane.f32.xlu0 %v444
    %v446 = vpop.xlane.xlu0 %445
    %v447 = vrcp.pop 32.0
    %v448 = vmul.f32 %v443, %v447
    %v449 = vmul.f32 %v446, %v447
    %v450 = vsub.f32 %v431, %v448
    %v451 = vsub.f32 %v436, %v449
    %v452 = vmul.f32 %v450, %v450
    %v453 = vmul.f32 %v451, %v451
    %v454 = vsel %vm254, %v452, 0.0
    %455 = vadd.xlane.f32.xlu0 %v454
    %v456 = vpop.xlane.xlu0 %455
    %v457 = vsel %vm254, %v453, 0.0
    %458 = vadd.xlane.f32.xlu0 %v457
    %v459 = vpop.xlane.xlu0 %458
    %v460 = vmul.f32 %v456, %v447
    %v461 = vmul.f32 %v459, %v447
    %v462 = vadd.f32 %v460, 1e-05
    %v463 = vadd.f32 %v461, 1e-05
    %v464 = vrsqrt.pop %v462
    %v465 = vrsqrt.pop %v463
    %v466 = vmul.f32 %v450, %v464
    %v467 = vmul.f32 %v451, %v465
    %v469 = vlaneseq
    %v470 = vshrl.u32 %v469, 7
    %v471 = vsub.s32 0, %v470
    %v472 = vrot.slane %v439, %v471
    %v474 = vmul.f32 %v466, %v472
    %v475 = vmul.f32 %v467, %v472
    %v477 = vlaneseq
    %v478 = vshrl.u32 %v477, 7
    %v479 = vsub.s32 0, %v478
    %v480 = vrot.slane %v440, %v479
    %v482 = vadd.f32 %v474, %v480
    %v483 = vadd.f32 %v475, %v480
    %v484 = vld [vmem:[#allocation5] sm:$0xff]
    %v485 = vld [vmem:[#allocation5 + $0x8] sm:$0xff]
    %v486 = vld [vmem:[#allocation5 + $0x10] sm:$0xff]
    %v487 = vld [vmem:[#allocation5 + $0x18] sm:$0xff]
    %v488 = vld [vmem:[%s8] sm:$0x1]
    %v490 = vlaneseq
    %v491 = vshrl.u32 %v490, 7
    %v492 = vsub.s32 0, %v491
    %v493 = vrot.slane %v488, %v492
    %v496 = vsel %vm254, %v482, 0
    %v499 = vsel %vm254, %v483, 0
    %501 = vmatprep.subr.mxu0 0.0
    %502 = vmatpush1.msra.mxu0 %v484
    %503 = vmatprep.subr.mxu0 0.0
    %504 = vmatpush1.msra.mxu0 %v485
    %505 = vmatprep.subr.mxu0 0.0
    %506 = vmatpush1.msra.mxu0 %v486
    %507 = vmatprep.subr.mxu0 0.0
    %508 = vmatpush1.msra.mxu0 %v487
    %509 = vmatprep.subr.mxu0 0.0
    %510 = vmatpush1.msra.mxu0 0.0
    %511 = vmatprep.subr.mxu0 0.0
    %512 = vmatpush1.msra.mxu0 0.0
    %513 = vmatprep.subr.mxu0 0.0
    %514 = vmatpush1.msra.mxu0 0.0
    %515 = vmatprep.subr.mxu0 0.0
    %516 = vmatpush1.msra.mxu0 0.0
    %517 = vmatprep.subr.mxu0 0.0
    %518 = vmatpush1.msra.mxu0 0.0
    %519 = vmatprep.subr.mxu0 0.0
    %520 = vmatpush1.msra.mxu0 0.0
    %521 = vmatprep.subr.mxu0 0.0
    %522 = vmatpush1.msra.mxu0 0.0
    %523 = vmatprep.subr.mxu0 0.0
    %524 = vmatpush1.msra.mxu0 0.0
    %525 = vmatprep.subr.mxu0 0.0
    %526 = vmatpush1.msra.mxu0 0.0
    %527 = vmatprep.subr.mxu0 0.0
    %528 = vmatpush1.msra.mxu0 0.0
    %529 = vmatprep.subr.mxu0 0.0
    %530 = vmatpush1.msra.mxu0 0.0
    %531 = vmatprep.subr.mxu0 0.0
    %532 = vmatpush1.msra.mxu0 0.0
    %533 = vmatprep.subr.mxu0 0.0
    %534 = vmatpush1.msra.mxu0 0.0
    %535 = vmatprep.subr.mxu0 0.0
    %536 = vmatpush1.msra.mxu0 0.0
    %537 = vmatprep.subr.mxu0 0.0
    %538 = vmatpush1.msra.mxu0 0.0
    %539 = vmatprep.subr.mxu0 0.0
    %540 = vmatpush1.msra.mxu0 0.0
    %541 = vmatprep.subr.mxu0 0.0
    %542 = vmatpush1.msra.mxu0 0.0
    %543 = vmatprep.subr.mxu0 0.0
    %544 = vmatpush1.msra.mxu0 0.0
    %545 = vmatprep.subr.mxu0 0.0
    %546 = vmatpush1.msra.mxu0 0.0
    %547 = vmatprep.subr.mxu0 0.0
    %548 = vmatpush1.msra.mxu0 0.0
    %549 = vmatprep.subr.mxu0 0.0
    %550 = vmatpush1.msra.mxu0 0.0
    %551 = vmatprep.subr.mxu0 0.0
    %552 = vmatpush1.msra.mxu0 0.0
    %553 = vmatprep.subr.mxu0 0.0
    %554 = vmatpush1.msra.mxu0 0.0
    %555 = vmatprep.subr.mxu0 0.0
    %556 = vmatpush1.msra.mxu0 0.0
    %557 = vmatprep.subr.mxu0 0.0
    %558 = vmatpush1.msra.mxu0 0.0
    %559 = vmatprep.subr.mxu0 0.0
    %560 = vmatpush1.msra.mxu0 0.0
    %561 = vmatprep.subr.mxu0 0.0
    %562 = vmatpush1.msra.mxu0 0.0
    %563 = vmatprep.subr.mxu0 0.0
    %564 = vmatpush1.msra.mxu0 0.0
    %565 = vmatprep.mubr.f32.mxu0 0.0
    %566 = vmatmul.mubr.f32.gmra.mrb[0].mxu0 %v496
    %v567 = vpop.f32.mrb[0].mxu0
    %v568 = vadd.f32 %v493, %v567
    %v569 = vpop.f32.mrb[0].mxu0
    %570 = vmatprep.mubr.f32.mxu0 0.0
    %571 = vmatmul.mubr.f32.gmra.mrb[0].mxu0 %v499
    %v572 = vpop.f32.mrb[0].mxu0
    %v573 = vadd.f32 %v493, %v572
    %v574 = vpop.f32.mrb[0].mxu0
    %575 = vdwg.mxu0
    %578 = vrot.lane.b32.xlu0 %v568, 96
    %v579 = vpop.permute.xlu0 %578
    %580 = vrot.lane.b32.xlu0 %v573, 96
    %v581 = vpop.permute.xlu0 %580
    %v582 = vsel %vm357, %v568, 0
    %v584 = vsel %vm357, %v573, 0
    %v586 = vsel %vm357, %v579, 0
    %v588 = vsel %vm357, %v581, 0
    %590 = vmatprep.subr.mxu0 0.0
    %591 = vmatpush1.xpose.msra.mxu0 %v586
    %592 = vmatprep.subr.mxu0 0.0
    %593 = vmatpush1.xpose.msra.mxu0 %v588
    %594 = vmatprep.subr.mxu0 0.0
    %595 = vmatpush1.xpose.msra.mxu0 0.0
    %596 = vmatprep.subr.mxu0 0.0
    %597 = vmatpush1.xpose.msra.mxu0 0.0
    %598 = vmatprep.subr.mxu0 0.0
    %599 = vmatpush1.xpose.msra.mxu0 0.0
    %600 = vmatprep.subr.mxu0 0.0
    %601 = vmatpush1.xpose.msra.mxu0 0.0
    %602 = vmatprep.subr.mxu0 0.0
    %603 = vmatpush1.xpose.msra.mxu0 0.0
    %604 = vmatprep.subr.mxu0 0.0
    %605 = vmatpush1.xpose.msra.mxu0 0.0
    %606 = vmatprep.subr.mxu0 0.0
    %607 = vmatpush1.xpose.msra.mxu0 0.0
    %608 = vmatprep.subr.mxu0 0.0
    %609 = vmatpush1.xpose.msra.mxu0 0.0
    %610 = vmatprep.subr.mxu0 0.0
    %611 = vmatpush1.xpose.msra.mxu0 0.0
    %612 = vmatprep.subr.mxu0 0.0
    %613 = vmatpush1.xpose.msra.mxu0 0.0
    %614 = vmatprep.subr.mxu0 0.0
    %615 = vmatpush1.xpose.msra.mxu0 0.0
    %616 = vmatprep.subr.mxu0 0.0
    %617 = vmatpush1.xpose.msra.mxu0 0.0
    %618 = vmatprep.subr.mxu0 0.0
    %619 = vmatpush1.xpose.msra.mxu0 0.0
    %620 = vmatprep.subr.mxu0 0.0
    %621 = vmatpush1.xpose.msra.mxu0 0.0
    %622 = vmatprep.subr.mxu0 0.0
    %623 = vmatpush1.xpose.msra.mxu0 0.0
    %624 = vmatprep.subr.mxu0 0.0
    %625 = vmatpush1.xpose.msra.mxu0 0.0
    %626 = vmatprep.subr.mxu0 0.0
    %627 = vmatpush1.xpose.msra.mxu0 0.0
    %628 = vmatprep.subr.mxu0 0.0
    %629 = vmatpush1.xpose.msra.mxu0 0.0
    %630 = vmatprep.subr.mxu0 0.0
    %631 = vmatpush1.xpose.msra.mxu0 0.0
    %632 = vmatprep.subr.mxu0 0.0
    %633 = vmatpush1.xpose.msra.mxu0 0.0
    %634 = vmatprep.subr.mxu0 0.0
    %635 = vmatpush1.xpose.msra.mxu0 0.0
    %636 = vmatprep.subr.mxu0 0.0
    %637 = vmatpush1.xpose.msra.mxu0 0.0
    %638 = vmatprep.subr.mxu0 0.0
    %639 = vmatpush1.xpose.msra.mxu0 0.0
    %640 = vmatprep.subr.mxu0 0.0
    %641 = vmatpush1.xpose.msra.mxu0 0.0
    %642 = vmatprep.subr.mxu0 0.0
    %643 = vmatpush1.xpose.msra.mxu0 0.0
    %644 = vmatprep.subr.mxu0 0.0
    %645 = vmatpush1.xpose.msra.mxu0 0.0
    %646 = vmatprep.subr.mxu0 0.0
    %647 = vmatpush1.xpose.msra.mxu0 0.0
    %648 = vmatprep.subr.mxu0 0.0
    %649 = vmatpush1.xpose.msra.mxu0 0.0
    %650 = vmatprep.subr.mxu0 0.0
    %651 = vmatpush1.xpose.msra.mxu0 0.0
    %652 = vmatprep.subr.mxu0 0.0
    %653 = vmatpush1.xpose.msra.mxu0 0.0
    %654 = vmatprep.mubr.f32.mxu0 0.0
    %655 = vmatmul.mubr.f32.gmra.mrb[0].mxu0 %v582
    %v656 = vpop.f32.mrb[0].mxu0
    %v657 = vadd.f32 0.0, %v656
    %v658 = vpop.f32.mrb[0].mxu0
    %659 = vmatprep.mubr.f32.mxu0 0.0
    %660 = vmatmul.mubr.f32.gmra.mrb[0].mxu0 %v584
    %v661 = vpop.f32.mrb[0].mxu0
    %v662 = vadd.f32 0.0, %v661
    %v663 = vpop.f32.mrb[0].mxu0
    %664 = vdwg.mxu0
    %v665 = vmul.f32 %v657, 0.35355338
    %v666 = vmul.f32 %v662, 0.35355338
    %v667 = vadd.f32 %v665, %v345
    %v668 = vadd.f32 %v666, %v346
    %vm669 = vcmask 130048
    %v670 = vsel %vm669, %v667, -inf
    %671 = vmax.xlane.f32.xlu0 %v670
    %v672 = vpop.xlane.xlu0 %671
    %v673 = vsel %vm669, %v668, -inf
    %674 = vmax.xlane.f32.xlu0 %v673
    %v675 = vpop.xlane.xlu0 %674
    %v676 = vsub.f32 %v667, %v672
    %v677 = vsub.f32 %v668, %v675
    %v678 = vmul.f32 %v676, 1.442695
    %v679 = vpow.pop %v678
    %v680 = vmul.f32 %v677, 1.442695
    %v681 = vpow.pop %v680
    %v682 = vsel %vm669, %v679, 0.0
    %683 = vadd.xlane.f32.xlu0 %v682
    %v684 = vpop.xlane.xlu0 %683
    %v685 = vsel %vm669, %v681, 0.0
    %686 = vadd.xlane.f32.xlu0 %v685
    %v687 = vpop.xlane.xlu0 %686
    %v688 = vrcp.pop %v684
    %v689 = vrcp.pop %v687
    %v690 = vmul.f32 %v679, %v688
    %v691 = vmul.f32 %v681, %v689
    %692 = vrot.lane.b32.xlu0 %v568, 64
    %v693 = vpop.permute.xlu0 %692
    %694 = vrot.lane.b32.xlu0 %v573, 64
    %v695 = vpop.permute.xlu0 %694
    %v699 = vsel %vm669, %v690, 0
    %v702 = vsel %vm669, %v691, 0
    %704 = vmatprep.subr.mxu0 0.0
    %705 = vmatpush1.msra.mxu0 %v693
    %706 = vmatprep.subr.mxu0 0.0
    %707 = vmatpush1.msra.mxu0 %v695
    %708 = vmatprep.subr.mxu0 0.0
    %709 = vmatpush1.msra.mxu0 0.0
    %710 = vmatprep.subr.mxu0 0.0
    %711 = vmatpush1.msra.mxu0 0.0
    %712 = vmatprep.subr.mxu0 0.0
    %713 = vmatpush1.msra.mxu0 0.0
    %714 = vmatprep.subr.mxu0 0.0
    %715 = vmatpush1.msra.mxu0 0.0
    %716 = vmatprep.subr.mxu0 0.0
    %717 = vmatpush1.msra.mxu0 0.0
    %718 = vmatprep.subr.mxu0 0.0
    %719 = vmatpush1.msra.mxu0 0.0
    %720 = vmatprep.subr.mxu0 0.0
    %721 = vmatpush1.msra.mxu0 0.0
    %722 = vmatprep.subr.mxu0 0.0
    %723 = vmatpush1.msra.mxu0 0.0
    %724 = vmatprep.subr.mxu0 0.0
    %725 = vmatpush1.msra.mxu0 0.0
    %726 = vmatprep.subr.mxu0 0.0
    %727 = vmatpush1.msra.mxu0 0.0
    %728 = vmatprep.subr.mxu0 0.0
    %729 = vmatpush1.msra.mxu0 0.0
    %730 = vmatprep.subr.mxu0 0.0
    %731 = vmatpush1.msra.mxu0 0.0
    %732 = vmatprep.subr.mxu0 0.0
    %733 = vmatpush1.msra.mxu0 0.0
    %734 = vmatprep.subr.mxu0 0.0
    %735 = vmatpush1.msra.mxu0 0.0
    %736 = vmatprep.subr.mxu0 0.0
    %737 = vmatpush1.msra.mxu0 0.0
    %738 = vmatprep.subr.mxu0 0.0
    %739 = vmatpush1.msra.mxu0 0.0
    %740 = vmatprep.subr.mxu0 0.0
    %741 = vmatpush1.msra.mxu0 0.0
    %742 = vmatprep.subr.mxu0 0.0
    %743 = vmatpush1.msra.mxu0 0.0
    %744 = vmatprep.subr.mxu0 0.0
    %745 = vmatpush1.msra.mxu0 0.0
    %746 = vmatprep.subr.mxu0 0.0
    %747 = vmatpush1.msra.mxu0 0.0
    %748 = vmatprep.subr.mxu0 0.0
    %749 = vmatpush1.msra.mxu0 0.0
    %750 = vmatprep.subr.mxu0 0.0
    %751 = vmatpush1.msra.mxu0 0.0
    %752 = vmatprep.subr.mxu0 0.0
    %753 = vmatpush1.msra.mxu0 0.0
    %754 = vmatprep.subr.mxu0 0.0
    %755 = vmatpush1.msra.mxu0 0.0
    %756 = vmatprep.subr.mxu0 0.0
    %757 = vmatpush1.msra.mxu0 0.0
    %758 = vmatprep.subr.mxu0 0.0
    %759 = vmatpush1.msra.mxu0 0.0
    %760 = vmatprep.subr.mxu0 0.0
    %761 = vmatpush1.msra.mxu0 0.0
    %762 = vmatprep.subr.mxu0 0.0
    %763 = vmatpush1.msra.mxu0 0.0
    %764 = vmatprep.subr.mxu0 0.0
    %765 = vmatpush1.msra.mxu0 0.0
    %766 = vmatprep.subr.mxu0 0.0
    %767 = vmatpush1.msra.mxu0 0.0
    %768 = vmatprep.mubr.f32.mxu0 0.0
    %769 = vmatmul.mubr.f32.gmra.mrb[0].mxu0 %v699
    %v770 = vpop.f32.mrb[0].mxu0
    %v771 = vadd.f32 0.0, %v770
    %v772 = vpop.f32.mrb[0].mxu0
    %773 = vmatprep.mubr.f32.mxu0 0.0
    %774 = vmatmul.mubr.f32.gmra.mrb[0].mxu0 %v702
    %v775 = vpop.f32.mrb[0].mxu0
    %v776 = vadd.f32 0.0, %v775
    %v777 = vpop.f32.mrb[0].mxu0
    %778 = vdwg.mxu0
    %v779 = vld [vmem:[#allocation7] sm:$0xff]
    %780 = vrot.lane.b32.xlu0 %v568, 120
    %v781 = vpop.permute.xlu0 %780
    %782 = vrot.lane.b32.xlu0 %v573, 120
    %v783 = vpop.permute.xlu0 %782
    %784 = vrot.lane.b32.xlu0 %v568, 88
    %v785 = vpop.permute.xlu0 %784
    %786 = vrot.lane.b32.xlu0 %v573, 88
    %v787 = vpop.permute.xlu0 %786
    %v788 = vsel %vm357, %v781, 0
    %v790 = vsel %vm357, %v783, 0
    %v792 = vsel %vm357, %v785, 0
    %v794 = vsel %vm357, %v787, 0
    %796 = vmatprep.subr.mxu0 0.0
    %797 = vmatpush1.xpose.msra.mxu0 %v792
    %798 = vmatprep.subr.mxu0 0.0
    %799 = vmatpush1.xpose.msra.mxu0 %v794
    %800 = vmatprep.subr.mxu0 0.0
    %801 = vmatpush1.xpose.msra.mxu0 0.0
    %802 = vmatprep.subr.mxu0 0.0
    %803 = vmatpush1.xpose.msra.mxu0 0.0
    %804 = vmatprep.subr.mxu0 0.0
    %805 = vmatpush1.xpose.msra.mxu0 0.0
    %806 = vmatprep.subr.mxu0 0.0
    %807 = vmatpush1.xpose.msra.mxu0 0.0
    %808 = vmatprep.subr.mxu0 0.0
    %809 = vmatpush1.xpose.msra.mxu0 0.0
    %810 = vmatprep.subr.mxu0 0.0
    %811 = vmatpush1.xpose.msra.mxu0 0.0
    %812 = vmatprep.subr.mxu0 0.0
    %813 = vmatpush1.xpose.msra.mxu0 0.0
    %814 = vmatprep.subr.mxu0 0.0
    %815 = vmatpush1.xpose.msra.mxu0 0.0
    %816 = vmatprep.subr.mxu0 0.0
    %817 = vmatpush1.xpose.msra.mxu0 0.0
    %818 = vmatprep.subr.mxu0 0.0
    %819 = vmatpush1.xpose.msra.mxu0 0.0
    %820 = vmatprep.subr.mxu0 0.0
    %821 = vmatpush1.xpose.msra.mxu0 0.0
    %822 = vmatprep.subr.mxu0 0.0
    %823 = vmatpush1.xpose.msra.mxu0 0.0
    %824 = vmatprep.subr.mxu0 0.0
    %825 = vmatpush1.xpose.msra.mxu0 0.0
    %826 = vmatprep.subr.mxu0 0.0
    %827 = vmatpush1.xpose.msra.mxu0 0.0
    %828 = vmatprep.subr.mxu0 0.0
    %829 = vmatpush1.xpose.msra.mxu0 0.0
    %830 = vmatprep.subr.mxu0 0.0
    %831 = vmatpush1.xpose.msra.mxu0 0.0
    %832 = vmatprep.subr.mxu0 0.0
    %833 = vmatpush1.xpose.msra.mxu0 0.0
    %834 = vmatprep.subr.mxu0 0.0
    %835 = vmatpush1.xpose.msra.mxu0 0.0
    %836 = vmatprep.subr.mxu0 0.0
    %837 = vmatpush1.xpose.msra.mxu0 0.0
    %838 = vmatprep.subr.mxu0 0.0
    %839 = vmatpush1.xpose.msra.mxu0 0.0
    %840 = vmatprep.subr.mxu0 0.0
    %841 = vmatpush1.xpose.msra.mxu0 0.0
    %842 = vmatprep.subr.mxu0 0.0
    %843 = vmatpush1.xpose.msra.mxu0 0.0
    %844 = vmatprep.subr.mxu0 0.0
    %845 = vmatpush1.xpose.msra.mxu0 0.0
    %846 = vmatprep.subr.mxu0 0.0
    %847 = vmatpush1.xpose.msra.mxu0 0.0
    %848 = vmatprep.subr.mxu0 0.0
    %849 = vmatpush1.xpose.msra.mxu0 0.0
    %850 = vmatprep.subr.mxu0 0.0
    %851 = vmatpush1.xpose.msra.mxu0 0.0
    %852 = vmatprep.subr.mxu0 0.0
    %853 = vmatpush1.xpose.msra.mxu0 0.0
    %854 = vmatprep.subr.mxu0 0.0
    %855 = vmatpush1.xpose.msra.mxu0 0.0
    %856 = vmatprep.subr.mxu0 0.0
    %857 = vmatpush1.xpose.msra.mxu0 0.0
    %858 = vmatprep.subr.mxu0 0.0
    %859 = vmatpush1.xpose.msra.mxu0 0.0
    %860 = vmatprep.mubr.f32.mxu0 0.0
    %861 = vmatmul.mubr.f32.gmra.mrb[0].mxu0 %v788
    %v862 = vpop.f32.mrb[0].mxu0
    %v863 = vadd.f32 0.0, %v862
    %v864 = vpop.f32.mrb[0].mxu0
    %865 = vmatprep.mubr.f32.mxu0 0.0
    %866 = vmatmul.mubr.f32.gmra.mrb[0].mxu0 %v790
    %v867 = vpop.f32.mrb[0].mxu0
    %v868 = vadd.f32 0.0, %v867
    %v869 = vpop.f32.mrb[0].mxu0
    %870 = vdwg.mxu0
    %v871 = vmul.f32 %v863, 0.35355338
    %v872 = vmul.f32 %v868, 0.35355338
    %v873 = vadd.f32 %v871, %v345
    %v874 = vadd.f32 %v872, %v346
    %v875 = vsel %vm669, %v873, -inf
    %876 = vmax.xlane.f32.xlu0 %v875
    %v877 = vpop.xlane.xlu0 %876
    %v878 = vsel %vm669, %v874, -inf
    %879 = vmax.xlane.f32.xlu0 %v878
    %v880 = vpop.xlane.xlu0 %879
    %v881 = vsub.f32 %v873, %v877
    %v882 = vsub.f32 %v874, %v880
    %v883 = vmul.f32 %v881, 1.442695
    %v884 = vpow.pop %v883
    %v885 = vmul.f32 %v882, 1.442695
    %v886 = vpow.pop %v885
    %v887 = vsel %vm669, %v884, 0.0
    %888 = vadd.xlane.f32.xlu0 %v887
    %v889 = vpop.xlane.xlu0 %888
    %v890 = vsel %vm669, %v886, 0.0
    %891 = vadd.xlane.f32.xlu0 %v890
    %v892 = vpop.xlane.xlu0 %891
    %v893 = vrcp.pop %v889
    %v894 = vrcp.pop %v892
    %v895 = vmul.f32 %v884, %v893
    %v896 = vmul.f32 %v886, %v894
    %897 = vrot.lane.b32.xlu0 %v568, 56
    %v898 = vpop.permute.xlu0 %897
    %899 = vrot.lane.b32.xlu0 %v573, 56
    %v900 = vpop.permute.xlu0 %899
    %v904 = vsel %vm669, %v895, 0
    %v907 = vsel %vm669, %v896, 0
    %909 = vmatprep.subr.mxu0 0.0
    %910 = vmatpush1.msra.mxu0 %v898
    %911 = vmatprep.subr.mxu0 0.0
    %912 = vmatpush1.msra.mxu0 %v900
    %913 = vmatprep.subr.mxu0 0.0
    %914 = vmatpush1.msra.mxu0 0.0
    %915 = vmatprep.subr.mxu0 0.0
    %916 = vmatpush1.msra.mxu0 0.0
    %917 = vmatprep.subr.mxu0 0.0
    %918 = vmatpush1.msra.mxu0 0.0
    %919 = vmatprep.subr.mxu0 0.0
    %920 = vmatpush1.msra.mxu0 0.0
    %921 = vmatprep.subr.mxu0 0.0
    %922 = vmatpush1.msra.mxu0 0.0
    %923 = vmatprep.subr.mxu0 0.0
    %924 = vmatpush1.msra.mxu0 0.0
    %925 = vmatprep.subr.mxu0 0.0
    %926 = vmatpush1.msra.mxu0 0.0
    %927 = vmatprep.subr.mxu0 0.0
    %928 = vmatpush1.msra.mxu0 0.0
    %929 = vmatprep.subr.mxu0 0.0
    %930 = vmatpush1.msra.mxu0 0.0
    %931 = vmatprep.subr.mxu0 0.0
    %932 = vmatpush1.msra.mxu0 0.0
    %933 = vmatprep.subr.mxu0 0.0
    %934 = vmatpush1.msra.mxu0 0.0
    %935 = vmatprep.subr.mxu0 0.0
    %936 = vmatpush1.msra.mxu0 0.0
    %937 = vmatprep.subr.mxu0 0.0
    %938 = vmatpush1.msra.mxu0 0.0
    %939 = vmatprep.subr.mxu0 0.0
    %940 = vmatpush1.msra.mxu0 0.0
    %941 = vmatprep.subr.mxu0 0.0
    %942 = vmatpush1.msra.mxu0 0.0
    %943 = vmatprep.subr.mxu0 0.0
    %944 = vmatpush1.msra.mxu0 0.0
    %945 = vmatprep.subr.mxu0 0.0
    %946 = vmatpush1.msra.mxu0 0.0
    %947 = vmatprep.subr.mxu0 0.0
    %948 = vmatpush1.msra.mxu0 0.0
    %949 = vmatprep.subr.mxu0 0.0
    %950 = vmatpush1.msra.mxu0 0.0
    %951 = vmatprep.subr.mxu0 0.0
    %952 = vmatpush1.msra.mxu0 0.0
    %953 = vmatprep.subr.mxu0 0.0
    %954 = vmatpush1.msra.mxu0 0.0
    %955 = vmatprep.subr.mxu0 0.0
    %956 = vmatpush1.msra.mxu0 0.0
    %957 = vmatprep.subr.mxu0 0.0
    %958 = vmatpush1.msra.mxu0 0.0
    %959 = vmatprep.subr.mxu0 0.0
    %960 = vmatpush1.msra.mxu0 0.0
    %961 = vmatprep.subr.mxu0 0.0
    %962 = vmatpush1.msra.mxu0 0.0
    %963 = vmatprep.subr.mxu0 0.0
    %964 = vmatpush1.msra.mxu0 0.0
    %965 = vmatprep.subr.mxu0 0.0
    %966 = vmatpush1.msra.mxu0 0.0
    %967 = vmatprep.subr.mxu0 0.0
    %968 = vmatpush1.msra.mxu0 0.0
    %969 = vmatprep.subr.mxu0 0.0
    %970 = vmatpush1.msra.mxu0 0.0
    %971 = vmatprep.subr.mxu0 0.0
    %972 = vmatpush1.msra.mxu0 0.0
    %973 = vmatprep.mubr.f32.mxu0 0.0
    %974 = vmatmul.mubr.f32.gmra.mrb[0].mxu0 %v904
    %v975 = vpop.f32.mrb[0].mxu0
    %v976 = vadd.f32 0.0, %v975
    %v977 = vpop.f32.mrb[0].mxu0
    %978 = vmatprep.mubr.f32.mxu0 0.0
    %979 = vmatmul.mubr.f32.gmra.mrb[0].mxu0 %v907
    %v980 = vpop.f32.mrb[0].mxu0
    %v981 = vadd.f32 0.0, %v980
    %v982 = vpop.f32.mrb[0].mxu0
    %983 = vdwg.mxu0
    %v984 = vld [vmem:[#allocation7 + $0x8] sm:$0xff]
    %v986 = vsel %vm357, %v976, 0
    %v989 = vsel %vm357, %v981, 0
    %991 = vmatprep.subr.mxu0 0.0
    %992 = vmatpush1.msra.mxu0 %v984
    %993 = vmatprep.subr.mxu0 0.0
    %994 = vmatpush1.msra.mxu0 0.0
    %995 = vmatprep.subr.mxu0 0.0
    %996 = vmatpush1.msra.mxu0 0.0
    %997 = vmatprep.subr.mxu0 0.0
    %998 = vmatpush1.msra.mxu0 0.0
    %999 = vmatprep.subr.mxu0 0.0
    %1000 = vmatpush1.msra.mxu0 0.0
    %1001 = vmatprep.subr.mxu0 0.0
    %1002 = vmatpush1.msra.mxu0 0.0
    %1003 = vmatprep.subr.mxu0 0.0
    %1004 = vmatpush1.msra.mxu0 0.0
    %1005 = vmatprep.subr.mxu0 0.0
    %1006 = vmatpush1.msra.mxu0 0.0
    %1007 = vmatprep.subr.mxu0 0.0
    %1008 = vmatpush1.msra.mxu0 0.0
    %1009 = vmatprep.subr.mxu0 0.0
    %1010 = vmatpush1.msra.mxu0 0.0
    %1011 = vmatprep.subr.mxu0 0.0
    %1012 = vmatpush1.msra.mxu0 0.0
    %1013 = vmatprep.subr.mxu0 0.0
    %1014 = vmatpush1.msra.mxu0 0.0
    %1015 = vmatprep.subr.mxu0 0.0
    %1016 = vmatpush1.msra.mxu0 0.0
    %1017 = vmatprep.subr.mxu0 0.0
    %1018 = vmatpush1.msra.mxu0 0.0
    %1019 = vmatprep.subr.mxu0 0.0
    %1020 = vmatpush1.msra.mxu0 0.0
    %1021 = vmatprep.subr.mxu0 0.0
    %1022 = vmatpush1.msra.mxu0 0.0
    %1023 = vmatprep.subr.mxu0 0.0
    %1024 = vmatpush1.msra.mxu0 0.0
    %1025 = vmatprep.subr.mxu0 0.0
    %1026 = vmatpush1.msra.mxu0 0.0
    %1027 = vmatprep.subr.mxu0 0.0
    %1028 = vmatpush1.msra.mxu0 0.0
    %1029 = vmatprep.subr.mxu0 0.0
    %1030 = vmatpush1.msra.mxu0 0.0
    %1031 = vmatprep.subr.mxu0 0.0
    %1032 = vmatpush1.msra.mxu0 0.0
    %1033 = vmatprep.subr.mxu0 0.0
    %1034 = vmatpush1.msra.mxu0 0.0
    %1035 = vmatprep.subr.mxu0 0.0
    %1036 = vmatpush1.msra.mxu0 0.0
    %1037 = vmatprep.subr.mxu0 0.0
    %1038 = vmatpush1.msra.mxu0 0.0
    %1039 = vmatprep.subr.mxu0 0.0
    %1040 = vmatpush1.msra.mxu0 0.0
    %1041 = vmatprep.subr.mxu0 0.0
    %1042 = vmatpush1.msra.mxu0 0.0
    %1043 = vmatprep.subr.mxu0 0.0
    %1044 = vmatpush1.msra.mxu0 0.0
    %1045 = vmatprep.subr.mxu0 0.0
    %1046 = vmatpush1.msra.mxu0 0.0
    %1047 = vmatprep.subr.mxu0 0.0
    %1048 = vmatpush1.msra.mxu0 0.0
    %1049 = vmatprep.subr.mxu0 0.0
    %1050 = vmatpush1.msra.mxu0 0.0
    %1051 = vmatprep.subr.mxu0 0.0
    %1052 = vmatpush1.msra.mxu0 0.0
    %1053 = vmatprep.subr.mxu0 0.0
    %1054 = vmatpush1.msra.mxu0 0.0
    %1055 = vmatprep.mubr.f32.mxu0 0.0
    %1056 = vmatmul.mubr.f32.gmra.mrb[0].mxu0 %v986
    %v1057 = vpop.f32.mrb[0].mxu0
    %v1058 = vadd.f32 0.0, %v1057
    %v1059 = vpop.f32.mrb[0].mxu0
    %1060 = vmatprep.mubr.f32.mxu0 0.0
    %1061 = vmatmul.mubr.f32.gmra.mrb[0].mxu0 %v989
    %v1062 = vpop.f32.mrb[0].mxu0
    %v1063 = vadd.f32 0.0, %v1062
    %v1064 = vpop.f32.mrb[0].mxu0
    %1065 = vdwg.mxu0
    %v1067 = vsel %vm357, %v771, 0
    %v1070 = vsel %vm357, %v776, 0
    %1072 = vmatprep.subr.mxu0 0.0
    %1073 = vmatpush1.msra.mxu0 %v779
    %1074 = vmatprep.subr.mxu0 0.0
    %1075 = vmatpush1.msra.mxu0 0.0
    %1076 = vmatprep.subr.mxu0 0.0
    %1077 = vmatpush1.msra.mxu0 0.0
    %1078 = vmatprep.subr.mxu0 0.0
    %1079 = vmatpush1.msra.mxu0 0.0
    %1080 = vmatprep.subr.mxu0 0.0
    %1081 = vmatpush1.msra.mxu0 0.0
    %1082 = vmatprep.subr.mxu0 0.0
    %1083 = vmatpush1.msra.mxu0 0.0
    %1084 = vmatprep.subr.mxu0 0.0
    %1085 = vmatpush1.msra.mxu0 0.0
    %1086 = vmatprep.subr.mxu0 0.0
    %1087 = vmatpush1.msra.mxu0 0.0
    %1088 = vmatprep.subr.mxu0 0.0
    %1089 = vmatpush1.msra.mxu0 0.0
    %1090 = vmatprep.subr.mxu0 0.0
    %1091 = vmatpush1.msra.mxu0 0.0
    %1092 = vmatprep.subr.mxu0 0.0
    %1093 = vmatpush1.msra.mxu0 0.0
    %1094 = vmatprep.subr.mxu0 0.0
    %1095 = vmatpush1.msra.mxu0 0.0
    %1096 = vmatprep.subr.mxu0 0.0
    %1097 = vmatpush1.msra.mxu0 0.0
    %1098 = vmatprep.subr.mxu0 0.0
    %1099 = vmatpush1.msra.mxu0 0.0
    %1100 = vmatprep.subr.mxu0 0.0
    %1101 = vmatpush1.msra.mxu0 0.0
    %1102 = vmatprep.subr.mxu0 0.0
    %1103 = vmatpush1.msra.mxu0 0.0
    %1104 = vmatprep.subr.mxu0 0.0
    %1105 = vmatpush1.msra.mxu0 0.0
    %1106 = vmatprep.subr.mxu0 0.0
    %1107 = vmatpush1.msra.mxu0 0.0
    %1108 = vmatprep.subr.mxu0 0.0
    %1109 = vmatpush1.msra.mxu0 0.0
    %1110 = vmatprep.subr.mxu0 0.0
    %1111 = vmatpush1.msra.mxu0 0.0
    %1112 = vmatprep.subr.mxu0 0.0
    %1113 = vmatpush1.msra.mxu0 0.0
    %1114 = vmatprep.subr.mxu0 0.0
    %1115 = vmatpush1.msra.mxu0 0.0
    %1116 = vmatprep.subr.mxu0 0.0
    %1117 = vmatpush1.msra.mxu0 0.0
    %1118 = vmatprep.subr.mxu0 0.0
    %1119 = vmatpush1.msra.mxu0 0.0
    %1120 = vmatprep.subr.mxu0 0.0
    %1121 = vmatpush1.msra.mxu0 0.0
    %1122 = vmatprep.subr.mxu0 0.0
    %1123 = vmatpush1.msra.mxu0 0.0
    %1124 = vmatprep.subr.mxu0 0.0
    %1125 = vmatpush1.msra.mxu0 0.0
    %1126 = vmatprep.subr.mxu0 0.0
    %1127 = vmatpush1.msra.mxu0 0.0
    %1128 = vmatprep.subr.mxu0 0.0
    %1129 = vmatpush1.msra.mxu0 0.0
    %1130 = vmatprep.subr.mxu0 0.0
    %1131 = vmatpush1.msra.mxu0 0.0
    %1132 = vmatprep.subr.mxu0 0.0
    %1133 = vmatpush1.msra.mxu0 0.0
    %1134 = vmatprep.subr.mxu0 0.0
    %1135 = vmatpush1.msra.mxu0 0.0
    %1136 = vmatprep.mubr.f32.mxu0 0.0
    %1137 = vmatmul.mubr.f32.gmra.mrb[0].mxu0 %v1067
    %v1138 = vpop.f32.mrb[0].mxu0
    %v1139 = vadd.f32 %v1058, %v1138
    %v1140 = vpop.f32.mrb[0].mxu0
    %1141 = vmatprep.mubr.f32.mxu0 0.0
    %1142 = vmatmul.mubr.f32.gmra.mrb[0].mxu0 %v1070
    %v1143 = vpop.f32.mrb[0].mxu0
    %v1144 = vadd.f32 %v1063, %v1143
    %v1145 = vpop.f32.mrb[0].mxu0
    %1146 = vdwg.mxu0
    %1147 = vrot.lane.b32.xlu0 %v568, 112
    %v1148 = vpop.permute.xlu0 %1147
    %1149 = vrot.lane.b32.xlu0 %v573, 112
    %v1150 = vpop.permute.xlu0 %1149
    %1151 = vrot.lane.b32.xlu0 %v568, 80
    %v1152 = vpop.permute.xlu0 %1151
    %1153 = vrot.lane.b32.xlu0 %v573, 80
    %v1154 = vpop.permute.xlu0 %1153
    %v1155 = vsel %vm357, %v1148, 0
    %v1157 = vsel %vm357, %v1150, 0
    %v1159 = vsel %vm357, %v1152, 0
    %v1161 = vsel %vm357, %v1154, 0
    %1163 = vmatprep.subr.mxu0 0.0
    %1164 = vmatpush1.xpose.msra.mxu0 %v1159
    %1165 = vmatprep.subr.mxu0 0.0
    %1166 = vmatpush1.xpose.msra.mxu0 %v1161
    %1167 = vmatprep.subr.mxu0 0.0
    %1168 = vmatpush1.xpose.msra.mxu0 0.0
    %1169 = vmatprep.subr.mxu0 0.0
    %1170 = vmatpush1.xpose.msra.mxu0 0.0
    %1171 = vmatprep.subr.mxu0 0.0
    %1172 = vmatpush1.xpose.msra.mxu0 0.0
    %1173 = vmatprep.subr.mxu0 0.0
    %1174 = vmatpush1.xpose.msra.mxu0 0.0
    %1175 = vmatprep.subr.mxu0 0.0
    %1176 = vmatpush1.xpose.msra.mxu0 0.0
    %1177 = vmatprep.subr.mxu0 0.0
    %1178 = vmatpush1.xpose.msra.mxu0 0.0
    %1179 = vmatprep.subr.mxu0 0.0
    %1180 = vmatpush1.xpose.msra.mxu0 0.0
    %1181 = vmatprep.subr.mxu0 0.0
    %1182 = vmatpush1.xpose.msra.mxu0 0.0
    %1183 = vmatprep.subr.mxu0 0.0
    %1184 = vmatpush1.xpose.msra.mxu0 0.0
    %1185 = vmatprep.subr.mxu0 0.0
    %1186 = vmatpush1.xpose.msra.mxu0 0.0
    %1187 = vmatprep.subr.mxu0 0.0
    %1188 = vmatpush1.xpose.msra.mxu0 0.0
    %1189 = vmatprep.subr.mxu0 0.0
    %1190 = vmatpush1.xpose.msra.mxu0 0.0
    %1191 = vmatprep.subr.mxu0 0.0
    %1192 = vmatpush1.xpose.msra.mxu0 0.0
    %1193 = vmatprep.subr.mxu0 0.0
    %1194 = vmatpush1.xpose.msra.mxu0 0.0
    %1195 = vmatprep.subr.mxu0 0.0
    %1196 = vmatpush1.xpose.msra.mxu0 0.0
    %1197 = vmatprep.subr.mxu0 0.0
    %1198 = vmatpush1.xpose.msra.mxu0 0.0
    %1199 = vmatprep.subr.mxu0 0.0
    %1200 = vmatpush1.xpose.msra.mxu0 0.0
    %1201 = vmatprep.subr.mxu0 0.0
    %1202 = vmatpush1.xpose.msra.mxu0 0.0
    %1203 = vmatprep.subr.mxu0 0.0
    %1204 = vmatpush1.xpose.msra.mxu0 0.0
    %1205 = vmatprep.subr.mxu0 0.0
    %1206 = vmatpush1.xpose.msra.mxu0 0.0
    %1207 = vmatprep.subr.mxu0 0.0
    %1208 = vmatpush1.xpose.msra.mxu0 0.0
    %1209 = vmatprep.subr.mxu0 0.0
    %1210 = vmatpush1.xpose.msra.mxu0 0.0
    %1211 = vmatprep.subr.mxu0 0.0
    %1212 = vmatpush1.xpose.msra.mxu0 0.0
    %1213 = vmatprep.subr.mxu0 0.0
    %1214 = vmatpush1.xpose.msra.mxu0 0.0
    %1215 = vmatprep.subr.mxu0 0.0
    %1216 = vmatpush1.xpose.msra.mxu0 0.0
    %1217 = vmatprep.subr.mxu0 0.0
    %1218 = vmatpush1.xpose.msra.mxu0 0.0
    %1219 = vmatprep.subr.mxu0 0.0
    %1220 = vmatpush1.xpose.msra.mxu0 0.0
    %1221 = vmatprep.subr.mxu0 0.0
    %1222 = vmatpush1.xpose.msra.mxu0 0.0
    %1223 = vmatprep.subr.mxu0 0.0
    %1224 = vmatpush1.xpose.msra.mxu0 0.0
    %1225 = vmatprep.subr.mxu0 0.0
    %1226 = vmatpush1.xpose.msra.mxu0 0.0
    %1227 = vmatprep.mubr.f32.mxu0 0.0
    %1228 = vmatmul.mubr.f32.gmra.mrb[0].mxu0 %v1155
    %v1229 = vpop.f32.mrb[0].mxu0
    %v1230 = vadd.f32 0.0, %v1229
    %v1231 = vpop.f32.mrb[0].mxu0
    %1232 = vmatprep.mubr.f32.mxu0 0.0
    %1233 = vmatmul.mubr.f32.gmra.mrb[0].mxu0 %v1157
    %v1234 = vpop.f32.mrb[0].mxu0
    %v1235 = vadd.f32 0.0, %v1234
    %v1236 = vpop.f32.mrb[0].mxu0
    %1237 = vdwg.mxu0
    %v1238 = vmul.f32 %v1230, 0.35355338
    %v1239 = vmul.f32 %v1235, 0.35355338
    %v1240 = vadd.f32 %v1238, %v345
    %v1241 = vadd.f32 %v1239, %v346
    %v1242 = vsel %vm669, %v1240, -inf
    %1243 = vmax.xlane.f32.xlu0 %v1242
    %v1244 = vpop.xlane.xlu0 %1243
    %v1245 = vsel %vm669, %v1241, -inf
    %1246 = vmax.xlane.f32.xlu0 %v1245
    %v1247 = vpop.xlane.xlu0 %1246
    %v1248 = vsub.f32 %v1240, %v1244
    %v1249 = vsub.f32 %v1241, %v1247
    %v1250 = vmul.f32 %v1248, 1.442695
    %v1251 = vpow.pop %v1250
    %v1252 = vmul.f32 %v1249, 1.442695
    %v1253 = vpow.pop %v1252
    %v1254 = vsel %vm669, %v1251, 0.0
    %1255 = vadd.xlane.f32.xlu0 %v1254
    %v1256 = vpop.xlane.xlu0 %1255
    %v1257 = vsel %vm669, %v1253, 0.0
    %1258 = vadd.xlane.f32.xlu0 %v1257
    %v1259 = vpop.xlane.xlu0 %1258
    %v1260 = vrcp.pop %v1256
    %v1261 = vrcp.pop %v1259
    %v1262 = vmul.f32 %v1251, %v1260
    %v1263 = vmul.f32 %v1253, %v1261
    %1264 = vrot.lane.b32.xlu0 %v568, 48
    %v1265 = vpop.permute.xlu0 %1264
    %1266 = vrot.lane.b32.xlu0 %v573, 48
    %v1267 = vpop.permute.xlu0 %1266
    %v1271 = vsel %vm669, %v1262, 0
    %v1274 = vsel %vm669, %v1263, 0
    %1276 = vmatprep.subr.mxu0 0.0
    %1277 = vmatpush1.msra.mxu0 %v1265
    %1278 = vmatprep.subr.mxu0 0.0
    %1279 = vmatpush1.msra.mxu0 %v1267
    %1280 = vmatprep.subr.mxu0 0.0
    %1281 = vmatpush1.msra.mxu0 0.0
    %1282 = vmatprep.subr.mxu0 0.0
    %1283 = vmatpush1.msra.mxu0 0.0
    %1284 = vmatprep.subr.mxu0 0.0
    %1285 = vmatpush1.msra.mxu0 0.0
    %1286 = vmatprep.subr.mxu0 0.0
    %1287 = vmatpush1.msra.mxu0 0.0
    %1288 = vmatprep.subr.mxu0 0.0
    %1289 = vmatpush1.msra.mxu0 0.0
    %1290 = vmatprep.subr.mxu0 0.0
    %1291 = vmatpush1.msra.mxu0 0.0
    %1292 = vmatprep.subr.mxu0 0.0
    %1293 = vmatpush1.msra.mxu0 0.0
    %1294 = vmatprep.subr.mxu0 0.0
    %1295 = vmatpush1.msra.mxu0 0.0
    %1296 = vmatprep.subr.mxu0 0.0
    %1297 = vmatpush1.msra.mxu0 0.0
    %1298 = vmatprep.subr.mxu0 0.0
    %1299 = vmatpush1.msra.mxu0 0.0
    %1300 = vmatprep.subr.mxu0 0.0
    %1301 = vmatpush1.msra.mxu0 0.0
    %1302 = vmatprep.subr.mxu0 0.0
    %1303 = vmatpush1.msra.mxu0 0.0
    %1304 = vmatprep.subr.mxu0 0.0
    %1305 = vmatpush1.msra.mxu0 0.0
    %1306 = vmatprep.subr.mxu0 0.0
    %1307 = vmatpush1.msra.mxu0 0.0
    %1308 = vmatprep.subr.mxu0 0.0
    %1309 = vmatpush1.msra.mxu0 0.0
    %1310 = vmatprep.subr.mxu0 0.0
    %1311 = vmatpush1.msra.mxu0 0.0
    %1312 = vmatprep.subr.mxu0 0.0
    %1313 = vmatpush1.msra.mxu0 0.0
    %1314 = vmatprep.subr.mxu0 0.0
    %1315 = vmatpush1.msra.mxu0 0.0
    %1316 = vmatprep.subr.mxu0 0.0
    %1317 = vmatpush1.msra.mxu0 0.0
    %1318 = vmatprep.subr.mxu0 0.0
    %1319 = vmatpush1.msra.mxu0 0.0
    %1320 = vmatprep.subr.mxu0 0.0
    %1321 = vmatpush1.msra.mxu0 0.0
    %1322 = vmatprep.subr.mxu0 0.0
    %1323 = vmatpush1.msra.mxu0 0.0
    %1324 = vmatprep.subr.mxu0 0.0
    %1325 = vmatpush1.msra.mxu0 0.0
    %1326 = vmatprep.subr.mxu0 0.0
    %1327 = vmatpush1.msra.mxu0 0.0
    %1328 = vmatprep.subr.mxu0 0.0
    %1329 = vmatpush1.msra.mxu0 0.0
    %1330 = vmatprep.subr.mxu0 0.0
    %1331 = vmatpush1.msra.mxu0 0.0
    %1332 = vmatprep.subr.mxu0 0.0
    %1333 = vmatpush1.msra.mxu0 0.0
    %1334 = vmatprep.subr.mxu0 0.0
    %1335 = vmatpush1.msra.mxu0 0.0
    %1336 = vmatprep.subr.mxu0 0.0
    %1337 = vmatpush1.msra.mxu0 0.0
    %1338 = vmatprep.subr.mxu0 0.0
    %1339 = vmatpush1.msra.mxu0 0.0
    %1340 = vmatprep.mubr.f32.mxu0 0.0
    %1341 = vmatmul.mubr.f32.gmra.mrb[0].mxu0 %v1271
    %v1342 = vpop.f32.mrb[0].mxu0
    %v1343 = vadd.f32 0.0, %v1342
    %v1344 = vpop.f32.mrb[0].mxu0
    %1345 = vmatprep.mubr.f32.mxu0 0.0
    %1346 = vmatmul.mubr.f32.gmra.mrb[0].mxu0 %v1274
    %v1347 = vpop.f32.mrb[0].mxu0
    %v1348 = vadd.f32 0.0, %v1347
    %v1349 = vpop.f32.mrb[0].mxu0
    %1350 = vdwg.mxu0
    %v1351 = vld [vmem:[#allocation7 + $0x10] sm:$0xff]
    %v1353 = vsel %vm357, %v1343, 0
    %v1356 = vsel %vm357, %v1348, 0
    %1358 = vmatprep.subr.mxu0 0.0
    %1359 = vmatpush1.msra.mxu0 %v1351
    %1360 = vmatprep.subr.mxu0 0.0
    %1361 = vmatpush1.msra.mxu0 0.0
    %1362 = vmatprep.subr.mxu0 0.0
    %1363 = vmatpush1.msra.mxu0 0.0
    %1364 = vmatprep.subr.mxu0 0.0
    %1365 = vmatpush1.msra.mxu0 0.0
    %1366 = vmatprep.subr.mxu0 0.0
    %1367 = vmatpush1.msra.mxu0 0.0
    %1368 = vmatprep.subr.mxu0 0.0
    %1369 = vmatpush1.msra.mxu0 0.0
    %1370 = vmatprep.subr.mxu0 0.0
    %1371 = vmatpush1.msra.mxu0 0.0
    %1372 = vmatprep.subr.mxu0 0.0
    %1373 = vmatpush1.msra.mxu0 0.0
    %1374 = vmatprep.subr.mxu0 0.0
    %1375 = vmatpush1.msra.mxu0 0.0
    %1376 = vmatprep.subr.mxu0 0.0
    %1377 = vmatpush1.msra.mxu0 0.0
    %1378 = vmatprep.subr.mxu0 0.0
    %1379 = vmatpush1.msra.mxu0 0.0
    %1380 = vmatprep.subr.mxu0 0.0
    %1381 = vmatpush1.msra.mxu0 0.0
    %1382 = vmatprep.subr.mxu0 0.0
    %1383 = vmatpush1.msra.mxu0 0.0
    %1384 = vmatprep.subr.mxu0 0.0
    %1385 = vmatpush1.msra.mxu0 0.0
    %1386 = vmatprep.subr.mxu0 0.0
    %1387 = vmatpush1.msra.mxu0 0.0
    %1388 = vmatprep.subr.mxu0 0.0
    %1389 = vmatpush1.msra.mxu0 0.0
    %1390 = vmatprep.subr.mxu0 0.0
    %1391 = vmatpush1.msra.mxu0 0.0
    %1392 = vmatprep.subr.mxu0 0.0
    %1393 = vmatpush1.msra.mxu0 0.0
    %1394 = vmatprep.subr.mxu0 0.0
    %1395 = vmatpush1.msra.mxu0 0.0
    %1396 = vmatprep.subr.mxu0 0.0
    %1397 = vmatpush1.msra.mxu0 0.0
    %1398 = vmatprep.subr.mxu0 0.0
    %1399 = vmatpush1.msra.mxu0 0.0
    %1400 = vmatprep.subr.mxu0 0.0
    %1401 = vmatpush1.msra.mxu0 0.0
    %1402 = vmatprep.subr.mxu0 0.0
    %1403 = vmatpush1.msra.mxu0 0.0
    %1404 = vmatprep.subr.mxu0 0.0
    %1405 = vmatpush1.msra.mxu0 0.0
    %1406 = vmatprep.subr.mxu0 0.0
    %1407 = vmatpush1.msra.mxu0 0.0
    %1408 = vmatprep.subr.mxu0 0.0
    %1409 = vmatpush1.msra.mxu0 0.0
    %1410 = vmatprep.subr.mxu0 0.0
    %1411 = vmatpush1.msra.mxu0 0.0
    %1412 = vmatprep.subr.mxu0 0.0
    %1413 = vmatpush1.msra.mxu0 0.0
    %1414 = vmatprep.subr.mxu0 0.0
    %1415 = vmatpush1.msra.mxu0 0.0
    %1416 = vmatprep.subr.mxu0 0.0
    %1417 = vmatpush1.msra.mxu0 0.0
    %1418 = vmatprep.subr.mxu0 0.0
    %1419 = vmatpush1.msra.mxu0 0.0
    %1420 = vmatprep.subr.mxu0 0.0
    %1421 = vmatpush1.msra.mxu0 0.0
    %1422 = vmatprep.mubr.f32.mxu0 0.0
    %1423 = vmatmul.mubr.f32.gmra.mrb[0].mxu0 %v1353
    %v1424 = vpop.f32.mrb[0].mxu0
    %v1425 = vadd.f32 0.0, %v1424
    %v1426 = vpop.f32.mrb[0].mxu0
    %1427 = vmatprep.mubr.f32.mxu0 0.0
    %1428 = vmatmul.mubr.f32.gmra.mrb[0].mxu0 %v1356
    %v1429 = vpop.f32.mrb[0].mxu0
    %v1430 = vadd.f32 0.0, %v1429
    %v1431 = vpop.f32.mrb[0].mxu0
    %1432 = vdwg.mxu0
    %v1433 = vadd.f32 %v1139, %v1425
    %v1434 = vadd.f32 %v1144, %v1430
    %1435 = vrot.lane.b32.xlu0 %v568, 104
    %v1436 = vpop.permute.xlu0 %1435
    %1437 = vrot.lane.b32.xlu0 %v573, 104
    %v1438 = vpop.permute.xlu0 %1437
    %1439 = vrot.lane.b32.xlu0 %v568, 72
    %v1440 = vpop.permute.xlu0 %1439
    %1441 = vrot.lane.b32.xlu0 %v573, 72
    %v1442 = vpop.permute.xlu0 %1441
    %v1443 = vsel %vm357, %v1436, 0
    %v1445 = vsel %vm357, %v1438, 0
    %v1447 = vsel %vm357, %v1440, 0
    %v1449 = vsel %vm357, %v1442, 0
    %1451 = vmatprep.subr.mxu0 0.0
    %1452 = vmatpush1.xpose.msra.mxu0 %v1447
    %1453 = vmatprep.subr.mxu0 0.0
    %1454 = vmatpush1.xpose.msra.mxu0 %v1449
    %1455 = vmatprep.subr.mxu0 0.0
    %1456 = vmatpush1.xpose.msra.mxu0 0.0
    %1457 = vmatprep.subr.mxu0 0.0
    %1458 = vmatpush1.xpose.msra.mxu0 0.0
    %1459 = vmatprep.subr.mxu0 0.0
    %1460 = vmatpush1.xpose.msra.mxu0 0.0
    %1461 = vmatprep.subr.mxu0 0.0
    %1462 = vmatpush1.xpose.msra.mxu0 0.0
    %1463 = vmatprep.subr.mxu0 0.0
    %1464 = vmatpush1.xpose.msra.mxu0 0.0
    %1465 = vmatprep.subr.mxu0 0.0
    %1466 = vmatpush1.xpose.msra.mxu0 0.0
    %1467 = vmatprep.subr.mxu0 0.0
    %1468 = vmatpush1.xpose.msra.mxu0 0.0
    %1469 = vmatprep.subr.mxu0 0.0
    %1470 = vmatpush1.xpose.msra.mxu0 0.0
    %1471 = vmatprep.subr.mxu0 0.0
    %1472 = vmatpush1.xpose.msra.mxu0 0.0
    %1473 = vmatprep.subr.mxu0 0.0
    %1474 = vmatpush1.xpose.msra.mxu0 0.0
    %1475 = vmatprep.subr.mxu0 0.0
    %1476 = vmatpush1.xpose.msra.mxu0 0.0
    %1477 = vmatprep.subr.mxu0 0.0
    %1478 = vmatpush1.xpose.msra.mxu0 0.0
    %1479 = vmatprep.subr.mxu0 0.0
    %1480 = vmatpush1.xpose.msra.mxu0 0.0
    %1481 = vmatprep.subr.mxu0 0.0
    %1482 = vmatpush1.xpose.msra.mxu0 0.0
    %1483 = vmatprep.subr.mxu0 0.0
    %1484 = vmatpush1.xpose.msra.mxu0 0.0
    %1485 = vmatprep.subr.mxu0 0.0
    %1486 = vmatpush1.xpose.msra.mxu0 0.0
    %1487 = vmatprep.subr.mxu0 0.0
    %1488 = vmatpush1.xpose.msra.mxu0 0.0
    %1489 = vmatprep.subr.mxu0 0.0
    %1490 = vmatpush1.xpose.msra.mxu0 0.0
    %1491 = vmatprep.subr.mxu0 0.0
    %1492 = vmatpush1.xpose.msra.mxu0 0.0
    %1493 = vmatprep.subr.mxu0 0.0
    %1494 = vmatpush1.xpose.msra.mxu0 0.0
    %1495 = vmatprep.subr.mxu0 0.0
    %1496 = vmatpush1.xpose.msra.mxu0 0.0
    %1497 = vmatprep.subr.mxu0 0.0
    %1498 = vmatpush1.xpose.msra.mxu0 0.0
    %1499 = vmatprep.subr.mxu0 0.0
    %1500 = vmatpush1.xpose.msra.mxu0 0.0
    %1501 = vmatprep.subr.mxu0 0.0
    %1502 = vmatpush1.xpose.msra.mxu0 0.0
    %1503 = vmatprep.subr.mxu0 0.0
    %1504 = vmatpush1.xpose.msra.mxu0 0.0
    %1505 = vmatprep.subr.mxu0 0.0
    %1506 = vmatpush1.xpose.msra.mxu0 0.0
    %1507 = vmatprep.subr.mxu0 0.0
    %1508 = vmatpush1.xpose.msra.mxu0 0.0
    %1509 = vmatprep.subr.mxu0 0.0
    %1510 = vmatpush1.xpose.msra.mxu0 0.0
    %1511 = vmatprep.subr.mxu0 0.0
    %1512 = vmatpush1.xpose.msra.mxu0 0.0
    %1513 = vmatprep.subr.mxu0 0.0
    %1514 = vmatpush1.xpose.msra.mxu0 0.0
    %1515 = vmatprep.mubr.f32.mxu0 0.0
    %1516 = vmatmul.mubr.f32.gmra.mrb[0].mxu0 %v1443
    %v1517 = vpop.f32.mrb[0].mxu0
    %v1518 = vadd.f32 0.0, %v1517
    %v1519 = vpop.f32.mrb[0].mxu0
    %1520 = vmatprep.mubr.f32.mxu0 0.0
    %1521 = vmatmul.mubr.f32.gmra.mrb[0].mxu0 %v1445
    %v1522 = vpop.f32.mrb[0].mxu0
    %v1523 = vadd.f32 0.0, %v1522
    %v1524 = vpop.f32.mrb[0].mxu0
    %1525 = vdwg.mxu0
    %v1526 = vmul.f32 %v1518, 0.35355338
    %v1527 = vmul.f32 %v1523, 0.35355338
    %v1528 = vadd.f32 %v1526, %v345
    %v1529 = vadd.f32 %v1527, %v346
    %v1530 = vsel %vm669, %v1528, -inf
    %1531 = vmax.xlane.f32.xlu0 %v1530
    %v1532 = vpop.xlane.xlu0 %1531
    %v1533 = vsel %vm669, %v1529, -inf
    %1534 = vmax.xlane.f32.xlu0 %v1533
    %v1535 = vpop.xlane.xlu0 %1534
    %v1536 = vsub.f32 %v1528, %v1532
    %v1537 = vsub.f32 %v1529, %v1535
    %v1538 = vmul.f32 %v1536, 1.442695
    %v1539 = vpow.pop %v1538
    %v1540 = vmul.f32 %v1537, 1.442695
    %v1541 = vpow.pop %v1540
    %v1542 = vsel %vm669, %v1539, 0.0
    %1543 = vadd.xlane.f32.xlu0 %v1542
    %v1544 = vpop.xlane.xlu0 %1543
    %v1545 = vsel %vm669, %v1541, 0.0
    %1546 = vadd.xlane.f32.xlu0 %v1545
    %v1547 = vpop.xlane.xlu0 %1546
    %v1548 = vrcp.pop %v1544
    %v1549 = vrcp.pop %v1547
    %v1550 = vmul.f32 %v1539, %v1548
    %v1551 = vmul.f32 %v1541, %v1549
    %1552 = vrot.lane.b32.xlu0 %v568, 40
    %v1553 = vpop.permute.xlu0 %1552
    %1554 = vrot.lane.b32.xlu0 %v573, 40
    %v1555 = vpop.permute.xlu0 %1554
    %v1559 = vsel %vm669, %v1550, 0
    %v1562 = vsel %vm669, %v1551, 0
    %1564 = vmatprep.subr.mxu0 0.0
    %1565 = vmatpush1.msra.mxu0 %v1553
    %1566 = vmatprep.subr.mxu0 0.0
    %1567 = vmatpush1.msra.mxu0 %v1555
    %1568 = vmatprep.subr.mxu0 0.0
    %1569 = vmatpush1.msra.mxu0 0.0
    %1570 = vmatprep.subr.mxu0 0.0
    %1571 = vmatpush1.msra.mxu0 0.0
    %1572 = vmatprep.subr.mxu0 0.0
    %1573 = vmatpush1.msra.mxu0 0.0
    %1574 = vmatprep.subr.mxu0 0.0
    %1575 = vmatpush1.msra.mxu0 0.0
    %1576 = vmatprep.subr.mxu0 0.0
    %1577 = vmatpush1.msra.mxu0 0.0
    %1578 = vmatprep.subr.mxu0 0.0
    %1579 = vmatpush1.msra.mxu0 0.0
    %1580 = vmatprep.subr.mxu0 0.0
    %1581 = vmatpush1.msra.mxu0 0.0
    %1582 = vmatprep.subr.mxu0 0.0
    %1583 = vmatpush1.msra.mxu0 0.0
    %1584 = vmatprep.subr.mxu0 0.0
    %1585 = vmatpush1.msra.mxu0 0.0
    %1586 = vmatprep.subr.mxu0 0.0
    %1587 = vmatpush1.msra.mxu0 0.0
    %1588 = vmatprep.subr.mxu0 0.0
    %1589 = vmatpush1.msra.mxu0 0.0
    %1590 = vmatprep.subr.mxu0 0.0
    %1591 = vmatpush1.msra.mxu0 0.0
    %1592 = vmatprep.subr.mxu0 0.0
    %1593 = vmatpush1.msra.mxu0 0.0
    %1594 = vmatprep.subr.mxu0 0.0
    %1595 = vmatpush1.msra.mxu0 0.0
    %1596 = vmatprep.subr.mxu0 0.0
    %1597 = vmatpush1.msra.mxu0 0.0
    %1598 = vmatprep.subr.mxu0 0.0
    %1599 = vmatpush1.msra.mxu0 0.0
    %1600 = vmatprep.subr.mxu0 0.0
    %1601 = vmatpush1.msra.mxu0 0.0
    %1602 = vmatprep.subr.mxu0 0.0
    %1603 = vmatpush1.msra.mxu0 0.0
    %1604 = vmatprep.subr.mxu0 0.0
    %1605 = vmatpush1.msra.mxu0 0.0
    %1606 = vmatprep.subr.mxu0 0.0
    %1607 = vmatpush1.msra.mxu0 0.0
    %1608 = vmatprep.subr.mxu0 0.0
    %1609 = vmatpush1.msra.mxu0 0.0
    %1610 = vmatprep.subr.mxu0 0.0
    %1611 = vmatpush1.msra.mxu0 0.0
    %1612 = vmatprep.subr.mxu0 0.0
    %1613 = vmatpush1.msra.mxu0 0.0
    %1614 = vmatprep.subr.mxu0 0.0
    %1615 = vmatpush1.msra.mxu0 0.0
    %1616 = vmatprep.subr.mxu0 0.0
    %1617 = vmatpush1.msra.mxu0 0.0
    %1618 = vmatprep.subr.mxu0 0.0
    %1619 = vmatpush1.msra.mxu0 0.0
    %1620 = vmatprep.subr.mxu0 0.0
    %1621 = vmatpush1.msra.mxu0 0.0
    %1622 = vmatprep.subr.mxu0 0.0
    %1623 = vmatpush1.msra.mxu0 0.0
    %1624 = vmatprep.subr.mxu0 0.0
    %1625 = vmatpush1.msra.mxu0 0.0
    %1626 = vmatprep.subr.mxu0 0.0
    %1627 = vmatpush1.msra.mxu0 0.0
    %1628 = vmatprep.mubr.f32.mxu0 0.0
    %1629 = vmatmul.mubr.f32.gmra.mrb[0].mxu0 %v1559
    %v1630 = vpop.f32.mrb[0].mxu0
    %v1631 = vadd.f32 0.0, %v1630
    %v1632 = vpop.f32.mrb[0].mxu0
    %1633 = vmatprep.mubr.f32.mxu0 0.0
    %1634 = vmatmul.mubr.f32.gmra.mrb[0].mxu0 %v1562
    %v1635 = vpop.f32.mrb[0].mxu0
    %v1636 = vadd.f32 0.0, %v1635
    %v1637 = vpop.f32.mrb[0].mxu0
    %1638 = vdwg.mxu0
    %v1639 = vld [vmem:[#allocation7 + $0x18] sm:$0xff]
    %v1641 = vsel %vm357, %v1631, 0
    %v1644 = vsel %vm357, %v1636, 0
    %1646 = vmatprep.subr.mxu0 0.0
    %1647 = vmatpush1.msra.mxu0 %v1639
    %1648 = vmatprep.subr.mxu0 0.0
    %1649 = vmatpush1.msra.mxu0 0.0
    %1650 = vmatprep.subr.mxu0 0.0
    %1651 = vmatpush1.msra.mxu0 0.0
    %1652 = vmatprep.subr.mxu0 0.0
    %1653 = vmatpush1.msra.mxu0 0.0
    %1654 = vmatprep.subr.mxu0 0.0
    %1655 = vmatpush1.msra.mxu0 0.0
    %1656 = vmatprep.subr.mxu0 0.0
    %1657 = vmatpush1.msra.mxu0 0.0
    %1658 = vmatprep.subr.mxu0 0.0
    %1659 = vmatpush1.msra.mxu0 0.0
    %1660 = vmatprep.subr.mxu0 0.0
    %1661 = vmatpush1.msra.mxu0 0.0
    %1662 = vmatprep.subr.mxu0 0.0
    %1663 = vmatpush1.msra.mxu0 0.0
    %1664 = vmatprep.subr.mxu0 0.0
    %1665 = vmatpush1.msra.mxu0 0.0
    %1666 = vmatprep.subr.mxu0 0.0
    %1667 = vmatpush1.msra.mxu0 0.0
    %1668 = vmatprep.subr.mxu0 0.0
    %1669 = vmatpush1.msra.mxu0 0.0
    %1670 = vmatprep.subr.mxu0 0.0
    %1671 = vmatpush1.msra.mxu0 0.0
    %1672 = vmatprep.subr.mxu0 0.0
    %1673 = vmatpush1.msra.mxu0 0.0
    %1674 = vmatprep.subr.mxu0 0.0
    %1675 = vmatpush1.msra.mxu0 0.0
    %1676 = vmatprep.subr.mxu0 0.0
    %1677 = vmatpush1.msra.mxu0 0.0
    %1678 = vmatprep.subr.mxu0 0.0
    %1679 = vmatpush1.msra.mxu0 0.0
    %1680 = vmatprep.subr.mxu0 0.0
    %1681 = vmatpush1.msra.mxu0 0.0
    %1682 = vmatprep.subr.mxu0 0.0
    %1683 = vmatpush1.msra.mxu0 0.0
    %1684 = vmatprep.subr.mxu0 0.0
    %1685 = vmatpush1.msra.mxu0 0.0
    %1686 = vmatprep.subr.mxu0 0.0
    %1687 = vmatpush1.msra.mxu0 0.0
    %1688 = vmatprep.subr.mxu0 0.0
    %1689 = vmatpush1.msra.mxu0 0.0
    %1690 = vmatprep.subr.mxu0 0.0
    %1691 = vmatpush1.msra.mxu0 0.0
    %1692 = vmatprep.subr.mxu0 0.0
    %1693 = vmatpush1.msra.mxu0 0.0
    %1694 = vmatprep.subr.mxu0 0.0
    %1695 = vmatpush1.msra.mxu0 0.0
    %1696 = vmatprep.subr.mxu0 0.0
    %1697 = vmatpush1.msra.mxu0 0.0
    %1698 = vmatprep.subr.mxu0 0.0
    %1699 = vmatpush1.msra.mxu0 0.0
    %1700 = vmatprep.subr.mxu0 0.0
    %1701 = vmatpush1.msra.mxu0 0.0
    %1702 = vmatprep.subr.mxu0 0.0
    %1703 = vmatpush1.msra.mxu0 0.0
    %1704 = vmatprep.subr.mxu0 0.0
    %1705 = vmatpush1.msra.mxu0 0.0
    %1706 = vmatprep.subr.mxu0 0.0
    %1707 = vmatpush1.msra.mxu0 0.0
    %1708 = vmatprep.subr.mxu0 0.0
    %1709 = vmatpush1.msra.mxu0 0.0
    %1710 = vmatprep.mubr.f32.mxu0 0.0
    %1711 = vmatmul.mubr.f32.gmra.mrb[0].mxu0 %v1641
    %v1712 = vpop.f32.mrb[0].mxu0
    %v1713 = vadd.f32 0.0, %v1712
    %v1714 = vpop.f32.mrb[0].mxu0
    %1715 = vmatprep.mubr.f32.mxu0 0.0
    %1716 = vmatmul.mubr.f32.gmra.mrb[0].mxu0 %v1644
    %v1717 = vpop.f32.mrb[0].mxu0
    %v1718 = vadd.f32 0.0, %v1717
    %v1719 = vpop.f32.mrb[0].mxu0
    %1720 = vdwg.mxu0
    %v1721 = vadd.f32 %v1433, %v1713
    %v1722 = vadd.f32 %v1434, %v1718
    %v1723 = vadd.f32 %v431, %v1721
    %v1724 = vadd.f32 %v436, %v1722
    %v1725 = vld [vmem:[%s10] sm:$0x1]
    %v1727 = vlaneseq
    %v1728 = vshrl.u32 %v1727, 7
    %v1729 = vsub.s32 0, %v1728
    %v1730 = vrot.slane %v1725, %v1729
    %v1732 = vadd.f32 %v1723, %v1730
    %v1733 = vadd.f32 %v1724, %v1730
    %v1734 = vld [vmem:[%s11] sm:$0x1]
    %v1735 = vld [vmem:[%s12] sm:$0x1]
    %v1736 = vsel %vm254, %v1732, 0.0
    %1737 = vadd.xlane.f32.xlu0 %v1736
    %v1738 = vpop.xlane.xlu0 %1737
    %v1739 = vsel %vm254, %v1733, 0.0
    %1740 = vadd.xlane.f32.xlu0 %v1739
    %v1741 = vpop.xlane.xlu0 %1740
    %v1742 = vmul.f32 %v1738, %v447
    %v1743 = vmul.f32 %v1741, %v447
    %v1744 = vsub.f32 %v1732, %v1742
    %v1745 = vsub.f32 %v1733, %v1743
    %v1746 = vmul.f32 %v1744, %v1744
    %v1747 = vmul.f32 %v1745, %v1745
    %v1748 = vsel %vm254, %v1746, 0.0
    %1749 = vadd.xlane.f32.xlu0 %v1748
    %v1750 = vpop.xlane.xlu0 %1749
    %v1751 = vsel %vm254, %v1747, 0.0
    %1752 = vadd.xlane.f32.xlu0 %v1751
    %v1753 = vpop.xlane.xlu0 %1752
    %v1754 = vmul.f32 %v1750, %v447
    %v1755 = vmul.f32 %v1753, %v447
    %v1756 = vadd.f32 %v1754, 1e-05
    %v1757 = vadd.f32 %v1755, 1e-05
    %v1758 = vrsqrt.pop %v1756
    %v1759 = vrsqrt.pop %v1757
    %v1760 = vmul.f32 %v1744, %v1758
    %v1761 = vmul.f32 %v1745, %v1759
    %v1763 = vlaneseq
    %v1764 = vshrl.u32 %v1763, 7
    %v1765 = vsub.s32 0, %v1764
    %v1766 = vrot.slane %v1734, %v1765
    %v1768 = vmul.f32 %v1760, %v1766
    %v1769 = vmul.f32 %v1761, %v1766
    %v1771 = vlaneseq
    %v1772 = vshrl.u32 %v1771, 7
    %v1773 = vsub.s32 0, %v1772
    %v1774 = vrot.slane %v1735, %v1773
    %v1776 = vadd.f32 %v1768, %v1774
    %v1777 = vadd.f32 %v1769, %v1774
    %v1778 = vld [vmem:[#allocation8] sm:$0xff]
    %v1779 = vld [vmem:[#allocation8 + $0x8] sm:$0xff]
    %v1780 = vld [vmem:[#allocation8 + $0x10] sm:$0xff]
    %v1781 = vld [vmem:[#allocation8 + $0x18] sm:$0xff]
    %v1782 = vld [vmem:[%s14] sm:$0x1]
    %v1784 = vlaneseq
    %v1785 = vshrl.u32 %v1784, 7
    %v1786 = vsub.s32 0, %v1785
    %v1787 = vrot.slane %v1782, %v1786
    %v1790 = vsel %vm254, %v1776, 0
    %v1793 = vsel %vm254, %v1777, 0
    %1795 = vmatprep.subr.mxu0 0.0
    %1796 = vmatpush1.msra.mxu0 %v1778
    %1797 = vmatprep.subr.mxu0 0.0
    %1798 = vmatpush1.msra.mxu0 %v1779
    %1799 = vmatprep.subr.mxu0 0.0
    %1800 = vmatpush1.msra.mxu0 %v1780
    %1801 = vmatprep.subr.mxu0 0.0
    %1802 = vmatpush1.msra.mxu0 %v1781
    %1803 = vmatprep.subr.mxu0 0.0
    %1804 = vmatpush1.msra.mxu0 0.0
    %1805 = vmatprep.subr.mxu0 0.0
    %1806 = vmatpush1.msra.mxu0 0.0
    %1807 = vmatprep.subr.mxu0 0.0
    %1808 = vmatpush1.msra.mxu0 0.0
    %1809 = vmatprep.subr.mxu0 0.0
    %1810 = vmatpush1.msra.mxu0 0.0
    %1811 = vmatprep.subr.mxu0 0.0
    %1812 = vmatpush1.msra.mxu0 0.0
    %1813 = vmatprep.subr.mxu0 0.0
    %1814 = vmatpush1.msra.mxu0 0.0
    %1815 = vmatprep.subr.mxu0 0.0
    %1816 = vmatpush1.msra.mxu0 0.0
    %1817 = vmatprep.subr.mxu0 0.0
    %1818 = vmatpush1.msra.mxu0 0.0
    %1819 = vmatprep.subr.mxu0 0.0
    %1820 = vmatpush1.msra.mxu0 0.0
    %1821 = vmatprep.subr.mxu0 0.0
    %1822 = vmatpush1.msra.mxu0 0.0
    %1823 = vmatprep.subr.mxu0 0.0
    %1824 = vmatpush1.msra.mxu0 0.0
    %1825 = vmatprep.subr.mxu0 0.0
    %1826 = vmatpush1.msra.mxu0 0.0
    %1827 = vmatprep.subr.mxu0 0.0
    %1828 = vmatpush1.msra.mxu0 0.0
    %1829 = vmatprep.subr.mxu0 0.0
    %1830 = vmatpush1.msra.mxu0 0.0
    %1831 = vmatprep.subr.mxu0 0.0
    %1832 = vmatpush1.msra.mxu0 0.0
    %1833 = vmatprep.subr.mxu0 0.0
    %1834 = vmatpush1.msra.mxu0 0.0
    %1835 = vmatprep.subr.mxu0 0.0
    %1836 = vmatpush1.msra.mxu0 0.0
    %1837 = vmatprep.subr.mxu0 0.0
    %1838 = vmatpush1.msra.mxu0 0.0
    %1839 = vmatprep.subr.mxu0 0.0
    %1840 = vmatpush1.msra.mxu0 0.0
    %1841 = vmatprep.subr.mxu0 0.0
    %1842 = vmatpush1.msra.mxu0 0.0
    %1843 = vmatprep.subr.mxu0 0.0
    %1844 = vmatpush1.msra.mxu0 0.0
    %1845 = vmatprep.subr.mxu0 0.0
    %1846 = vmatpush1.msra.mxu0 0.0
    %1847 = vmatprep.subr.mxu0 0.0
    %1848 = vmatpush1.msra.mxu0 0.0
    %1849 = vmatprep.subr.mxu0 0.0
    %1850 = vmatpush1.msra.mxu0 0.0
    %1851 = vmatprep.subr.mxu0 0.0
    %1852 = vmatpush1.msra.mxu0 0.0
    %1853 = vmatprep.subr.mxu0 0.0
    %1854 = vmatpush1.msra.mxu0 0.0
    %1855 = vmatprep.subr.mxu0 0.0
    %1856 = vmatpush1.msra.mxu0 0.0
    %1857 = vmatprep.subr.mxu0 0.0
    %1858 = vmatpush1.msra.mxu0 0.0
    %1859 = vmatprep.mubr.f32.mxu0 0.0
    %1860 = vmatmul.mubr.f32.gmra.mrb[0].mxu0 %v1790
    %v1861 = vpop.f32.mrb[0].mxu0
    %v1862 = vadd.f32 %v1787, %v1861
    %v1863 = vpop.f32.mrb[0].mxu0
    %1864 = vmatprep.mubr.f32.mxu0 0.0
    %1865 = vmatmul.mubr.f32.gmra.mrb[0].mxu0 %v1793
    %v1866 = vpop.f32.mrb[0].mxu0
    %v1867 = vadd.f32 %v1787, %v1866
    %v1868 = vpop.f32.mrb[0].mxu0
    %1869 = vdwg.mxu0
    %v1870 = vmul.f32 %v1862, 0.5
    %v1871 = vmul.f32 %v1867, 0.5
    %v1872 = vmul.f32 %v1862, 0.044715
    %v1873 = vmul.f32 %v1867, 0.044715
    %v1874 = vmul.f32 %v1872, %v1862
    %v1875 = vmul.f32 %v1873, %v1867
    %v1876 = vmul.f32 %v1874, %v1862
    %v1877 = vmul.f32 %v1875, %v1867
    %v1878 = vadd.f32 %v1862, %v1876
    %v1879 = vadd.f32 %v1867, %v1877
    %v1880 = vmul.f32 %v1878, 0.7978846
    %v1881 = vmul.f32 %v1879, 0.7978846
    %v1882 = vtanh.pop %v1880
    %v1883 = vtanh.pop %v1881
    %v1884 = vadd.f32 %v1882, 1.0
    %v1885 = vadd.f32 %v1883, 1.0
    %v1886 = vmul.f32 %v1870, %v1884
    %v1887 = vmul.f32 %v1871, %v1885
    %v1888 = vld [vmem:[#allocation10] sm:$0xff]
    %v1889 = vld [vmem:[#allocation10 + $0x8] sm:$0xff]
    %v1890 = vld [vmem:[#allocation10 + $0x10] sm:$0xff]
    %v1891 = vld [vmem:[#allocation10 + $0x18] sm:$0xff]
    %v1892 = vld [vmem:[#allocation10 + $0x20] sm:$0xff]
    %v1893 = vld [vmem:[#allocation10 + $0x28] sm:$0xff]
    %v1894 = vld [vmem:[#allocation10 + $0x30] sm:$0xff]
    %v1895 = vld [vmem:[#allocation10 + $0x38] sm:$0xff]
    %v1896 = vld [vmem:[#allocation10 + $0x40] sm:$0xff]
    %v1897 = vld [vmem:[#allocation10 + $0x48] sm:$0xff]
    %v1898 = vld [vmem:[#allocation10 + $0x50] sm:$0xff]
    %v1899 = vld [vmem:[#allocation10 + $0x58] sm:$0xff]
    %v1900 = vld [vmem:[#allocation10 + $0x60] sm:$0xff]
    %v1901 = vld [vmem:[#allocation10 + $0x68] sm:$0xff]
    %v1902 = vld [vmem:[#allocation10 + $0x70] sm:$0xff]
    %v1903 = vld [vmem:[#allocation10 + $0x78] sm:$0xff]
    %1904 = vmatprep.subr.mxu0 0.0
    %1905 = vmatpush1.msra.mxu0 %v1888
    %1906 = vmatprep.subr.mxu0 0.0
    %1907 = vmatpush1.msra.mxu0 %v1889
    %1908 = vmatprep.subr.mxu0 0.0
    %1909 = vmatpush1.msra.mxu0 %v1890
    %1910 = vmatprep.subr.mxu0 0.0
    %1911 = vmatpush1.msra.mxu0 %v1891
    %1912 = vmatprep.subr.mxu0 0.0
    %1913 = vmatpush1.msra.mxu0 %v1892
    %1914 = vmatprep.subr.mxu0 0.0
    %1915 = vmatpush1.msra.mxu0 %v1893
    %1916 = vmatprep.subr.mxu0 0.0
    %1917 = vmatpush1.msra.mxu0 %v1894
    %1918 = vmatprep.subr.mxu0 0.0
    %1919 = vmatpush1.msra.mxu0 %v1895
    %1920 = vmatprep.subr.mxu0 0.0
    %1921 = vmatpush1.msra.mxu0 %v1896
    %1922 = vmatprep.subr.mxu0 0.0
    %1923 = vmatpush1.msra.mxu0 %v1897
    %1924 = vmatprep.subr.mxu0 0.0
    %1925 = vmatpush1.msra.mxu0 %v1898
    %1926 = vmatprep.subr.mxu0 0.0
    %1927 = vmatpush1.msra.mxu0 %v1899
    %1928 = vmatprep.subr.mxu0 0.0
    %1929 = vmatpush1.msra.mxu0 %v1900
    %1930 = vmatprep.subr.mxu0 0.0
    %1931 = vmatpush1.msra.mxu0 %v1901
    %1932 = vmatprep.subr.mxu0 0.0
    %1933 = vmatpush1.msra.mxu0 %v1902
    %1934 = vmatprep.subr.mxu0 0.0
    %1935 = vmatpush1.msra.mxu0 %v1903
    %1936 = vmatprep.subr.mxu0 0.0
    %1937 = vmatpush1.msra.mxu0 0.0
    %1938 = vmatprep.subr.mxu0 0.0
    %1939 = vmatpush1.msra.mxu0 0.0
    %1940 = vmatprep.subr.mxu0 0.0
    %1941 = vmatpush1.msra.mxu0 0.0
    %1942 = vmatprep.subr.mxu0 0.0
    %1943 = vmatpush1.msra.mxu0 0.0
    %1944 = vmatprep.subr.mxu0 0.0
    %1945 = vmatpush1.msra.mxu0 0.0
    %1946 = vmatprep.subr.mxu0 0.0
    %1947 = vmatpush1.msra.mxu0 0.0
    %1948 = vmatprep.subr.mxu0 0.0
    %1949 = vmatpush1.msra.mxu0 0.0
    %1950 = vmatprep.subr.mxu0 0.0
    %1951 = vmatpush1.msra.mxu0 0.0
    %1952 = vmatprep.subr.mxu0 0.0
    %1953 = vmatpush1.msra.mxu0 0.0
    %1954 = vmatprep.subr.mxu0 0.0
    %1955 = vmatpush1.msra.mxu0 0.0
    %1956 = vmatprep.subr.mxu0 0.0
    %1957 = vmatpush1.msra.mxu0 0.0
    %1958 = vmatprep.subr.mxu0 0.0
    %1959 = vmatpush1.msra.mxu0 0.0
    %1960 = vmatprep.subr.mxu0 0.0
    %1961 = vmatpush1.msra.mxu0 0.0
    %1962 = vmatprep.subr.mxu0 0.0
    %1963 = vmatpush1.msra.mxu0 0.0
    %1964 = vmatprep.subr.mxu0 0.0
    %1965 = vmatpush1.msra.mxu0 0.0
    %1966 = vmatprep.subr.mxu0 0.0
    %1967 = vmatpush1.msra.mxu0 0.0
    %1968 = vmatprep.mubr.f32.mxu0 0.0
    %1969 = vmatmul.mubr.f32.gmra.mrb[0].mxu0 %v1886
    %v1970 = vpop.f32.mrb[0].mxu0
    %v1971 = vadd.f32 0.0, %v1970
    %v1972 = vpop.f32.mrb[0].mxu0
    %1973 = vmatprep.mubr.f32.mxu0 0.0
    %1974 = vmatmul.mubr.f32.gmra.mrb[0].mxu0 %v1887
    %v1975 = vpop.f32.mrb[0].mxu0
    %v1976 = vadd.f32 0.0, %v1975
    %v1977 = vpop.f32.mrb[0].mxu0
    %1978 = vdwg.mxu0
    %v1979 = vadd.f32 %v1732, %v1971
    %v1980 = vadd.f32 %v1733, %v1976
    %v1981 = vld [vmem:[%s16] sm:$0x1]
    %v1983 = vlaneseq
    %v1984 = vshrl.u32 %v1983, 7
    %v1985 = vsub.s32 0, %v1984
    %v1986 = vrot.slane %v1981, %v1985
    %v1988 = vadd.f32 %v1979, %v1986
    %v1989 = vadd.f32 %v1980, %v1986
    %s1990 = scalar_lea.vmem %s5, 1
    %v1991 = vld [vmem:[%s1990] sm:$0x1]
    %s1992 = scalar_lea.vmem %s6, 1
    %v1993 = vld [vmem:[%s1992] sm:$0x1]
    %v1994 = vsel %vm254, %v1988, 0.0
    %1995 = vadd.xlane.f32.xlu0 %v1994
    %v1996 = vpop.xlane.xlu0 %1995
    %v1997 = vsel %vm254, %v1989, 0.0
    %1998 = vadd.xlane.f32.xlu0 %v1997
    %v1999 = vpop.xlane.xlu0 %1998
    %v2000 = vmul.f32 %v1996, %v447
    %v2001 = vmul.f32 %v1999, %v447
    %v2002 = vsub.f32 %v1988, %v2000
    %v2003 = vsub.f32 %v1989, %v2001
    %v2004 = vmul.f32 %v2002, %v2002
    %v2005 = vmul.f32 %v2003, %v2003
    %v2006 = vsel %vm254, %v2004, 0.0
    %2007 = vadd.xlane.f32.xlu0 %v2006
    %v2008 = vpop.xlane.xlu0 %2007
    %v2009 = vsel %vm254, %v2005, 0.0
    %2010 = vadd.xlane.f32.xlu0 %v2009
    %v2011 = vpop.xlane.xlu0 %2010
    %v2012 = vmul.f32 %v2008, %v447
    %v2013 = vmul.f32 %v2011, %v447
    %v2014 = vadd.f32 %v2012, 1e-05
    %v2015 = vadd.f32 %v2013, 1e-05
    %v2016 = vrsqrt.pop %v2014
    %v2017 = vrsqrt.pop %v2015
    %v2018 = vmul.f32 %v2002, %v2016
    %v2019 = vmul.f32 %v2003, %v2017
    %v2021 = vlaneseq
    %v2022 = vshrl.u32 %v2021, 7
    %v2023 = vsub.s32 0, %v2022
    %v2024 = vrot.slane %v1991, %v2023
    %v2026 = vmul.f32 %v2018, %v2024
    %v2027 = vmul.f32 %v2019, %v2024
    %v2029 = vlaneseq
    %v2030 = vshrl.u32 %v2029, 7
    %v2031 = vsub.s32 0, %v2030
    %v2032 = vrot.slane %v1993, %v2031
    %v2034 = vadd.f32 %v2026, %v2032
    %v2035 = vadd.f32 %v2027, %v2032
    %s2036 = scalar_lea.vmem [#allocation5], 32
    %v2037 = vld [vmem:[%s2036] sm:$0xff]
    %v2038 = vld [vmem:[%s2036 + $0x8] sm:$0xff]
    %v2039 = vld [vmem:[%s2036 + $0x10] sm:$0xff]
    %v2040 = vld [vmem:[%s2036 + $0x18] sm:$0xff]
    %s2041 = scalar_lea.vmem %s8, 1
    %v2042 = vld [vmem:[%s2041] sm:$0x1]
    %v2044 = vlaneseq
    %v2045 = vshrl.u32 %v2044, 7
    %v2046 = vsub.s32 0, %v2045
    %v2047 = vrot.slane %v2042, %v2046
    %v2050 = vsel %vm254, %v2034, 0
    %v2053 = vsel %vm254, %v2035, 0
    %2055 = vmatprep.subr.mxu0 0.0
    %2056 = vmatpush1.msra.mxu0 %v2037
    %2057 = vmatprep.subr.mxu0 0.0
    %2058 = vmatpush1.msra.mxu0 %v2038
    %2059 = vmatprep.subr.mxu0 0.0
    %2060 = vmatpush1.msra.mxu0 %v2039
    %2061 = vmatprep.subr.mxu0 0.0
    %2062 = vmatpush1.msra.mxu0 %v2040
    %2063 = vmatprep.subr.mxu0 0.0
    %2064 = vmatpush1.msra.mxu0 0.0
    %2065 = vmatprep.subr.mxu0 0.0
    %2066 = vmatpush1.msra.mxu0 0.0
    %2067 = vmatprep.subr.mxu0 0.0
    %2068 = vmatpush1.msra.mxu0 0.0
    %2069 = vmatprep.subr.mxu0 0.0
    %2070 = vmatpush1.msra.mxu0 0.0
    %2071 = vmatprep.subr.mxu0 0.0
    %2072 = vmatpush1.msra.mxu0 0.0
    %2073 = vmatprep.subr.mxu0 0.0
    %2074 = vmatpush1.msra.mxu0 0.0
    %2075 = vmatprep.subr.mxu0 0.0
    %2076 = vmatpush1.msra.mxu0 0.0
    %2077 = vmatprep.subr.mxu0 0.0
    %2078 = vmatpush1.msra.mxu0 0.0
    %2079 = vmatprep.subr.mxu0 0.0
    %2080 = vmatpush1.msra.mxu0 0.0
    %2081 = vmatprep.subr.mxu0 0.0
    %2082 = vmatpush1.msra.mxu0 0.0
    %2083 = vmatprep.subr.mxu0 0.0
    %2084 = vmatpush1.msra.mxu0 0.0
    %2085 = vmatprep.subr.mxu0 0.0
    %2086 = vmatpush1.msra.mxu0 0.0
    %2087 = vmatprep.subr.mxu0 0.0
    %2088 = vmatpush1.msra.mxu0 0.0
    %2089 = vmatprep.subr.mxu0 0.0
    %2090 = vmatpush1.msra.mxu0 0.0
    %2091 = vmatprep.subr.mxu0 0.0
    %2092 = vmatpush1.msra.mxu0 0.0
    %2093 = vmatprep.subr.mxu0 0.0
    %2094 = vmatpush1.msra.mxu0 0.0
    %2095 = vmatprep.subr.mxu0 0.0
    %2096 = vmatpush1.msra.mxu0 0.0
    %2097 = vmatprep.subr.mxu0 0.0
    %2098 = vmatpush1.msra.mxu0 0.0
    %2099 = vmatprep.subr.mxu0 0.0
    %2100 = vmatpush1.msra.mxu0 0.0
    %2101 = vmatprep.subr.mxu0 0.0
    %2102 = vmatpush1.msra.mxu0 0.0
    %2103 = vmatprep.subr.mxu0 0.0
    %2104 = vmatpush1.msra.mxu0 0.0
    %2105 = vmatprep.subr.mxu0 0.0
    %2106 = vmatpush1.msra.mxu0 0.0
    %2107 = vmatprep.subr.mxu0 0.0
    %2108 = vmatpush1.msra.mxu0 0.0
    %2109 = vmatprep.subr.mxu0 0.0
    %2110 = vmatpush1.msra.mxu0 0.0
    %2111 = vmatprep.subr.mxu0 0.0
    %2112 = vmatpush1.msra.mxu0 0.0
    %2113 = vmatprep.subr.mxu0 0.0
    %2114 = vmatpush1.msra.mxu0 0.0
    %2115 = vmatprep.subr.mxu0 0.0
    %2116 = vmatpush1.msra.mxu0 0.0
    %2117 = vmatprep.subr.mxu0 0.0
    %2118 = vmatpush1.msra.mxu0 0.0
    %2119 = vmatprep.mubr.f32.mxu0 0.0
    %2120 = vmatmul.mubr.f32.gmra.mrb[0].mxu0 %v2050
    %v2121 = vpop.f32.mrb[0].mxu0
    %v2122 = vadd.f32 %v2047, %v2121
    %v2123 = vpop.f32.mrb[0].mxu0
    %2124 = vmatprep.mubr.f32.mxu0 0.0
    %2125 = vmatmul.mubr.f32.gmra.mrb[0].mxu0 %v2053
    %v2126 = vpop.f32.mrb[0].mxu0
    %v2127 = vadd.f32 %v2047, %v2126
    %v2128 = vpop.f32.mrb[0].mxu0
    %2129 = vdwg.mxu0
    %2132 = vrot.lane.b32.xlu0 %v2122, 96
    %v2133 = vpop.permute.xlu0 %2132
    %2134 = vrot.lane.b32.xlu0 %v2127, 96
    %v2135 = vpop.permute.xlu0 %2134
    %v2136 = vsel %vm357, %v2122, 0
    %v2138 = vsel %vm357, %v2127, 0
    %v2140 = vsel %vm357, %v2133, 0
    %v2142 = vsel %vm357, %v2135, 0
    %2144 = vmatprep.subr.mxu0 0.0
    %2145 = vmatpush1.xpose.msra.mxu0 %v2140
    %2146 = vmatprep.subr.mxu0 0.0
    %2147 = vmatpush1.xpose.msra.mxu0 %v2142
    %2148 = vmatprep.subr.mxu0 0.0
    %2149 = vmatpush1.xpose.msra.mxu0 0.0
    %2150 = vmatprep.subr.mxu0 0.0
    %2151 = vmatpush1.xpose.msra.mxu0 0.0
    %2152 = vmatprep.subr.mxu0 0.0
    %2153 = vmatpush1.xpose.msra.mxu0 0.0
    %2154 = vmatprep.subr.mxu0 0.0
    %2155 = vmatpush1.xpose.msra.mxu0 0.0
    %2156 = vmatprep.subr.mxu0 0.0
    %2157 = vmatpush1.xpose.msra.mxu0 0.0
    %2158 = vmatprep.subr.mxu0 0.0
    %2159 = vmatpush1.xpose.msra.mxu0 0.0
    %2160 = vmatprep.subr.mxu0 0.0
    %2161 = vmatpush1.xpose.msra.mxu0 0.0
    %2162 = vmatprep.subr.mxu0 0.0
    %2163 = vmatpush1.xpose.msra.mxu0 0.0
    %2164 = vmatprep.subr.mxu0 0.0
    %2165 = vmatpush1.xpose.msra.mxu0 0.0
    %2166 = vmatprep.subr.mxu0 0.0
    %2167 = vmatpush1.xpose.msra.mxu0 0.0
    %2168 = vmatprep.subr.mxu0 0.0
    %2169 = vmatpush1.xpose.msra.mxu0 0.0
    %2170 = vmatprep.subr.mxu0 0.0
    %2171 = vmatpush1.xpose.msra.mxu0 0.0
    %2172 = vmatprep.subr.mxu0 0.0
    %2173 = vmatpush1.xpose.msra.mxu0 0.0
    %2174 = vmatprep.subr.mxu0 0.0
    %2175 = vmatpush1.xpose.msra.mxu0 0.0
    %2176 = vmatprep.subr.mxu0 0.0
    %2177 = vmatpush1.xpose.msra.mxu0 0.0
    %2178 = vmatprep.subr.mxu0 0.0
    %2179 = vmatpush1.xpose.msra.mxu0 0.0
    %2180 = vmatprep.subr.mxu0 0.0
    %2181 = vmatpush1.xpose.msra.mxu0 0.0
    %2182 = vmatprep.subr.mxu0 0.0
    %2183 = vmatpush1.xpose.msra.mxu0 0.0
    %2184 = vmatprep.subr.mxu0 0.0
    %2185 = vmatpush1.xpose.msra.mxu0 0.0
    %2186 = vmatprep.subr.mxu0 0.0
    %2187 = vmatpush1.xpose.msra.mxu0 0.0
    %2188 = vmatprep.subr.mxu0 0.0
    %2189 = vmatpush1.xpose.msra.mxu0 0.0
    %2190 = vmatprep.subr.mxu0 0.0
    %2191 = vmatpush1.xpose.msra.mxu0 0.0
    %2192 = vmatprep.subr.mxu0 0.0
    %2193 = vmatpush1.xpose.msra.mxu0 0.0
    %2194 = vmatprep.subr.mxu0 0.0
    %2195 = vmatpush1.xpose.msra.mxu0 0.0
    %2196 = vmatprep.subr.mxu0 0.0
    %2197 = vmatpush1.xpose.msra.mxu0 0.0
    %2198 = vmatprep.subr.mxu0 0.0
    %2199 = vmatpush1.xpose.msra.mxu0 0.0
    %2200 = vmatprep.subr.mxu0 0.0
    %2201 = vmatpush1.xpose.msra.mxu0 0.0
    %2202 = vmatprep.subr.mxu0 0.0
    %2203 = vmatpush1.xpose.msra.mxu0 0.0
    %2204 = vmatprep.subr.mxu0 0.0
    %2205 = vmatpush1.xpose.msra.mxu0 0.0
    %2206 = vmatprep.subr.mxu0 0.0
    %2207 = vmatpush1.xpose.msra.mxu0 0.0
    %2208 = vmatprep.mubr.f32.mxu0 0.0
    %2209 = vmatmul.mubr.f32.gmra.mrb[0].mxu0 %v2136
    %v2210 = vpop.f32.mrb[0].mxu0
    %v2211 = vadd.f32 0.0, %v2210
    %v2212 = vpop.f32.mrb[0].mxu0
    %2213 = vmatprep.mubr.f32.mxu0 0.0
    %2214 = vmatmul.mubr.f32.gmra.mrb[0].mxu0 %v2138
    %v2215 = vpop.f32.mrb[0].mxu0
    %v2216 = vadd.f32 0.0, %v2215
    %v2217 = vpop.f32.mrb[0].mxu0
    %2218 = vdwg.mxu0
    %v2219 = vmul.f32 %v2211, 0.35355338
    %v2220 = vmul.f32 %v2216, 0.35355338
    %v2221 = vadd.f32 %v2219, %v345
    %v2222 = vadd.f32 %v2220, %v346
    %v2223 = vsel %vm669, %v2221, -inf
    %2224 = vmax.xlane.f32.xlu0 %v2223
    %v2225 = vpop.xlane.xlu0 %2224
    %v2226 = vsel %vm669, %v2222, -inf
    %2227 = vmax.xlane.f32.xlu0 %v2226
    %v2228 = vpop.xlane.xlu0 %2227
    %v2229 = vsub.f32 %v2221, %v2225
    %v2230 = vsub.f32 %v2222, %v2228
    %v2231 = vmul.f32 %v2229, 1.442695
    %v2232 = vpow.pop %v2231
    %v2233 = vmul.f32 %v2230, 1.442695
    %v2234 = vpow.pop %v2233
    %v2235 = vsel %vm669, %v2232, 0.0
    %2236 = vadd.xlane.f32.xlu0 %v2235
    %v2237 = vpop.xlane.xlu0 %2236
    %v2238 = vsel %vm669, %v2234, 0.0
    %2239 = vadd.xlane.f32.xlu0 %v2238
    %v2240 = vpop.xlane.xlu0 %2239
    %v2241 = vrcp.pop %v2237
    %v2242 = vrcp.pop %v2240
    %v2243 = vmul.f32 %v2232, %v2241
    %v2244 = vmul.f32 %v2234, %v2242
    %2245 = vrot.lane.b32.xlu0 %v2122, 64
    %v2246 = vpop.permute.xlu0 %2245
    %2247 = vrot.lane.b32.xlu0 %v2127, 64
    %v2248 = vpop.permute.xlu0 %2247
    %v2252 = vsel %vm669, %v2243, 0
    %v2255 = vsel %vm669, %v2244, 0
    %2257 = vmatprep.subr.mxu0 0.0
    %2258 = vmatpush1.msra.mxu0 %v2246
    %2259 = vmatprep.subr.mxu0 0.0
    %2260 = vmatpush1.msra.mxu0 %v2248
    %2261 = vmatprep.subr.mxu0 0.0
    %2262 = vmatpush1.msra.mxu0 0.0
    %2263 = vmatprep.subr.mxu0 0.0
    %2264 = vmatpush1.msra.mxu0 0.0
    %2265 = vmatprep.subr.mxu0 0.0
    %2266 = vmatpush1.msra.mxu0 0.0
    %2267 = vmatprep.subr.mxu0 0.0
    %2268 = vmatpush1.msra.mxu0 0.0
    %2269 = vmatprep.subr.mxu0 0.0
    %2270 = vmatpush1.msra.mxu0 0.0
    %2271 = vmatprep.subr.mxu0 0.0
    %2272 = vmatpush1.msra.mxu0 0.0
    %2273 = vmatprep.subr.mxu0 0.0
    %2274 = vmatpush1.msra.mxu0 0.0
    %2275 = vmatprep.subr.mxu0 0.0
    %2276 = vmatpush1.msra.mxu0 0.0
    %2277 = vmatprep.subr.mxu0 0.0
    %2278 = vmatpush1.msra.mxu0 0.0
    %2279 = vmatprep.subr.mxu0 0.0
    %2280 = vmatpush1.msra.mxu0 0.0
    %2281 = vmatprep.subr.mxu0 0.0
    %2282 = vmatpush1.msra.mxu0 0.0
    %2283 = vmatprep.subr.mxu0 0.0
    %2284 = vmatpush1.msra.mxu0 0.0
    %2285 = vmatprep.subr.mxu0 0.0
    %2286 = vmatpush1.msra.mxu0 0.0
    %2287 = vmatprep.subr.mxu0 0.0
    %2288 = vmatpush1.msra.mxu0 0.0
    %2289 = vmatprep.subr.mxu0 0.0
    %2290 = vmatpush1.msra.mxu0 0.0
    %2291 = vmatprep.subr.mxu0 0.0
    %2292 = vmatpush1.msra.mxu0 0.0
    %2293 = vmatprep.subr.mxu0 0.0
    %2294 = vmatpush1.msra.mxu0 0.0
    %2295 = vmatprep.subr.mxu0 0.0
    %2296 = vmatpush1.msra.mxu0 0.0
    %2297 = vmatprep.subr.mxu0 0.0
    %2298 = vmatpush1.msra.mxu0 0.0
    %2299 = vmatprep.subr.mxu0 0.0
    %2300 = vmatpush1.msra.mxu0 0.0
    %2301 = vmatprep.subr.mxu0 0.0
    %2302 = vmatpush1.msra.mxu0 0.0
    %2303 = vmatprep.subr.mxu0 0.0
    %2304 = vmatpush1.msra.mxu0 0.0
    %2305 = vmatprep.subr.mxu0 0.0
    %2306 = vmatpush1.msra.mxu0 0.0
    %2307 = vmatprep.subr.mxu0 0.0
    %2308 = vmatpush1.msra.mxu0 0.0
    %2309 = vmatprep.subr.mxu0 0.0
    %2310 = vmatpush1.msra.mxu0 0.0
    %2311 = vmatprep.subr.mxu0 0.0
    %2312 = vmatpush1.msra.mxu0 0.0
    %2313 = vmatprep.subr.mxu0 0.0
    %2314 = vmatpush1.msra.mxu0 0.0
    %2315 = vmatprep.subr.mxu0 0.0
    %2316 = vmatpush1.msra.mxu0 0.0
    %2317 = vmatprep.subr.mxu0 0.0
    %2318 = vmatpush1.msra.mxu0 0.0
    %2319 = vmatprep.subr.mxu0 0.0
    %2320 = vmatpush1.msra.mxu0 0.0
    %2321 = vmatprep.mubr.f32.mxu0 0.0
    %2322 = vmatmul.mubr.f32.gmra.mrb[0].mxu0 %v2252
    %v2323 = vpop.f32.mrb[0].mxu0
    %v2324 = vadd.f32 0.0, %v2323
    %v2325 = vpop.f32.mrb[0].mxu0
    %2326 = vmatprep.mubr.f32.mxu0 0.0
    %2327 = vmatmul.mubr.f32.gmra.mrb[0].mxu0 %v2255
    %v2328 = vpop.f32.mrb[0].mxu0
    %v2329 = vadd.f32 0.0, %v2328
    %v2330 = vpop.f32.mrb[0].mxu0
    %2331 = vdwg.mxu0
    %s2332 = scalar_lea.vmem [#allocation7], 32
    %v2333 = vld [vmem:[%s2332] sm:$0xff]
    %2334 = vrot.lane.b32.xlu0 %v2122, 120
    %v2335 = vpop.permute.xlu0 %2334
    %2336 = vrot.lane.b32.xlu0 %v2127, 120
    %v2337 = vpop.permute.xlu0 %2336
    %2338 = vrot.lane.b32.xlu0 %v2122, 88
    %v2339 = vpop.permute.xlu0 %2338
    %2340 = vrot.lane.b32.xlu0 %v2127, 88
    %v2341 = vpop.permute.xlu0 %2340
    %v2342 = vsel %vm357, %v2335, 0
    %v2344 = vsel %vm357, %v2337, 0
    %v2346 = vsel %vm357, %v2339, 0
    %v2348 = vsel %vm357, %v2341, 0
    %2350 = vmatprep.subr.mxu0 0.0
    %2351 = vmatpush1.xpose.msra.mxu0 %v2346
    %2352 = vmatprep.subr.mxu0 0.0
    %2353 = vmatpush1.xpose.msra.mxu0 %v2348
    %2354 = vmatprep.subr.mxu0 0.0
    %2355 = vmatpush1.xpose.msra.mxu0 0.0
    %2356 = vmatprep.subr.mxu0 0.0
    %2357 = vmatpush1.xpose.msra.mxu0 0.0
    %2358 = vmatprep.subr.mxu0 0.0
    %2359 = vmatpush1.xpose.msra.mxu0 0.0
    %2360 = vmatprep.subr.mxu0 0.0
    %2361 = vmatpush1.xpose.msra.mxu0 0.0
    %2362 = vmatprep.subr.mxu0 0.0
    %2363 = vmatpush1.xpose.msra.mxu0 0.0
    %2364 = vmatprep.subr.mxu0 0.0
    %2365 = vmatpush1.xpose.msra.mxu0 0.0
    %2366 = vmatprep.subr.mxu0 0.0
    %2367 = vmatpush1.xpose.msra.mxu0 0.0
    %2368 = vmatprep.subr.mxu0 0.0
    %2369 = vmatpush1.xpose.msra.mxu0 0.0
    %2370 = vmatprep.subr.mxu0 0.0
    %2371 = vmatpush1.xpose.msra.mxu0 0.0
    %2372 = vmatprep.subr.mxu0 0.0
    %2373 = vmatpush1.xpose.msra.mxu0 0.0
    %2374 = vmatprep.subr.mxu0 0.0
    %2375 = vmatpush1.xpose.msra.mxu0 0.0
    %2376 = vmatprep.subr.mxu0 0.0
    %2377 = vmatpush1.xpose.msra.mxu0 0.0
    %2378 = vmatprep.subr.mxu0 0.0
    %2379 = vmatpush1.xpose.msra.mxu0 0.0
    %2380 = vmatprep.subr.mxu0 0.0
    %2381 = vmatpush1.xpose.msra.mxu0 0.0
    %2382 = vmatprep.subr.mxu0 0.0
    %2383 = vmatpush1.xpose.msra.mxu0 0.0
    %2384 = vmatprep.subr.mxu0 0.0
    %2385 = vmatpush1.xpose.msra.mxu0 0.0
    %2386 = vmatprep.subr.mxu0 0.0
    %2387 = vmatpush1.xpose.msra.mxu0 0.0
    %2388 = vmatprep.subr.mxu0 0.0
    %2389 = vmatpush1.xpose.msra.mxu0 0.0
    %2390 = vmatprep.subr.mxu0 0.0
    %2391 = vmatpush1.xpose.msra.mxu0 0.0
    %2392 = vmatprep.subr.mxu0 0.0
    %2393 = vmatpush1.xpose.msra.mxu0 0.0
    %2394 = vmatprep.subr.mxu0 0.0
    %2395 = vmatpush1.xpose.msra.mxu0 0.0
    %2396 = vmatprep.subr.mxu0 0.0
    %2397 = vmatpush1.xpose.msra.mxu0 0.0
    %2398 = vmatprep.subr.mxu0 0.0
    %2399 = vmatpush1.xpose.msra.mxu0 0.0
    %2400 = vmatprep.subr.mxu0 0.0
    %2401 = vmatpush1.xpose.msra.mxu0 0.0
    %2402 = vmatprep.subr.mxu0 0.0
    %2403 = vmatpush1.xpose.msra.mxu0 0.0
    %2404 = vmatprep.subr.mxu0 0.0
    %2405 = vmatpush1.xpose.msra.mxu0 0.0
    %2406 = vmatprep.subr.mxu0 0.0
    %2407 = vmatpush1.xpose.msra.mxu0 0.0
    %2408 = vmatprep.subr.mxu0 0.0
    %2409 = vmatpush1.xpose.msra.mxu0 0.0
    %2410 = vmatprep.subr.mxu0 0.0
    %2411 = vmatpush1.xpose.msra.mxu0 0.0
    %2412 = vmatprep.subr.mxu0 0.0
    %2413 = vmatpush1.xpose.msra.mxu0 0.0
    %2414 = vmatprep.mubr.f32.mxu0 0.0
    %2415 = vmatmul.mubr.f32.gmra.mrb[0].mxu0 %v2342
    %v2416 = vpop.f32.mrb[0].mxu0
    %v2417 = vadd.f32 0.0, %v2416
    %v2418 = vpop.f32.mrb[0].mxu0
    %2419 = vmatprep.mubr.f32.mxu0 0.0
    %2420 = vmatmul.mubr.f32.gmra.mrb[0].mxu0 %v2344
    %v2421 = vpop.f32.mrb[0].mxu0
    %v2422 = vadd.f32 0.0, %v2421
    %v2423 = vpop.f32.mrb[0].mxu0
    %2424 = vdwg.mxu0
    %v2425 = vmul.f32 %v2417, 0.35355338
    %v2426 = vmul.f32 %v2422, 0.35355338
    %v2427 = vadd.f32 %v2425, %v345
    %v2428 = vadd.f32 %v2426, %v346
    %v2429 = vsel %vm669, %v2427, -inf
    %2430 = vmax.xlane.f32.xlu0 %v2429
    %v2431 = vpop.xlane.xlu0 %2430
    %v2432 = vsel %vm669, %v2428, -inf
    %2433 = vmax.xlane.f32.xlu0 %v2432
    %v2434 = vpop.xlane.xlu0 %2433
    %v2435 = vsub.f32 %v2427, %v2431
    %v2436 = vsub.f32 %v2428, %v2434
    %v2437 = vmul.f32 %v2435, 1.442695
    %v2438 = vpow.pop %v2437
    %v2439 = vmul.f32 %v2436, 1.442695
    %v2440 = vpow.pop %v2439
    %v2441 = vsel %vm669, %v2438, 0.0
    %2442 = vadd.xlane.f32.xlu0 %v2441
    %v2443 = vpop.xlane.xlu0 %2442
    %v2444 = vsel %vm669, %v2440, 0.0
    %2445 = vadd.xlane.f32.xlu0 %v2444
    %v2446 = vpop.xlane.xlu0 %2445
    %v2447 = vrcp.pop %v2443
    %v2448 = vrcp.pop %v2446
    %v2449 = vmul.f32 %v2438, %v2447
    %v2450 = vmul.f32 %v2440, %v2448
    %2451 = vrot.lane.b32.xlu0 %v2122, 56
    %v2452 = vpop.permute.xlu0 %2451
    %2453 = vrot.lane.b32.xlu0 %v2127, 56
    %v2454 = vpop.permute.xlu0 %2453
    %v2458 = vsel %vm669, %v2449, 0
    %v2461 = vsel %vm669, %v2450, 0
    %2463 = vmatprep.subr.mxu0 0.0
    %2464 = vmatpush1.msra.mxu0 %v2452
    %2465 = vmatprep.subr.mxu0 0.0
    %2466 = vmatpush1.msra.mxu0 %v2454
    %2467 = vmatprep.subr.mxu0 0.0
    %2468 = vmatpush1.msra.mxu0 0.0
    %2469 = vmatprep.subr.mxu0 0.0
    %2470 = vmatpush1.msra.mxu0 0.0
    %2471 = vmatprep.subr.mxu0 0.0
    %2472 = vmatpush1.msra.mxu0 0.0
    %2473 = vmatprep.subr.mxu0 0.0
    %2474 = vmatpush1.msra.mxu0 0.0
    %2475 = vmatprep.subr.mxu0 0.0
    %2476 = vmatpush1.msra.mxu0 0.0
    %2477 = vmatprep.subr.mxu0 0.0
    %2478 = vmatpush1.msra.mxu0 0.0
    %2479 = vmatprep.subr.mxu0 0.0
    %2480 = vmatpush1.msra.mxu0 0.0
    %2481 = vmatprep.subr.mxu0 0.0
    %2482 = vmatpush1.msra.mxu0 0.0
    %2483 = vmatprep.subr.mxu0 0.0
    %2484 = vmatpush1.msra.mxu0 0.0
    %2485 = vmatprep.subr.mxu0 0.0
    %2486 = vmatpush1.msra.mxu0 0.0
    %2487 = vmatprep.subr.mxu0 0.0
    %2488 = vmatpush1.msra.mxu0 0.0
    %2489 = vmatprep.subr.mxu0 0.0
    %2490 = vmatpush1.msra.mxu0 0.0
    %2491 = vmatprep.subr.mxu0 0.0
    %2492 = vmatpush1.msra.mxu0 0.0
    %2493 = vmatprep.subr.mxu0 0.0
    %2494 = vmatpush1.msra.mxu0 0.0
    %2495 = vmatprep.subr.mxu0 0.0
    %2496 = vmatpush1.msra.mxu0 0.0
    %2497 = vmatprep.subr.mxu0 0.0
    %2498 = vmatpush1.msra.mxu0 0.0
    %2499 = vmatprep.subr.mxu0 0.0
    %2500 = vmatpush1.msra.mxu0 0.0
    %2501 = vmatprep.subr.mxu0 0.0
    %2502 = vmatpush1.msra.mxu0 0.0
    %2503 = vmatprep.subr.mxu0 0.0
    %2504 = vmatpush1.msra.mxu0 0.0
    %2505 = vmatprep.subr.mxu0 0.0
    %2506 = vmatpush1.msra.mxu0 0.0
    %2507 = vmatprep.subr.mxu0 0.0
    %2508 = vmatpush1.msra.mxu0 0.0
    %2509 = vmatprep.subr.mxu0 0.0
    %2510 = vmatpush1.msra.mxu0 0.0
    %2511 = vmatprep.subr.mxu0 0.0
    %2512 = vmatpush1.msra.mxu0 0.0
    %2513 = vmatprep.subr.mxu0 0.0
    %2514 = vmatpush1.msra.mxu0 0.0
    %2515 = vmatprep.subr.mxu0 0.0
    %2516 = vmatpush1.msra.mxu0 0.0
    %2517 = vmatprep.subr.mxu0 0.0
    %2518 = vmatpush1.msra.mxu0 0.0
    %2519 = vmatprep.subr.mxu0 0.0
    %2520 = vmatpush1.msra.mxu0 0.0
    %2521 = vmatprep.subr.mxu0 0.0
    %2522 = vmatpush1.msra.mxu0 0.0
    %2523 = vmatprep.subr.mxu0 0.0
    %2524 = vmatpush1.msra.mxu0 0.0
    %2525 = vmatprep.subr.mxu0 0.0
    %2526 = vmatpush1.msra.mxu0 0.0
    %2527 = vmatprep.mubr.f32.mxu0 0.0
    %2528 = vmatmul.mubr.f32.gmra.mrb[0].mxu0 %v2458
    %v2529 = vpop.f32.mrb[0].mxu0
    %v2530 = vadd.f32 0.0, %v2529
    %v2531 = vpop.f32.mrb[0].mxu0
    %2532 = vmatprep.mubr.f32.mxu0 0.0
    %2533 = vmatmul.mubr.f32.gmra.mrb[0].mxu0 %v2461
    %v2534 = vpop.f32.mrb[0].mxu0
    %v2535 = vadd.f32 0.0, %v2534
    %v2536 = vpop.f32.mrb[0].mxu0
    %2537 = vdwg.mxu0
    %v2538 = vld [vmem:[%s2332 + $0x8] sm:$0xff]
    %v2540 = vsel %vm357, %v2530, 0
    %v2543 = vsel %vm357, %v2535, 0
    %2545 = vmatprep.subr.mxu0 0.0
    %2546 = vmatpush1.msra.mxu0 %v2538
    %2547 = vmatprep.subr.mxu0 0.0
    %2548 = vmatpush1.msra.mxu0 0.0
    %2549 = vmatprep.subr.mxu0 0.0
    %2550 = vmatpush1.msra.mxu0 0.0
    %2551 = vmatprep.subr.mxu0 0.0
    %2552 = vmatpush1.msra.mxu0 0.0
    %2553 = vmatprep.subr.mxu0 0.0
    %2554 = vmatpush1.msra.mxu0 0.0
    %2555 = vmatprep.subr.mxu0 0.0
    %2556 = vmatpush1.msra.mxu0 0.0
    %2557 = vmatprep.subr.mxu0 0.0
    %2558 = vmatpush1.msra.mxu0 0.0
    %2559 = vmatprep.subr.mxu0 0.0
    %2560 = vmatpush1.msra.mxu0 0.0
    %2561 = vmatprep.subr.mxu0 0.0
    %2562 = vmatpush1.msra.mxu0 0.0
    %2563 = vmatprep.subr.mxu0 0.0
    %2564 = vmatpush1.msra.mxu0 0.0
    %2565 = vmatprep.subr.mxu0 0.0
    %2566 = vmatpush1.msra.mxu0 0.0
    %2567 = vmatprep.subr.mxu0 0.0
    %2568 = vmatpush1.msra.mxu0 0.0
    %2569 = vmatprep.subr.mxu0 0.0
    %2570 = vmatpush1.msra.mxu0 0.0
    %2571 = vmatprep.subr.mxu0 0.0
    %2572 = vmatpush1.msra.mxu0 0.0
    %2573 = vmatprep.subr.mxu0 0.0
    %2574 = vmatpush1.msra.mxu0 0.0
    %2575 = vmatprep.subr.mxu0 0.0
    %2576 = vmatpush1.msra.mxu0 0.0
    %2577 = vmatprep.subr.mxu0 0.0
    %2578 = vmatpush1.msra.mxu0 0.0
    %2579 = vmatprep.subr.mxu0 0.0
    %2580 = vmatpush1.msra.mxu0 0.0
    %2581 = vmatprep.subr.mxu0 0.0
    %2582 = vmatpush1.msra.mxu0 0.0
    %2583 = vmatprep.subr.mxu0 0.0
    %2584 = vmatpush1.msra.mxu0 0.0
    %2585 = vmatprep.subr.mxu0 0.0
    %2586 = vmatpush1.msra.mxu0 0.0
    %2587 = vmatprep.subr.mxu0 0.0
    %2588 = vmatpush1.msra.mxu0 0.0
    %2589 = vmatprep.subr.mxu0 0.0
    %2590 = vmatpush1.msra.mxu0 0.0
    %2591 = vmatprep.subr.mxu0 0.0
    %2592 = vmatpush1.msra.mxu0 0.0
    %2593 = vmatprep.subr.mxu0 0.0
    %2594 = vmatpush1.msra.mxu0 0.0
    %2595 = vmatprep.subr.mxu0 0.0
    %2596 = vmatpush1.msra.mxu0 0.0
    %2597 = vmatprep.subr.mxu0 0.0
    %2598 = vmatpush1.msra.mxu0 0.0
    %2599 = vmatprep.subr.mxu0 0.0
    %2600 = vmatpush1.msra.mxu0 0.0
    %2601 = vmatprep.subr.mxu0 0.0
    %2602 = vmatpush1.msra.mxu0 0.0
    %2603 = vmatprep.subr.mxu0 0.0
    %2604 = vmatpush1.msra.mxu0 0.0
    %2605 = vmatprep.subr.mxu0 0.0
    %2606 = vmatpush1.msra.mxu0 0.0
    %2607 = vmatprep.subr.mxu0 0.0
    %2608 = vmatpush1.msra.mxu0 0.0
    %2609 = vmatprep.mubr.f32.mxu0 0.0
    %2610 = vmatmul.mubr.f32.gmra.mrb[0].mxu0 %v2540
    %v2611 = vpop.f32.mrb[0].mxu0
    %v2612 = vadd.f32 0.0, %v2611
    %v2613 = vpop.f32.mrb[0].mxu0
    %2614 = vmatprep.mubr.f32.mxu0 0.0
    %2615 = vmatmul.mubr.f32.gmra.mrb[0].mxu0 %v2543
    %v2616 = vpop.f32.mrb[0].mxu0
    %v2617 = vadd.f32 0.0, %v2616
    %v2618 = vpop.f32.mrb[0].mxu0
    %2619 = vdwg.mxu0
    %v2621 = vsel %vm357, %v2324, 0
    %v2624 = vsel %vm357, %v2329, 0
    %2626 = vmatprep.subr.mxu0 0.0
    %2627 = vmatpush1.msra.mxu0 %v2333
    %2628 = vmatprep.subr.mxu0 0.0
    %2629 = vmatpush1.msra.mxu0 0.0
    %2630 = vmatprep.subr.mxu0 0.0
    %2631 = vmatpush1.msra.mxu0 0.0
    %2632 = vmatprep.subr.mxu0 0.0
    %2633 = vmatpush1.msra.mxu0 0.0
    %2634 = vmatprep.subr.mxu0 0.0
    %2635 = vmatpush1.msra.mxu0 0.0
    %2636 = vmatprep.subr.mxu0 0.0
    %2637 = vmatpush1.msra.mxu0 0.0
    %2638 = vmatprep.subr.mxu0 0.0
    %2639 = vmatpush1.msra.mxu0 0.0
    %2640 = vmatprep.subr.mxu0 0.0
    %2641 = vmatpush1.msra.mxu0 0.0
    %2642 = vmatprep.subr.mxu0 0.0
    %2643 = vmatpush1.msra.mxu0 0.0
    %2644 = vmatprep.subr.mxu0 0.0
    %2645 = vmatpush1.msra.mxu0 0.0
    %2646 = vmatprep.subr.mxu0 0.0
    %2647 = vmatpush1.msra.mxu0 0.0
    %2648 = vmatprep.subr.mxu0 0.0
    %2649 = vmatpush1.msra.mxu0 0.0
    %2650 = vmatprep.subr.mxu0 0.0
    %2651 = vmatpush1.msra.mxu0 0.0
    %2652 = vmatprep.subr.mxu0 0.0
    %2653 = vmatpush1.msra.mxu0 0.0
    %2654 = vmatprep.subr.mxu0 0.0
    %2655 = vmatpush1.msra.mxu0 0.0
    %2656 = vmatprep.subr.mxu0 0.0
    %2657 = vmatpush1.msra.mxu0 0.0
    %2658 = vmatprep.subr.mxu0 0.0
    %2659 = vmatpush1.msra.mxu0 0.0
    %2660 = vmatprep.subr.mxu0 0.0
    %2661 = vmatpush1.msra.mxu0 0.0
    %2662 = vmatprep.subr.mxu0 0.0
    %2663 = vmatpush1.msra.mxu0 0.0
    %2664 = vmatprep.subr.mxu0 0.0
    %2665 = vmatpush1.msra.mxu0 0.0
    %2666 = vmatprep.subr.mxu0 0.0
    %2667 = vmatpush1.msra.mxu0 0.0
    %2668 = vmatprep.subr.mxu0 0.0
    %2669 = vmatpush1.msra.mxu0 0.0
    %2670 = vmatprep.subr.mxu0 0.0
    %2671 = vmatpush1.msra.mxu0 0.0
    %2672 = vmatprep.subr.mxu0 0.0
    %2673 = vmatpush1.msra.mxu0 0.0
    %2674 = vmatprep.subr.mxu0 0.0
    %2675 = vmatpush1.msra.mxu0 0.0
    %2676 = vmatprep.subr.mxu0 0.0
    %2677 = vmatpush1.msra.mxu0 0.0
    %2678 = vmatprep.subr.mxu0 0.0
    %2679 = vmatpush1.msra.mxu0 0.0
    %2680 = vmatprep.subr.mxu0 0.0
    %2681 = vmatpush1.msra.mxu0 0.0
    %2682 = vmatprep.subr.mxu0 0.0
    %2683 = vmatpush1.msra.mxu0 0.0
    %2684 = vmatprep.subr.mxu0 0.0
    %2685 = vmatpush1.msra.mxu0 0.0
    %2686 = vmatprep.subr.mxu0 0.0
    %2687 = vmatpush1.msra.mxu0 0.0
    %2688 = vmatprep.subr.mxu0 0.0
    %2689 = vmatpush1.msra.mxu0 0.0
    %2690 = vmatprep.mubr.f32.mxu0 0.0
    %2691 = vmatmul.mubr.f32.gmra.mrb[0].mxu0 %v2621
    %v2692 = vpop.f32.mrb[0].mxu0
    %v2693 = vadd.f32 %v2612, %v2692
    %v2694 = vpop.f32.mrb[0].mxu0
    %2695 = vmatprep.mubr.f32.mxu0 0.0
    %2696 = vmatmul.mubr.f32.gmra.mrb[0].mxu0 %v2624
    %v2697 = vpop.f32.mrb[0].mxu0
    %v2698 = vadd.f32 %v2617, %v2697
    %v2699 = vpop.f32.mrb[0].mxu0
    %2700 = vdwg.mxu0
    %2701 = vrot.lane.b32.xlu0 %v2122, 112
    %v2702 = vpop.permute.xlu0 %2701
    %2703 = vrot.lane.b32.xlu0 %v2127, 112
    %v2704 = vpop.permute.xlu0 %2703
    %2705 = vrot.lane.b32.xlu0 %v2122, 80
    %v2706 = vpop.permute.xlu0 %2705
    %2707 = vrot.lane.b32.xlu0 %v2127, 80
    %v2708 = vpop.permute.xlu0 %2707
    %v2709 = vsel %vm357, %v2702, 0
    %v2711 = vsel %vm357, %v2704, 0
    %v2713 = vsel %vm357, %v2706, 0
    %v2715 = vsel %vm357, %v2708, 0
    %2717 = vmatprep.subr.mxu0 0.0
    %2718 = vmatpush1.xpose.msra.mxu0 %v2713
    %2719 = vmatprep.subr.mxu0 0.0
    %2720 = vmatpush1.xpose.msra.mxu0 %v2715
    %2721 = vmatprep.subr.mxu0 0.0
    %2722 = vmatpush1.xpose.msra.mxu0 0.0
    %2723 = vmatprep.subr.mxu0 0.0
    %2724 = vmatpush1.xpose.msra.mxu0 0.0
    %2725 = vmatprep.subr.mxu0 0.0
    %2726 = vmatpush1.xpose.msra.mxu0 0.0
    %2727 = vmatprep.subr.mxu0 0.0
    %2728 = vmatpush1.xpose.msra.mxu0 0.0
    %2729 = vmatprep.subr.mxu0 0.0
    %2730 = vmatpush1.xpose.msra.mxu0 0.0
    %2731 = vmatprep.subr.mxu0 0.0
    %2732 = vmatpush1.xpose.msra.mxu0 0.0
    %2733 = vmatprep.subr.mxu0 0.0
    %2734 = vmatpush1.xpose.msra.mxu0 0.0
    %2735 = vmatprep.subr.mxu0 0.0
    %2736 = vmatpush1.xpose.msra.mxu0 0.0
    %2737 = vmatprep.subr.mxu0 0.0
    %2738 = vmatpush1.xpose.msra.mxu0 0.0
    %2739 = vmatprep.subr.mxu0 0.0
    %2740 = vmatpush1.xpose.msra.mxu0 0.0
    %2741 = vmatprep.subr.mxu0 0.0
    %2742 = vmatpush1.xpose.msra.mxu0 0.0
    %2743 = vmatprep.subr.mxu0 0.0
    %2744 = vmatpush1.xpose.msra.mxu0 0.0
    %2745 = vmatprep.subr.mxu0 0.0
    %2746 = vmatpush1.xpose.msra.mxu0 0.0
    %2747 = vmatprep.subr.mxu0 0.0
    %2748 = vmatpush1.xpose.msra.mxu0 0.0
    %2749 = vmatprep.subr.mxu0 0.0
    %2750 = vmatpush1.xpose.msra.mxu0 0.0
    %2751 = vmatprep.subr.mxu0 0.0
    %2752 = vmatpush1.xpose.msra.mxu0 0.0
    %2753 = vmatprep.subr.mxu0 0.0
    %2754 = vmatpush1.xpose.msra.mxu0 0.0
    %2755 = vmatprep.subr.mxu0 0.0
    %2756 = vmatpush1.xpose.msra.mxu0 0.0
    %2757 = vmatprep.subr.mxu0 0.0
    %2758 = vmatpush1.xpose.msra.mxu0 0.0
    %2759 = vmatprep.subr.mxu0 0.0
    %2760 = vmatpush1.xpose.msra.mxu0 0.0
    %2761 = vmatprep.subr.mxu0 0.0
    %2762 = vmatpush1.xpose.msra.mxu0 0.0
    %2763 = vmatprep.subr.mxu0 0.0
    %2764 = vmatpush1.xpose.msra.mxu0 0.0
    %2765 = vmatprep.subr.mxu0 0.0
    %2766 = vmatpush1.xpose.msra.mxu0 0.0
    %2767 = vmatprep.subr.mxu0 0.0
    %2768 = vmatpush1.xpose.msra.mxu0 0.0
    %2769 = vmatprep.subr.mxu0 0.0
    %2770 = vmatpush1.xpose.msra.mxu0 0.0
    %2771 = vmatprep.subr.mxu0 0.0
    %2772 = vmatpush1.xpose.msra.mxu0 0.0
    %2773 = vmatprep.subr.mxu0 0.0
    %2774 = vmatpush1.xpose.msra.mxu0 0.0
    %2775 = vmatprep.subr.mxu0 0.0
    %2776 = vmatpush1.xpose.msra.mxu0 0.0
    %2777 = vmatprep.subr.mxu0 0.0
    %2778 = vmatpush1.xpose.msra.mxu0 0.0
    %2779 = vmatprep.subr.mxu0 0.0
    %2780 = vmatpush1.xpose.msra.mxu0 0.0
    %2781 = vmatprep.mubr.f32.mxu0 0.0
    %2782 = vmatmul.mubr.f32.gmra.mrb[0].mxu0 %v2709
    %v2783 = vpop.f32.mrb[0].mxu0
    %v2784 = vadd.f32 0.0, %v2783
    %v2785 = vpop.f32.mrb[0].mxu0
    %2786 = vmatprep.mubr.f32.mxu0 0.0
    %2787 = vmatmul.mubr.f32.gmra.mrb[0].mxu0 %v2711
    %v2788 = vpop.f32.mrb[0].mxu0
    %v2789 = vadd.f32 0.0, %v2788
    %v2790 = vpop.f32.mrb[0].mxu0
    %2791 = vdwg.mxu0
    %v2792 = vmul.f32 %v2784, 0.35355338
    %v2793 = vmul.f32 %v2789, 0.35355338
    %v2794 = vadd.f32 %v2792, %v345
    %v2795 = vadd.f32 %v2793, %v346
    %v2796 = vsel %vm669, %v2794, -inf
    %2797 = vmax.xlane.f32.xlu0 %v2796
    %v2798 = vpop.xlane.xlu0 %2797
    %v2799 = vsel %vm669, %v2795, -inf
    %2800 = vmax.xlane.f32.xlu0 %v2799
    %v2801 = vpop.xlane.xlu0 %2800
    %v2802 = vsub.f32 %v2794, %v2798
    %v2803 = vsub.f32 %v2795, %v2801
    %v2804 = vmul.f32 %v2802, 1.442695
    %v2805 = vpow.pop %v2804
    %v2806 = vmul.f32 %v2803, 1.442695
    %v2807 = vpow.pop %v2806
    %v2808 = vsel %vm669, %v2805, 0.0
    %2809 = vadd.xlane.f32.xlu0 %v2808
    %v2810 = vpop.xlane.xlu0 %2809
    %v2811 = vsel %vm669, %v2807, 0.0
    %2812 = vadd.xlane.f32.xlu0 %v2811
    %v2813 = vpop.xlane.xlu0 %2812
    %v2814 = vrcp.pop %v2810
    %v2815 = vrcp.pop %v2813
    %v2816 = vmul.f32 %v2805, %v2814
    %v2817 = vmul.f32 %v2807, %v2815
    %2818 = vrot.lane.b32.xlu0 %v2122, 48
    %v2819 = vpop.permute.xlu0 %2818
    %2820 = vrot.lane.b32.xlu0 %v2127, 48
    %v2821 = vpop.permute.xlu0 %2820
    %v2825 = vsel %vm669, %v2816, 0
    %v2828 = vsel %vm669, %v2817, 0
    %2830 = vmatprep.subr.mxu0 0.0
    %2831 = vmatpush1.msra.mxu0 %v2819
    %2832 = vmatprep.subr.mxu0 0.0
    %2833 = vmatpush1.msra.mxu0 %v2821
    %2834 = vmatprep.subr.mxu0 0.0
    %2835 = vmatpush1.msra.mxu0 0.0
    %2836 = vmatprep.subr.mxu0 0.0
    %2837 = vmatpush1.msra.mxu0 0.0
    %2838 = vmatprep.subr.mxu0 0.0
    %2839 = vmatpush1.msra.mxu0 0.0
    %2840 = vmatprep.subr.mxu0 0.0
    %2841 = vmatpush1.msra.mxu0 0.0
    %2842 = vmatprep.subr.mxu0 0.0
    %2843 = vmatpush1.msra.mxu0 0.0
    %2844 = vmatprep.subr.mxu0 0.0
    %2845 = vmatpush1.msra.mxu0 0.0
    %2846 = vmatprep.subr.mxu0 0.0
    %2847 = vmatpush1.msra.mxu0 0.0
    %2848 = vmatprep.subr.mxu0 0.0
    %2849 = vmatpush1.msra.mxu0 0.0
    %2850 = vmatprep.subr.mxu0 0.0
    %2851 = vmatpush1.msra.mxu0 0.0
    %2852 = vmatprep.subr.mxu0 0.0
    %2853 = vmatpush1.msra.mxu0 0.0
    %2854 = vmatprep.subr.mxu0 0.0
    %2855 = vmatpush1.msra.mxu0 0.0
    %2856 = vmatprep.subr.mxu0 0.0
    %2857 = vmatpush1.msra.mxu0 0.0
    %2858 = vmatprep.subr.mxu0 0.0
    %2859 = vmatpush1.msra.mxu0 0.0
    %2860 = vmatprep.subr.mxu0 0.0
    %2861 = vmatpush1.msra.mxu0 0.0
    %2862 = vmatprep.subr.mxu0 0.0
    %2863 = vmatpush1.msra.mxu0 0.0
    %2864 = vmatprep.subr.mxu0 0.0
    %2865 = vmatpush1.msra.mxu0 0.0
    %2866 = vmatprep.subr.mxu0 0.0
    %2867 = vmatpush1.msra.mxu0 0.0
    %2868 = vmatprep.subr.mxu0 0.0
    %2869 = vmatpush1.msra.mxu0 0.0
    %2870 = vmatprep.subr.mxu0 0.0
    %2871 = vmatpush1.msra.mxu0 0.0
    %2872 = vmatprep.subr.mxu0 0.0
    %2873 = vmatpush1.msra.mxu0 0.0
    %2874 = vmatprep.subr.mxu0 0.0
    %2875 = vmatpush1.msra.mxu0 0.0
    %2876 = vmatprep.subr.mxu0 0.0
    %2877 = vmatpush1.msra.mxu0 0.0
    %2878 = vmatprep.subr.mxu0 0.0
    %2879 = vmatpush1.msra.mxu0 0.0
    %2880 = vmatprep.subr.mxu0 0.0
    %2881 = vmatpush1.msra.mxu0 0.0
    %2882 = vmatprep.subr.mxu0 0.0
    %2883 = vmatpush1.msra.mxu0 0.0
    %2884 = vmatprep.subr.mxu0 0.0
    %2885 = vmatpush1.msra.mxu0 0.0
    %2886 = vmatprep.subr.mxu0 0.0
    %2887 = vmatpush1.msra.mxu0 0.0
    %2888 = vmatprep.subr.mxu0 0.0
    %2889 = vmatpush1.msra.mxu0 0.0
    %2890 = vmatprep.subr.mxu0 0.0
    %2891 = vmatpush1.msra.mxu0 0.0
    %2892 = vmatprep.subr.mxu0 0.0
    %2893 = vmatpush1.msra.mxu0 0.0
    %2894 = vmatprep.mubr.f32.mxu0 0.0
    %2895 = vmatmul.mubr.f32.gmra.mrb[0].mxu0 %v2825
    %v2896 = vpop.f32.mrb[0].mxu0
    %v2897 = vadd.f32 0.0, %v2896
    %v2898 = vpop.f32.mrb[0].mxu0
    %2899 = vmatprep.mubr.f32.mxu0 0.0
    %2900 = vmatmul.mubr.f32.gmra.mrb[0].mxu0 %v2828
    %v2901 = vpop.f32.mrb[0].mxu0
    %v2902 = vadd.f32 0.0, %v2901
    %v2903 = vpop.f32.mrb[0].mxu0
    %2904 = vdwg.mxu0
    %v2905 = vld [vmem:[%s2332 + $0x10] sm:$0xff]
    %v2907 = vsel %vm357, %v2897, 0
    %v2910 = vsel %vm357, %v2902, 0
    %2912 = vmatprep.subr.mxu0 0.0
    %2913 = vmatpush1.msra.mxu0 %v2905
    %2914 = vmatprep.subr.mxu0 0.0
    %2915 = vmatpush1.msra.mxu0 0.0
    %2916 = vmatprep.subr.mxu0 0.0
    %2917 = vmatpush1.msra.mxu0 0.0
    %2918 = vmatprep.subr.mxu0 0.0
    %2919 = vmatpush1.msra.mxu0 0.0
    %2920 = vmatprep.subr.mxu0 0.0
    %2921 = vmatpush1.msra.mxu0 0.0
    %2922 = vmatprep.subr.mxu0 0.0
    %2923 = vmatpush1.msra.mxu0 0.0
    %2924 = vmatprep.subr.mxu0 0.0
    %2925 = vmatpush1.msra.mxu0 0.0
    %2926 = vmatprep.subr.mxu0 0.0
    %2927 = vmatpush1.msra.mxu0 0.0
    %2928 = vmatprep.subr.mxu0 0.0
    %2929 = vmatpush1.msra.mxu0 0.0
    %2930 = vmatprep.subr.mxu0 0.0
    %2931 = vmatpush1.msra.mxu0 0.0
    %2932 = vmatprep.subr.mxu0 0.0
    %2933 = vmatpush1.msra.mxu0 0.0
    %2934 = vmatprep.subr.mxu0 0.0
    %2935 = vmatpush1.msra.mxu0 0.0
    %2936 = vmatprep.subr.mxu0 0.0
    %2937 = vmatpush1.msra.mxu0 0.0
    %2938 = vmatprep.subr.mxu0 0.0
    %2939 = vmatpush1.msra.mxu0 0.0
    %2940 = vmatprep.subr.mxu0 0.0
    %2941 = vmatpush1.msra.mxu0 0.0
    %2942 = vmatprep.subr.mxu0 0.0
    %2943 = vmatpush1.msra.mxu0 0.0
    %2944 = vmatprep.subr.mxu0 0.0
    %2945 = vmatpush1.msra.mxu0 0.0
    %2946 = vmatprep.subr.mxu0 0.0
    %2947 = vmatpush1.msra.mxu0 0.0
    %2948 = vmatprep.subr.mxu0 0.0
    %2949 = vmatpush1.msra.mxu0 0.0
    %2950 = vmatprep.subr.mxu0 0.0
    %2951 = vmatpush1.msra.mxu0 0.0
    %2952 = vmatprep.subr.mxu0 0.0
    %2953 = vmatpush1.msra.mxu0 0.0
    %2954 = vmatprep.subr.mxu0 0.0
    %2955 = vmatpush1.msra.mxu0 0.0
    %2956 = vmatprep.subr.mxu0 0.0
    %2957 = vmatpush1.msra.mxu0 0.0
    %2958 = vmatprep.subr.mxu0 0.0
    %2959 = vmatpush1.msra.mxu0 0.0
    %2960 = vmatprep.subr.mxu0 0.0
    %2961 = vmatpush1.msra.mxu0 0.0
    %2962 = vmatprep.subr.mxu0 0.0
    %2963 = vmatpush1.msra.mxu0 0.0
    %2964 = vmatprep.subr.mxu0 0.0
    %2965 = vmatpush1.msra.mxu0 0.0
    %2966 = vmatprep.subr.mxu0 0.0
    %2967 = vmatpush1.msra.mxu0 0.0
    %2968 = vmatprep.subr.mxu0 0.0
    %2969 = vmatpush1.msra.mxu0 0.0
    %2970 = vmatprep.subr.mxu0 0.0
    %2971 = vmatpush1.msra.mxu0 0.0
    %2972 = vmatprep.subr.mxu0 0.0
    %2973 = vmatpush1.msra.mxu0 0.0
    %2974 = vmatprep.subr.mxu0 0.0
    %2975 = vmatpush1.msra.mxu0 0.0
    %2976 = vmatprep.mubr.f32.mxu0 0.0
    %2977 = vmatmul.mubr.f32.gmra.mrb[0].mxu0 %v2907
    %v2978 = vpop.f32.mrb[0].mxu0
    %v2979 = vadd.f32 0.0, %v2978
    %v2980 = vpop.f32.mrb[0].mxu0
    %2981 = vmatprep.mubr.f32.mxu0 0.0
    %2982 = vmatmul.mubr.f32.gmra.mrb[0].mxu0 %v2910
    %v2983 = vpop.f32.mrb[0].mxu0
    %v2984 = vadd.f32 0.0, %v2983
    %v2985 = vpop.f32.mrb[0].mxu0
    %2986 = vdwg.mxu0
    %v2987 = vadd.f32 %v2693, %v2979
    %v2988 = vadd.f32 %v2698, %v2984
    %2989 = vrot.lane.b32.xlu0 %v2122, 104
    %v2990 = vpop.permute.xlu0 %2989
    %2991 = vrot.lane.b32.xlu0 %v2127, 104
    %v2992 = vpop.permute.xlu0 %2991
    %2993 = vrot.lane.b32.xlu0 %v2122, 72
    %v2994 = vpop.permute.xlu0 %2993
    %2995 = vrot.lane.b32.xlu0 %v2127, 72
    %v2996 = vpop.permute.xlu0 %2995
    %v2997 = vsel %vm357, %v2990, 0
    %v2999 = vsel %vm357, %v2992, 0
    %v3001 = vsel %vm357, %v2994, 0
    %v3003 = vsel %vm357, %v2996, 0
    %3005 = vmatprep.subr.mxu0 0.0
    %3006 = vmatpush1.xpose.msra.mxu0 %v3001
    %3007 = vmatprep.subr.mxu0 0.0
    %3008 = vmatpush1.xpose.msra.mxu0 %v3003
    %3009 = vmatprep.subr.mxu0 0.0
    %3010 = vmatpush1.xpose.msra.mxu0 0.0
    %3011 = vmatprep.subr.mxu0 0.0
    %3012 = vmatpush1.xpose.msra.mxu0 0.0
    %3013 = vmatprep.subr.mxu0 0.0
    %3014 = vmatpush1.xpose.msra.mxu0 0.0
    %3015 = vmatprep.subr.mxu0 0.0
    %3016 = vmatpush1.xpose.msra.mxu0 0.0
    %3017 = vmatprep.subr.mxu0 0.0
    %3018 = vmatpush1.xpose.msra.mxu0 0.0
    %3019 = vmatprep.subr.mxu0 0.0
    %3020 = vmatpush1.xpose.msra.mxu0 0.0
    %3021 = vmatprep.subr.mxu0 0.0
    %3022 = vmatpush1.xpose.msra.mxu0 0.0
    %3023 = vmatprep.subr.mxu0 0.0
    %3024 = vmatpush1.xpose.msra.mxu0 0.0
    %3025 = vmatprep.subr.mxu0 0.0
    %3026 = vmatpush1.xpose.msra.mxu0 0.0
    %3027 = vmatprep.subr.mxu0 0.0
    %3028 = vmatpush1.xpose.msra.mxu0 0.0
    %3029 = vmatprep.subr.mxu0 0.0
    %3030 = vmatpush1.xpose.msra.mxu0 0.0
    %3031 = vmatprep.subr.mxu0 0.0
    %3032 = vmatpush1.xpose.msra.mxu0 0.0
    %3033 = vmatprep.subr.mxu0 0.0
    %3034 = vmatpush1.xpose.msra.mxu0 0.0
    %3035 = vmatprep.subr.mxu0 0.0
    %3036 = vmatpush1.xpose.msra.mxu0 0.0
    %3037 = vmatprep.subr.mxu0 0.0
    %3038 = vmatpush1.xpose.msra.mxu0 0.0
    %3039 = vmatprep.subr.mxu0 0.0
    %3040 = vmatpush1.xpose.msra.mxu0 0.0
    %3041 = vmatprep.subr.mxu0 0.0
    %3042 = vmatpush1.xpose.msra.mxu0 0.0
    %3043 = vmatprep.subr.mxu0 0.0
    %3044 = vmatpush1.xpose.msra.mxu0 0.0
    %3045 = vmatprep.subr.mxu0 0.0
    %3046 = vmatpush1.xpose.msra.mxu0 0.0
    %3047 = vmatprep.subr.mxu0 0.0
    %3048 = vmatpush1.xpose.msra.mxu0 0.0
    %3049 = vmatprep.subr.mxu0 0.0
    %3050 = vmatpush1.xpose.msra.mxu0 0.0
    %3051 = vmatprep.subr.mxu0 0.0
    %3052 = vmatpush1.xpose.msra.mxu0 0.0
    %3053 = vmatprep.subr.mxu0 0.0
    %3054 = vmatpush1.xpose.msra.mxu0 0.0
    %3055 = vmatprep.subr.mxu0 0.0
    %3056 = vmatpush1.xpose.msra.mxu0 0.0
    %3057 = vmatprep.subr.mxu0 0.0
    %3058 = vmatpush1.xpose.msra.mxu0 0.0
    %3059 = vmatprep.subr.mxu0 0.0
    %3060 = vmatpush1.xpose.msra.mxu0 0.0
    %3061 = vmatprep.subr.mxu0 0.0
    %3062 = vmatpush1.xpose.msra.mxu0 0.0
    %3063 = vmatprep.subr.mxu0 0.0
    %3064 = vmatpush1.xpose.msra.mxu0 0.0
    %3065 = vmatprep.subr.mxu0 0.0
    %3066 = vmatpush1.xpose.msra.mxu0 0.0
    %3067 = vmatprep.subr.mxu0 0.0
    %3068 = vmatpush1.xpose.msra.mxu0 0.0
    %3069 = vmatprep.mubr.f32.mxu0 0.0
    %3070 = vmatmul.mubr.f32.gmra.mrb[0].mxu0 %v2997
    %v3071 = vpop.f32.mrb[0].mxu0
    %v3072 = vadd.f32 0.0, %v3071
    %v3073 = vpop.f32.mrb[0].mxu0
    %3074 = vmatprep.mubr.f32.mxu0 0.0
    %3075 = vmatmul.mubr.f32.gmra.mrb[0].mxu0 %v2999
    %v3076 = vpop.f32.mrb[0].mxu0
    %v3077 = vadd.f32 0.0, %v3076
    %v3078 = vpop.f32.mrb[0].mxu0
    %3079 = vdwg.mxu0
    %v3080 = vmul.f32 %v3072, 0.35355338
    %v3081 = vmul.f32 %v3077, 0.35355338
    %v3082 = vadd.f32 %v3080, %v345
    %v3083 = vadd.f32 %v3081, %v346
    %v3084 = vsel %vm669, %v3082, -inf
    %3085 = vmax.xlane.f32.xlu0 %v3084
    %v3086 = vpop.xlane.xlu0 %3085
    %v3087 = vsel %vm669, %v3083, -inf
    %3088 = vmax.xlane.f32.xlu0 %v3087
    %v3089 = vpop.xlane.xlu0 %3088
    %v3090 = vsub.f32 %v3082, %v3086
    %v3091 = vsub.f32 %v3083, %v3089
    %v3092 = vmul.f32 %v3090, 1.442695
    %v3093 = vpow.pop %v3092
    %v3094 = vmul.f32 %v3091, 1.442695
    %v3095 = vpow.pop %v3094
    %v3096 = vsel %vm669, %v3093, 0.0
    %3097 = vadd.xlane.f32.xlu0 %v3096
    %v3098 = vpop.xlane.xlu0 %3097
    %v3099 = vsel %vm669, %v3095, 0.0
    %3100 = vadd.xlane.f32.xlu0 %v3099
    %v3101 = vpop.xlane.xlu0 %3100
    %v3102 = vrcp.pop %v3098
    %v3103 = vrcp.pop %v3101
    %v3104 = vmul.f32 %v3093, %v3102
    %v3105 = vmul.f32 %v3095, %v3103
    %3106 = vrot.lane.b32.xlu0 %v2122, 40
    %v3107 = vpop.permute.xlu0 %3106
    %3108 = vrot.lane.b32.xlu0 %v2127, 40
    %v3109 = vpop.permute.xlu0 %3108
    %v3113 = vsel %vm669, %v3104, 0
    %v3116 = vsel %vm669, %v3105, 0
    %3118 = vmatprep.subr.mxu0 0.0
    %3119 = vmatpush1.msra.mxu0 %v3107
    %3120 = vmatprep.subr.mxu0 0.0
    %3121 = vmatpush1.msra.mxu0 %v3109
    %3122 = vmatprep.subr.mxu0 0.0
    %3123 = vmatpush1.msra.mxu0 0.0
    %3124 = vmatprep.subr.mxu0 0.0
    %3125 = vmatpush1.msra.mxu0 0.0
    %3126 = vmatprep.subr.mxu0 0.0
    %3127 = vmatpush1.msra.mxu0 0.0
    %3128 = vmatprep.subr.mxu0 0.0
    %3129 = vmatpush1.msra.mxu0 0.0
    %3130 = vmatprep.subr.mxu0 0.0
    %3131 = vmatpush1.msra.mxu0 0.0
    %3132 = vmatprep.subr.mxu0 0.0
    %3133 = vmatpush1.msra.mxu0 0.0
    %3134 = vmatprep.subr.mxu0 0.0
    %3135 = vmatpush1.msra.mxu0 0.0
    %3136 = vmatprep.subr.mxu0 0.0
    %3137 = vmatpush1.msra.mxu0 0.0
    %3138 = vmatprep.subr.mxu0 0.0
    %3139 = vmatpush1.msra.mxu0 0.0
    %3140 = vmatprep.subr.mxu0 0.0
    %3141 = vmatpush1.msra.mxu0 0.0
    %3142 = vmatprep.subr.mxu0 0.0
    %3143 = vmatpush1.msra.mxu0 0.0
    %3144 = vmatprep.subr.mxu0 0.0
    %3145 = vmatpush1.msra.mxu0 0.0
    %3146 = vmatprep.subr.mxu0 0.0
    %3147 = vmatpush1.msra.mxu0 0.0
    %3148 = vmatprep.subr.mxu0 0.0
    %3149 = vmatpush1.msra.mxu0 0.0
    %3150 = vmatprep.subr.mxu0 0.0
    %3151 = vmatpush1.msra.mxu0 0.0
    %3152 = vmatprep.subr.mxu0 0.0
    %3153 = vmatpush1.msra.mxu0 0.0
    %3154 = vmatprep.subr.mxu0 0.0
    %3155 = vmatpush1.msra.mxu0 0.0
    %3156 = vmatprep.subr.mxu0 0.0
    %3157 = vmatpush1.msra.mxu0 0.0
    %3158 = vmatprep.subr.mxu0 0.0
    %3159 = vmatpush1.msra.mxu0 0.0
    %3160 = vmatprep.subr.mxu0 0.0
    %3161 = vmatpush1.msra.mxu0 0.0
    %3162 = vmatprep.subr.mxu0 0.0
    %3163 = vmatpush1.msra.mxu0 0.0
    %3164 = vmatprep.subr.mxu0 0.0
    %3165 = vmatpush1.msra.mxu0 0.0
    %3166 = vmatprep.subr.mxu0 0.0
    %3167 = vmatpush1.msra.mxu0 0.0
    %3168 = vmatprep.subr.mxu0 0.0
    %3169 = vmatpush1.msra.mxu0 0.0
    %3170 = vmatprep.subr.mxu0 0.0
    %3171 = vmatpush1.msra.mxu0 0.0
    %3172 = vmatprep.subr.mxu0 0.0
    %3173 = vmatpush1.msra.mxu0 0.0
    %3174 = vmatprep.subr.mxu0 0.0
    %3175 = vmatpush1.msra.mxu0 0.0
    %3176 = vmatprep.subr.mxu0 0.0
    %3177 = vmatpush1.msra.mxu0 0.0
    %3178 = vmatprep.subr.mxu0 0.0
    %3179 = vmatpush1.msra.mxu0 0.0
    %3180 = vmatprep.subr.mxu0 0.0
    %3181 = vmatpush1.msra.mxu0 0.0
    %3182 = vmatprep.mubr.f32.mxu0 0.0
    %3183 = vmatmul.mubr.f32.gmra.mrb[0].mxu0 %v3113
    %v3184 = vpop.f32.mrb[0].mxu0
    %v3185 = vadd.f32 0.0, %v3184
    %v3186 = vpop.f32.mrb[0].mxu0
    %3187 = vmatprep.mubr.f32.mxu0 0.0
    %3188 = vmatmul.mubr.f32.gmra.mrb[0].mxu0 %v3116
    %v3189 = vpop.f32.mrb[0].mxu0
    %v3190 = vadd.f32 0.0, %v3189
    %v3191 = vpop.f32.mrb[0].mxu0
    %3192 = vdwg.mxu0
    %v3193 = vld [vmem:[%s2332 + $0x18] sm:$0xff]
    %v3195 = vsel %vm357, %v3185, 0
    %v3198 = vsel %vm357, %v3190, 0
    %3200 = vmatprep.subr.mxu0 0.0
    %3201 = vmatpush1.msra.mxu0 %v3193
    %3202 = vmatprep.subr.mxu0 0.0
    %3203 = vmatpush1.msra.mxu0 0.0
    %3204 = vmatprep.subr.mxu0 0.0
    %3205 = vmatpush1.msra.mxu0 0.0
    %3206 = vmatprep.subr.mxu0 0.0
    %3207 = vmatpush1.msra.mxu0 0.0
    %3208 = vmatprep.subr.mxu0 0.0
    %3209 = vmatpush1.msra.mxu0 0.0
    %3210 = vmatprep.subr.mxu0 0.0
    %3211 = vmatpush1.msra.mxu0 0.0
    %3212 = vmatprep.subr.mxu0 0.0
    %3213 = vmatpush1.msra.mxu0 0.0
    %3214 = vmatprep.subr.mxu0 0.0
    %3215 = vmatpush1.msra.mxu0 0.0
    %3216 = vmatprep.subr.mxu0 0.0
    %3217 = vmatpush1.msra.mxu0 0.0
    %3218 = vmatprep.subr.mxu0 0.0
    %3219 = vmatpush1.msra.mxu0 0.0
    %3220 = vmatprep.subr.mxu0 0.0
    %3221 = vmatpush1.msra.mxu0 0.0
    %3222 = vmatprep.subr.mxu0 0.0
    %3223 = vmatpush1.msra.mxu0 0.0
    %3224 = vmatprep.subr.mxu0 0.0
    %3225 = vmatpush1.msra.mxu0 0.0
    %3226 = vmatprep.subr.mxu0 0.0
    %3227 = vmatpush1.msra.mxu0 0.0
    %3228 = vmatprep.subr.mxu0 0.0
    %3229 = vmatpush1.msra.mxu0 0.0
    %3230 = vmatprep.subr.mxu0 0.0
    %3231 = vmatpush1.msra.mxu0 0.0
    %3232 = vmatprep.subr.mxu0 0.0
    %3233 = vmatpush1.msra.mxu0 0.0
    %3234 = vmatprep.subr.mxu0 0.0
    %3235 = vmatpush1.msra.mxu0 0.0
    %3236 = vmatprep.subr.mxu0 0.0
    %3237 = vmatpush1.msra.mxu0 0.0
    %3238 = vmatprep.subr.mxu0 0.0
    %3239 = vmatpush1.msra.mxu0 0.0
    %3240 = vmatprep.subr.mxu0 0.0
    %3241 = vmatpush1.msra.mxu0 0.0
    %3242 = vmatprep.subr.mxu0 0.0
    %3243 = vmatpush1.msra.mxu0 0.0
    %3244 = vmatprep.subr.mxu0 0.0
    %3245 = vmatpush1.msra.mxu0 0.0
    %3246 = vmatprep.subr.mxu0 0.0
    %3247 = vmatpush1.msra.mxu0 0.0
    %3248 = vmatprep.subr.mxu0 0.0
    %3249 = vmatpush1.msra.mxu0 0.0
    %3250 = vmatprep.subr.mxu0 0.0
    %3251 = vmatpush1.msra.mxu0 0.0
    %3252 = vmatprep.subr.mxu0 0.0
    %3253 = vmatpush1.msra.mxu0 0.0
    %3254 = vmatprep.subr.mxu0 0.0
    %3255 = vmatpush1.msra.mxu0 0.0
    %3256 = vmatprep.subr.mxu0 0.0
    %3257 = vmatpush1.msra.mxu0 0.0
    %3258 = vmatprep.subr.mxu0 0.0
    %3259 = vmatpush1.msra.mxu0 0.0
    %3260 = vmatprep.subr.mxu0 0.0
    %3261 = vmatpush1.msra.mxu0 0.0
    %3262 = vmatprep.subr.mxu0 0.0
    %3263 = vmatpush1.msra.mxu0 0.0
    %3264 = vmatprep.mubr.f32.mxu0 0.0
    %3265 = vmatmul.mubr.f32.gmra.mrb[0].mxu0 %v3195
    %v3266 = vpop.f32.mrb[0].mxu0
    %v3267 = vadd.f32 0.0, %v3266
    %v3268 = vpop.f32.mrb[0].mxu0
    %3269 = vmatprep.mubr.f32.mxu0 0.0
    %3270 = vmatmul.mubr.f32.gmra.mrb[0].mxu0 %v3198
    %v3271 = vpop.f32.mrb[0].mxu0
    %v3272 = vadd.f32 0.0, %v3271
    %v3273 = vpop.f32.mrb[0].mxu0
    %3274 = vdwg.mxu0
    %v3275 = vadd.f32 %v2987, %v3267
    %v3276 = vadd.f32 %v2988, %v3272
    %v3277 = vadd.f32 %v1988, %v3275
    %v3278 = vadd.f32 %v1989, %v3276
    %s3279 = scalar_lea.vmem %s10, 1
    %v3280 = vld [vmem:[%s3279] sm:$0x1]
    %v3282 = vlaneseq
    %v3283 = vshrl.u32 %v3282, 7
    %v3284 = vsub.s32 0, %v3283
    %v3285 = vrot.slane %v3280, %v3284
    %v3287 = vadd.f32 %v3277, %v3285
    %v3288 = vadd.f32 %v3278, %v3285
    %s3289 = scalar_lea.vmem %s11, 1
    %v3290 = vld [vmem:[%s3289] sm:$0x1]
    %s3291 = scalar_lea.vmem %s12, 1
    %v3292 = vld [vmem:[%s3291] sm:$0x1]
    %v3293 = vsel %vm254, %v3287, 0.0
    %3294 = vadd.xlane.f32.xlu0 %v3293
    %v3295 = vpop.xlane.xlu0 %3294
    %v3296 = vsel %vm254, %v3288, 0.0
    %3297 = vadd.xlane.f32.xlu0 %v3296
    %v3298 = vpop.xlane.xlu0 %3297
    %v3299 = vmul.f32 %v3295, %v447
    %v3300 = vmul.f32 %v3298, %v447
    %v3301 = vsub.f32 %v3287, %v3299
    %v3302 = vsub.f32 %v3288, %v3300
    %v3303 = vmul.f32 %v3301, %v3301
    %v3304 = vmul.f32 %v3302, %v3302
    %v3305 = vsel %vm254, %v3303, 0.0
    %3306 = vadd.xlane.f32.xlu0 %v3305
    %v3307 = vpop.xlane.xlu0 %3306
    %v3308 = vsel %vm254, %v3304, 0.0
    %3309 = vadd.xlane.f32.xlu0 %v3308
    %v3310 = vpop.xlane.xlu0 %3309
    %v3311 = vmul.f32 %v3307, %v447
    %v3312 = vmul.f32 %v3310, %v447
    %v3313 = vadd.f32 %v3311, 1e-05
    %v3314 = vadd.f32 %v3312, 1e-05
    %v3315 = vrsqrt.pop %v3313
    %v3316 = vrsqrt.pop %v3314
    %v3317 = vmul.f32 %v3301, %v3315
    %v3318 = vmul.f32 %v3302, %v3316
    %v3320 = vlaneseq
    %v3321 = vshrl.u32 %v3320, 7
    %v3322 = vsub.s32 0, %v3321
    %v3323 = vrot.slane %v3290, %v3322
    %v3325 = vmul.f32 %v3317, %v3323
    %v3326 = vmul.f32 %v3318, %v3323
    %v3328 = vlaneseq
    %v3329 = vshrl.u32 %v3328, 7
    %v3330 = vsub.s32 0, %v3329
    %v3331 = vrot.slane %v3292, %v3330
    %v3333 = vadd.f32 %v3325, %v3331
    %v3334 = vadd.f32 %v3326, %v3331
    %s3335 = scalar_lea.vmem [#allocation8], 32
    %v3336 = vld [vmem:[%s3335] sm:$0xff]
    %v3337 = vld [vmem:[%s3335 + $0x8] sm:$0xff]
    %v3338 = vld [vmem:[%s3335 + $0x10] sm:$0xff]
    %v3339 = vld [vmem:[%s3335 + $0x18] sm:$0xff]
    %s3340 = scalar_lea.vmem %s14, 1
    %v3341 = vld [vmem:[%s3340] sm:$0x1]
    %v3343 = vlaneseq
    %v3344 = vshrl.u32 %v3343, 7
    %v3345 = vsub.s32 0, %v3344
    %v3346 = vrot.slane %v3341, %v3345
    %v3349 = vsel %vm254, %v3333, 0
    %v3352 = vsel %vm254, %v3334, 0
    %3354 = vmatprep.subr.mxu0 0.0
    %3355 = vmatpush1.msra.mxu0 %v3336
    %3356 = vmatprep.subr.mxu0 0.0
    %3357 = vmatpush1.msra.mxu0 %v3337
    %3358 = vmatprep.subr.mxu0 0.0
    %3359 = vmatpush1.msra.mxu0 %v3338
    %3360 = vmatprep.subr.mxu0 0.0
    %3361 = vmatpush1.msra.mxu0 %v3339
    %3362 = vmatprep.subr.mxu0 0.0
    %3363 = vmatpush1.msra.mxu0 0.0
    %3364 = vmatprep.subr.mxu0 0.0
    %3365 = vmatpush1.msra.mxu0 0.0
    %3366 = vmatprep.subr.mxu0 0.0
    %3367 = vmatpush1.msra.mxu0 0.0
    %3368 = vmatprep.subr.mxu0 0.0
    %3369 = vmatpush1.msra.mxu0 0.0
    %3370 = vmatprep.subr.mxu0 0.0
    %3371 = vmatpush1.msra.mxu0 0.0
    %3372 = vmatprep.subr.mxu0 0.0
    %3373 = vmatpush1.msra.mxu0 0.0
    %3374 = vmatprep.subr.mxu0 0.0
    %3375 = vmatpush1.msra.mxu0 0.0
    %3376 = vmatprep.subr.mxu0 0.0
    %3377 = vmatpush1.msra.mxu0 0.0
    %3378 = vmatprep.subr.mxu0 0.0
    %3379 = vmatpush1.msra.mxu0 0.0
    %3380 = vmatprep.subr.mxu0 0.0
    %3381 = vmatpush1.msra.mxu0 0.0
    %3382 = vmatprep.subr.mxu0 0.0
    %3383 = vmatpush1.msra.mxu0 0.0
    %3384 = vmatprep.subr.mxu0 0.0
    %3385 = vmatpush1.msra.mxu0 0.0
    %3386 = vmatprep.subr.mxu0 0.0
    %3387 = vmatpush1.msra.mxu0 0.0
    %3388 = vmatprep.subr.mxu0 0.0
    %3389 = vmatpush1.msra.mxu0 0.0
    %3390 = vmatprep.subr.mxu0 0.0
    %3391 = vmatpush1.msra.mxu0 0.0
    %3392 = vmatprep.subr.mxu0 0.0
    %3393 = vmatpush1.msra.mxu0 0.0
    %3394 = vmatprep.subr.mxu0 0.0
    %3395 = vmatpush1.msra.mxu0 0.0
    %3396 = vmatprep.subr.mxu0 0.0
    %3397 = vmatpush1.msra.mxu0 0.0
    %3398 = vmatprep.subr.mxu0 0.0
    %3399 = vmatpush1.msra.mxu0 0.0
    %3400 = vmatprep.subr.mxu0 0.0
    %3401 = vmatpush1.msra.mxu0 0.0
    %3402 = vmatprep.subr.mxu0 0.0
    %3403 = vmatpush1.msra.mxu0 0.0
    %3404 = vmatprep.subr.mxu0 0.0
    %3405 = vmatpush1.msra.mxu0 0.0
    %3406 = vmatprep.subr.mxu0 0.0
    %3407 = vmatpush1.msra.mxu0 0.0
    %3408 = vmatprep.subr.mxu0 0.0
    %3409 = vmatpush1.msra.mxu0 0.0
    %3410 = vmatprep.subr.mxu0 0.0
    %3411 = vmatpush1.msra.mxu0 0.0
    %3412 = vmatprep.subr.mxu0 0.0
    %3413 = vmatpush1.msra.mxu0 0.0
    %3414 = vmatprep.subr.mxu0 0.0
    %3415 = vmatpush1.msra.mxu0 0.0
    %3416 = vmatprep.subr.mxu0 0.0
    %3417 = vmatpush1.msra.mxu0 0.0
    %3418 = vmatprep.mubr.f32.mxu0 0.0
    %3419 = vmatmul.mubr.f32.gmra.mrb[0].mxu0 %v3349
    %v3420 = vpop.f32.mrb[0].mxu0
    %v3421 = vadd.f32 %v3346, %v3420
    %v3422 = vpop.f32.mrb[0].mxu0
    %3423 = vmatprep.mubr.f32.mxu0 0.0
    %3424 = vmatmul.mubr.f32.gmra.mrb[0].mxu0 %v3352
    %v3425 = vpop.f32.mrb[0].mxu0
    %v3426 = vadd.f32 %v3346, %v3425
    %v3427 = vpop.f32.mrb[0].mxu0
    %3428 = vdwg.mxu0
    %v3429 = vmul.f32 %v3421, 0.5
    %v3430 = vmul.f32 %v3426, 0.5
    %v3431 = vmul.f32 %v3421, 0.044715
    %v3432 = vmul.f32 %v3426, 0.044715
    %v3433 = vmul.f32 %v3431, %v3421
    %v3434 = vmul.f32 %v3432, %v3426
    %v3435 = vmul.f32 %v3433, %v3421
    %v3436 = vmul.f32 %v3434, %v3426
    %v3437 = vadd.f32 %v3421, %v3435
    %v3438 = vadd.f32 %v3426, %v3436
    %v3439 = vmul.f32 %v3437, 0.7978846
    %v3440 = vmul.f32 %v3438, 0.7978846
    %v3441 = vtanh.pop %v3439
    %v3442 = vtanh.pop %v3440
    %v3443 = vadd.f32 %v3441, 1.0
    %v3444 = vadd.f32 %v3442, 1.0
    %v3445 = vmul.f32 %v3429, %v3443
    %v3446 = vmul.f32 %v3430, %v3444
    %s3447 = scalar_lea.vmem [#allocation10], 128
    %v3448 = vld [vmem:[%s3447] sm:$0xff]
    %v3449 = vld [vmem:[%s3447 + $0x8] sm:$0xff]
    %v3450 = vld [vmem:[%s3447 + $0x10] sm:$0xff]
    %v3451 = vld [vmem:[%s3447 + $0x18] sm:$0xff]
    %v3452 = vld [vmem:[%s3447 + $0x20] sm:$0xff]
    %v3453 = vld [vmem:[%s3447 + $0x28] sm:$0xff]
    %v3454 = vld [vmem:[%s3447 + $0x30] sm:$0xff]
    %v3455 = vld [vmem:[%s3447 + $0x38] sm:$0xff]
    %v3456 = vld [vmem:[%s3447 + $0x40] sm:$0xff]
    %v3457 = vld [vmem:[%s3447 + $0x48] sm:$0xff]
    %v3458 = vld [vmem:[%s3447 + $0x50] sm:$0xff]
    %v3459 = vld [vmem:[%s3447 + $0x58] sm:$0xff]
    %v3460 = vld [vmem:[%s3447 + $0x60] sm:$0xff]
    %v3461 = vld [vmem:[%s3447 + $0x68] sm:$0xff]
    %v3462 = vld [vmem:[%s3447 + $0x70] sm:$0xff]
    %v3463 = vld [vmem:[%s3447 + $0x78] sm:$0xff]
    %3464 = vmatprep.subr.mxu0 0.0
    %3465 = vmatpush1.msra.mxu0 %v3448
    %3466 = vmatprep.subr.mxu0 0.0
    %3467 = vmatpush1.msra.mxu0 %v3449
    %3468 = vmatprep.subr.mxu0 0.0
    %3469 = vmatpush1.msra.mxu0 %v3450
    %3470 = vmatprep.subr.mxu0 0.0
    %3471 = vmatpush1.msra.mxu0 %v3451
    %3472 = vmatprep.subr.mxu0 0.0
    %3473 = vmatpush1.msra.mxu0 %v3452
    %3474 = vmatprep.subr.mxu0 0.0
    %3475 = vmatpush1.msra.mxu0 %v3453
    %3476 = vmatprep.subr.mxu0 0.0
    %3477 = vmatpush1.msra.mxu0 %v3454
    %3478 = vmatprep.subr.mxu0 0.0
    %3479 = vmatpush1.msra.mxu0 %v3455
    %3480 = vmatprep.subr.mxu0 0.0
    %3481 = vmatpush1.msra.mxu0 %v3456
    %3482 = vmatprep.subr.mxu0 0.0
    %3483 = vmatpush1.msra.mxu0 %v3457
    %3484 = vmatprep.subr.mxu0 0.0
    %3485 = vmatpush1.msra.mxu0 %v3458
    %3486 = vmatprep.subr.mxu0 0.0
    %3487 = vmatpush1.msra.mxu0 %v3459
    %3488 = vmatprep.subr.mxu0 0.0
    %3489 = vmatpush1.msra.mxu0 %v3460
    %3490 = vmatprep.subr.mxu0 0.0
    %3491 = vmatpush1.msra.mxu0 %v3461
    %3492 = vmatprep.subr.mxu0 0.0
    %3493 = vmatpush1.msra.mxu0 %v3462
    %3494 = vmatprep.subr.mxu0 0.0
    %3495 = vmatpush1.msra.mxu0 %v3463
    %3496 = vmatprep.subr.mxu0 0.0
    %3497 = vmatpush1.msra.mxu0 0.0
    %3498 = vmatprep.subr.mxu0 0.0
    %3499 = vmatpush1.msra.mxu0 0.0
    %3500 = vmatprep.subr.mxu0 0.0
    %3501 = vmatpush1.msra.mxu0 0.0
    %3502 = vmatprep.subr.mxu0 0.0
    %3503 = vmatpush1.msra.mxu0 0.0
    %3504 = vmatprep.subr.mxu0 0.0
    %3505 = vmatpush1.msra.mxu0 0.0
    %3506 = vmatprep.subr.mxu0 0.0
    %3507 = vmatpush1.msra.mxu0 0.0
    %3508 = vmatprep.subr.mxu0 0.0
    %3509 = vmatpush1.msra.mxu0 0.0
    %3510 = vmatprep.subr.mxu0 0.0
    %3511 = vmatpush1.msra.mxu0 0.0
    %3512 = vmatprep.subr.mxu0 0.0
    %3513 = vmatpush1.msra.mxu0 0.0
    %3514 = vmatprep.subr.mxu0 0.0
    %3515 = vmatpush1.msra.mxu0 0.0
    %3516 = vmatprep.subr.mxu0 0.0
    %3517 = vmatpush1.msra.mxu0 0.0
    %3518 = vmatprep.subr.mxu0 0.0
    %3519 = vmatpush1.msra.mxu0 0.0
    %3520 = vmatprep.subr.mxu0 0.0
    %3521 = vmatpush1.msra.mxu0 0.0
    %3522 = vmatprep.subr.mxu0 0.0
    %3523 = vmatpush1.msra.mxu0 0.0
    %3524 = vmatprep.subr.mxu0 0.0
    %3525 = vmatpush1.msra.mxu0 0.0
    %3526 = vmatprep.subr.mxu0 0.0
    %3527 = vmatpush1.msra.mxu0 0.0
    %3528 = vmatprep.mubr.f32.mxu0 0.0
    %3529 = vmatmul.mubr.f32.gmra.mrb[0].mxu0 %v3445
    %v3530 = vpop.f32.mrb[0].mxu0
    %v3531 = vadd.f32 0.0, %v3530
    %v3532 = vpop.f32.mrb[0].mxu0
    %3533 = vmatprep.mubr.f32.mxu0 0.0
    %3534 = vmatmul.mubr.f32.gmra.mrb[0].mxu0 %v3446
    %v3535 = vpop.f32.mrb[0].mxu0
    %v3536 = vadd.f32 0.0, %v3535
    %v3537 = vpop.f32.mrb[0].mxu0
    %3538 = vdwg.mxu0
    %v3539 = vadd.f32 %v3287, %v3531
    %v3540 = vadd.f32 %v3288, %v3536
    %s3541 = scalar_lea.vmem %s16, 1
    %v3542 = vld [vmem:[%s3541] sm:$0x1]
    %v3544 = vlaneseq
    %v3545 = vshrl.u32 %v3544, 7
    %v3546 = vsub.s32 0, %v3545
    %v3547 = vrot.slane %v3542, %v3546
    %v3549 = vadd.f32 %v3539, %v3547
    %v3550 = vadd.f32 %v3540, %v3547
    %v3551 = vld [vmem:[%s17] sm:$0x1]
    %v3552 = vld [vmem:[%s18] sm:$0x1]
    %v3553 = vsel %vm254, %v3549, 0.0
    %3554 = vadd.xlane.f32.xlu0 %v3553
    %v3555 = vpop.xlane.xlu0 %3554
    %v3556 = vsel %vm254, %v3550, 0.0
    %3557 = vadd.xlane.f32.xlu0 %v3556
    %v3558 = vpop.xlane.xlu0 %3557
    %v3559 = vmul.f32 %v3555, %v447
    %v3560 = vmul.f32 %v3558, %v447
    %v3561 = vsub.f32 %v3549, %v3559
    %v3562 = vsub.f32 %v3550, %v3560
    %v3563 = vmul.f32 %v3561, %v3561
    %v3564 = vmul.f32 %v3562, %v3562
    %v3565 = vsel %vm254, %v3563, 0.0
    %3566 = vadd.xlane.f32.xlu0 %v3565
    %v3567 = vpop.xlane.xlu0 %3566
    %v3568 = vsel %vm254, %v3564, 0.0
    %3569 = vadd.xlane.f32.xlu0 %v3568
    %v3570 = vpop.xlane.xlu0 %3569
    %v3571 = vmul.f32 %v3567, %v447
    %v3572 = vmul.f32 %v3570, %v447
    %v3573 = vadd.f32 %v3571, 1e-05
    %v3574 = vadd.f32 %v3572, 1e-05
    %v3575 = vrsqrt.pop %v3573
    %v3576 = vrsqrt.pop %v3574
    %v3577 = vmul.f32 %v3561, %v3575
    %v3578 = vmul.f32 %v3562, %v3576
    %v3580 = vlaneseq
    %v3581 = vshrl.u32 %v3580, 7
    %v3582 = vsub.s32 0, %v3581
    %v3583 = vrot.slane %v3551, %v3582
    %v3585 = vmul.f32 %v3577, %v3583
    %v3586 = vmul.f32 %v3578, %v3583
    %v3588 = vlaneseq
    %v3589 = vshrl.u32 %v3588, 7
    %v3590 = vsub.s32 0, %v3589
    %v3591 = vrot.slane %v3552, %v3590
    %v3593 = vadd.f32 %v3585, %v3591
    %v3594 = vadd.f32 %v3586, %v3591
    %v3595 = vld [vmem:[#allocation11] sm:$0xff]
    %v3596 = vld [vmem:[#allocation11 + $0x8] sm:$0xff]
    %v3597 = vld [vmem:[#allocation11 + $0x10] sm:$0xff]
    %v3598 = vld [vmem:[#allocation11 + $0x18] sm:$0xff]
    %v3599 = vld [vmem:[%s20] sm:$0x1]
    %v3601 = vlaneseq
    %v3602 = vshrl.u32 %v3601, 7
    %v3603 = vsub.s32 0, %v3602
    %v3604 = vrot.slane %v3599, %v3603
    %v3607 = vsel %vm254, %v3593, 0
    %v3610 = vsel %vm254, %v3594, 0
    %3612 = vmatprep.subr.mxu0 0.0
    %3613 = vmatpush1.msra.mxu0 %v3595
    %3614 = vmatprep.subr.mxu0 0.0
    %3615 = vmatpush1.msra.mxu0 %v3596
    %3616 = vmatprep.subr.mxu0 0.0
    %3617 = vmatpush1.msra.mxu0 %v3597
    %3618 = vmatprep.subr.mxu0 0.0
    %3619 = vmatpush1.msra.mxu0 %v3598
    %3620 = vmatprep.subr.mxu0 0.0
    %3621 = vmatpush1.msra.mxu0 0.0
    %3622 = vmatprep.subr.mxu0 0.0
    %3623 = vmatpush1.msra.mxu0 0.0
    %3624 = vmatprep.subr.mxu0 0.0
    %3625 = vmatpush1.msra.mxu0 0.0
    %3626 = vmatprep.subr.mxu0 0.0
    %3627 = vmatpush1.msra.mxu0 0.0
    %3628 = vmatprep.subr.mxu0 0.0
    %3629 = vmatpush1.msra.mxu0 0.0
    %3630 = vmatprep.subr.mxu0 0.0
    %3631 = vmatpush1.msra.mxu0 0.0
    %3632 = vmatprep.subr.mxu0 0.0
    %3633 = vmatpush1.msra.mxu0 0.0
    %3634 = vmatprep.subr.mxu0 0.0
    %3635 = vmatpush1.msra.mxu0 0.0
    %3636 = vmatprep.subr.mxu0 0.0
    %3637 = vmatpush1.msra.mxu0 0.0
    %3638 = vmatprep.subr.mxu0 0.0
    %3639 = vmatpush1.msra.mxu0 0.0
    %3640 = vmatprep.subr.mxu0 0.0
    %3641 = vmatpush1.msra.mxu0 0.0
    %3642 = vmatprep.subr.mxu0 0.0
    %3643 = vmatpush1.msra.mxu0 0.0
    %3644 = vmatprep.subr.mxu0 0.0
    %3645 = vmatpush1.msra.mxu0 0.0
    %3646 = vmatprep.subr.mxu0 0.0
    %3647 = vmatpush1.msra.mxu0 0.0
    %3648 = vmatprep.subr.mxu0 0.0
    %3649 = vmatpush1.msra.mxu0 0.0
    %3650 = vmatprep.subr.mxu0 0.0
    %3651 = vmatpush1.msra.mxu0 0.0
    %3652 = vmatprep.subr.mxu0 0.0
    %3653 = vmatpush1.msra.mxu0 0.0
    %3654 = vmatprep.subr.mxu0 0.0
    %3655 = vmatpush1.msra.mxu0 0.0
    %3656 = vmatprep.subr.mxu0 0.0
    %3657 = vmatpush1.msra.mxu0 0.0
    %3658 = vmatprep.subr.mxu0 0.0
    %3659 = vmatpush1.msra.mxu0 0.0
    %3660 = vmatprep.subr.mxu0 0.0
    %3661 = vmatpush1.msra.mxu0 0.0
    %3662 = vmatprep.subr.mxu0 0.0
    %3663 = vmatpush1.msra.mxu0 0.0
    %3664 = vmatprep.subr.mxu0 0.0
    %3665 = vmatpush1.msra.mxu0 0.0
    %3666 = vmatprep.subr.mxu0 0.0
    %3667 = vmatpush1.msra.mxu0 0.0
    %3668 = vmatprep.subr.mxu0 0.0
    %3669 = vmatpush1.msra.mxu0 0.0
    %3670 = vmatprep.subr.mxu0 0.0
    %3671 = vmatpush1.msra.mxu0 0.0
    %3672 = vmatprep.subr.mxu0 0.0
    %3673 = vmatpush1.msra.mxu0 0.0
    %3674 = vmatprep.subr.mxu0 0.0
    %3675 = vmatpush1.msra.mxu0 0.0
    %3676 = vmatprep.mubr.f32.mxu0 0.0
    %3677 = vmatmul.mubr.f32.gmra.mrb[0].mxu0 %v3607
    %v3678 = vpop.f32.mrb[0].mxu0
    %v3679 = vadd.f32 %v3604, %v3678
    %v3680 = vpop.f32.mrb[0].mxu0
    %3681 = vmatprep.mubr.f32.mxu0 0.0
    %3682 = vmatmul.mubr.f32.gmra.mrb[0].mxu0 %v3610
    %v3683 = vpop.f32.mrb[0].mxu0
    %v3684 = vadd.f32 %v3604, %v3683
    %v3685 = vpop.f32.mrb[0].mxu0
    %3686 = vdwg.mxu0
    %v3687 = vmul.f32 %v3679, 0.5
    %v3688 = vmul.f32 %v3684, 0.5
    %v3689 = vmul.f32 %v3679, 0.044715
    %v3690 = vmul.f32 %v3684, 0.044715
    %v3691 = vmul.f32 %v3689, %v3679
    %v3692 = vmul.f32 %v3690, %v3684
    %v3693 = vmul.f32 %v3691, %v3679
    %v3694 = vmul.f32 %v3692, %v3684
    %v3695 = vadd.f32 %v3679, %v3693
    %v3696 = vadd.f32 %v3684, %v3694
    %v3697 = vmul.f32 %v3695, 0.7978846
    %v3698 = vmul.f32 %v3696, 0.7978846
    %v3699 = vtanh.pop %v3697
    %v3700 = vtanh.pop %v3698
    %v3701 = vadd.f32 %v3699, 1.0
    %v3702 = vadd.f32 %v3700, 1.0
    %v3703 = vmul.f32 %v3687, %v3701
    %v3704 = vmul.f32 %v3688, %v3702
    %v3705 = vld [vmem:[%s21] sm:$0xff]
    %v3706 = vld [vmem:[%s21 + $0x8] sm:$0xff]
    %v3707 = vld [vmem:[%s21 + $0x10] sm:$0xff]
    %v3708 = vld [vmem:[%s21 + $0x18] sm:$0xff]
    %v3709 = vld [vmem:[%s21 + $0x20] sm:$0xff]
    %v3710 = vld [vmem:[%s21 + $0x28] sm:$0xff]
    %v3711 = vld [vmem:[%s21 + $0x30] sm:$0xff]
    %v3712 = vld [vmem:[%s21 + $0x38] sm:$0xff]
    %v3713 = vld [vmem:[%s22] sm:$0x1]
    %v3715 = vlaneseq
    %v3716 = vshrl.u32 %v3715, 7
    %v3717 = vsub.s32 0, %v3716
    %v3718 = vrot.slane %v3713, %v3717
    %vm3720 = vcmask 523264
    %v3722 = vsel %vm3720, %v3703, 0
    %v3725 = vsel %vm3720, %v3704, 0
    %3727 = vmatprep.subr.mxu0 0.0
    %3728 = vmatpush1.msra.mxu0 %v3705
    %3729 = vmatprep.subr.mxu0 0.0
    %3730 = vmatpush1.msra.mxu0 %v3706
    %3731 = vmatprep.subr.mxu0 0.0
    %3732 = vmatpush1.msra.mxu0 %v3707
    %3733 = vmatprep.subr.mxu0 0.0
    %3734 = vmatpush1.msra.mxu0 %v3708
    %3735 = vmatprep.subr.mxu0 0.0
    %3736 = vmatpush1.msra.mxu0 %v3709
    %3737 = vmatprep.subr.mxu0 0.0
    %3738 = vmatpush1.msra.mxu0 %v3710
    %3739 = vmatprep.subr.mxu0 0.0
    %3740 = vmatpush1.msra.mxu0 %v3711
    %3741 = vmatprep.subr.mxu0 0.0
    %3742 = vmatpush1.msra.mxu0 %v3712
    %3743 = vmatprep.subr.mxu0 0.0
    %3744 = vmatpush1.msra.mxu0 0.0
    %3745 = vmatprep.subr.mxu0 0.0
    %3746 = vmatpush1.msra.mxu0 0.0
    %3747 = vmatprep.subr.mxu0 0.0
    %3748 = vmatpush1.msra.mxu0 0.0
    %3749 = vmatprep.subr.mxu0 0.0
    %3750 = vmatpush1.msra.mxu0 0.0
    %3751 = vmatprep.subr.mxu0 0.0
    %3752 = vmatpush1.msra.mxu0 0.0
    %3753 = vmatprep.subr.mxu0 0.0
    %3754 = vmatpush1.msra.mxu0 0.0
    %3755 = vmatprep.subr.mxu0 0.0
    %3756 = vmatpush1.msra.mxu0 0.0
    %3757 = vmatprep.subr.mxu0 0.0
    %3758 = vmatpush1.msra.mxu0 0.0
    %3759 = vmatprep.subr.mxu0 0.0
    %3760 = vmatpush1.msra.mxu0 0.0
    %3761 = vmatprep.subr.mxu0 0.0
    %3762 = vmatpush1.msra.mxu0 0.0
    %3763 = vmatprep.subr.mxu0 0.0
    %3764 = vmatpush1.msra.mxu0 0.0
    %3765 = vmatprep.subr.mxu0 0.0
    %3766 = vmatpush1.msra.mxu0 0.0
    %3767 = vmatprep.subr.mxu0 0.0
    %3768 = vmatpush1.msra.mxu0 0.0
    %3769 = vmatprep.subr.mxu0 0.0
    %3770 = vmatpush1.msra.mxu0 0.0
    %3771 = vmatprep.subr.mxu0 0.0
    %3772 = vmatpush1.msra.mxu0 0.0
    %3773 = vmatprep.subr.mxu0 0.0
    %3774 = vmatpush1.msra.mxu0 0.0
    %3775 = vmatprep.subr.mxu0 0.0
    %3776 = vmatpush1.msra.mxu0 0.0
    %3777 = vmatprep.subr.mxu0 0.0
    %3778 = vmatpush1.msra.mxu0 0.0
    %3779 = vmatprep.subr.mxu0 0.0
    %3780 = vmatpush1.msra.mxu0 0.0
    %3781 = vmatprep.subr.mxu0 0.0
    %3782 = vmatpush1.msra.mxu0 0.0
    %3783 = vmatprep.subr.mxu0 0.0
    %3784 = vmatpush1.msra.mxu0 0.0
    %3785 = vmatprep.subr.mxu0 0.0
    %3786 = vmatpush1.msra.mxu0 0.0
    %3787 = vmatprep.subr.mxu0 0.0
    %3788 = vmatpush1.msra.mxu0 0.0
    %3789 = vmatprep.subr.mxu0 0.0
    %3790 = vmatpush1.msra.mxu0 0.0
    %3791 = vmatprep.mubr.f32.mxu0 0.0
    %3792 = vmatmul.mubr.f32.gmra.mrb[0].mxu0 %v3722
    %v3793 = vpop.f32.mrb[0].mxu0
    %v3794 = vadd.f32 %v3718, %v3793
    %v3795 = vpop.f32.mrb[0].mxu0
    %3796 = vmatprep.mubr.f32.mxu0 0.0
    %3797 = vmatmul.mubr.f32.gmra.mrb[0].mxu0 %v3725
    %v3798 = vpop.f32.mrb[0].mxu0
    %v3799 = vadd.f32 %v3718, %v3798
    %v3800 = vpop.f32.mrb[0].mxu0
    %3801 = vdwg.mxu0
    %v3802 = vmul.f32 %v3794, 0.5
    %v3803 = vmul.f32 %v3799, 0.5
    %v3804 = vmul.f32 %v3794, 0.044715
    %v3805 = vmul.f32 %v3799, 0.044715
    %v3806 = vmul.f32 %v3804, %v3794
    %v3807 = vmul.f32 %v3805, %v3799
    %v3808 = vmul.f32 %v3806, %v3794
    %v3809 = vmul.f32 %v3807, %v3799
    %v3810 = vadd.f32 %v3794, %v3808
    %v3811 = vadd.f32 %v3799, %v3809
    %v3812 = vmul.f32 %v3810, 0.7978846
    %v3813 = vmul.f32 %v3811, 0.7978846
    %v3814 = vtanh.pop %v3812
    %v3815 = vtanh.pop %v3813
    %v3816 = vadd.f32 %v3814, 1.0
    %v3817 = vadd.f32 %v3815, 1.0
    %v3818 = vmul.f32 %v3802, %v3816
    %v3819 = vmul.f32 %v3803, %v3817
    %v3820 = vld [vmem:[%s23] sm:$0xff]
    %v3821 = vld [vmem:[%s23 + $0x8] sm:$0xff]
    %v3822 = vld [vmem:[%s23 + $0x10] sm:$0xff]
    %v3823 = vld [vmem:[%s23 + $0x18] sm:$0xff]
    %v3824 = vld [vmem:[%s23 + $0x20] sm:$0xff]
    %v3825 = vld [vmem:[%s23 + $0x28] sm:$0xff]
    %v3826 = vld [vmem:[%s23 + $0x30] sm:$0xff]
    %v3827 = vld [vmem:[%s23 + $0x38] sm:$0xff]
    %v3828 = vld [vmem:[%s24] sm:$0x1]
    %v3830 = vlaneseq
    %v3831 = vshrl.u32 %v3830, 7
    %v3832 = vsub.s32 0, %v3831
    %v3833 = vrot.slane %v3828, %v3832
    %v3836 = vsel %vm3720, %v3818, 0
    %v3839 = vsel %vm3720, %v3819, 0
    %3841 = vmatprep.subr.mxu0 0.0
    %3842 = vmatpush1.msra.mxu0 %v3820
    %3843 = vmatprep.subr.mxu0 0.0
    %3844 = vmatpush1.msra.mxu0 %v3821
    %3845 = vmatprep.subr.mxu0 0.0
    %3846 = vmatpush1.msra.mxu0 %v3822
    %3847 = vmatprep.subr.mxu0 0.0
    %3848 = vmatpush1.msra.mxu0 %v3823
    %3849 = vmatprep.subr.mxu0 0.0
    %3850 = vmatpush1.msra.mxu0 %v3824
    %3851 = vmatprep.subr.mxu0 0.0
    %3852 = vmatpush1.msra.mxu0 %v3825
    %3853 = vmatprep.subr.mxu0 0.0
    %3854 = vmatpush1.msra.mxu0 %v3826
    %3855 = vmatprep.subr.mxu0 0.0
    %3856 = vmatpush1.msra.mxu0 %v3827
    %3857 = vmatprep.subr.mxu0 0.0
    %3858 = vmatpush1.msra.mxu0 0.0
    %3859 = vmatprep.subr.mxu0 0.0
    %3860 = vmatpush1.msra.mxu0 0.0
    %3861 = vmatprep.subr.mxu0 0.0
    %3862 = vmatpush1.msra.mxu0 0.0
    %3863 = vmatprep.subr.mxu0 0.0
    %3864 = vmatpush1.msra.mxu0 0.0
    %3865 = vmatprep.subr.mxu0 0.0
    %3866 = vmatpush1.msra.mxu0 0.0
    %3867 = vmatprep.subr.mxu0 0.0
    %3868 = vmatpush1.msra.mxu0 0.0
    %3869 = vmatprep.subr.mxu0 0.0
    %3870 = vmatpush1.msra.mxu0 0.0
    %3871 = vmatprep.subr.mxu0 0.0
    %3872 = vmatpush1.msra.mxu0 0.0
    %3873 = vmatprep.subr.mxu0 0.0
    %3874 = vmatpush1.msra.mxu0 0.0
    %3875 = vmatprep.subr.mxu0 0.0
    %3876 = vmatpush1.msra.mxu0 0.0
    %3877 = vmatprep.subr.mxu0 0.0
    %3878 = vmatpush1.msra.mxu0 0.0
    %3879 = vmatprep.subr.mxu0 0.0
    %3880 = vmatpush1.msra.mxu0 0.0
    %3881 = vmatprep.subr.mxu0 0.0
    %3882 = vmatpush1.msra.mxu0 0.0
    %3883 = vmatprep.subr.mxu0 0.0
    %3884 = vmatpush1.msra.mxu0 0.0
    %3885 = vmatprep.subr.mxu0 0.0
    %3886 = vmatpush1.msra.mxu0 0.0
    %3887 = vmatprep.subr.mxu0 0.0
    %3888 = vmatpush1.msra.mxu0 0.0
    %3889 = vmatprep.subr.mxu0 0.0
    %3890 = vmatpush1.msra.mxu0 0.0
    %3891 = vmatprep.subr.mxu0 0.0
    %3892 = vmatpush1.msra.mxu0 0.0
    %3893 = vmatprep.subr.mxu0 0.0
    %3894 = vmatpush1.msra.mxu0 0.0
    %3895 = vmatprep.subr.mxu0 0.0
    %3896 = vmatpush1.msra.mxu0 0.0
    %3897 = vmatprep.subr.mxu0 0.0
    %3898 = vmatpush1.msra.mxu0 0.0
    %3899 = vmatprep.subr.mxu0 0.0
    %3900 = vmatpush1.msra.mxu0 0.0
    %3901 = vmatprep.subr.mxu0 0.0
    %3902 = vmatpush1.msra.mxu0 0.0
    %3903 = vmatprep.subr.mxu0 0.0
    %3904 = vmatpush1.msra.mxu0 0.0
    %3905 = vmatprep.mubr.f32.mxu0 0.0
    %3906 = vmatmul.mubr.f32.gmra.mrb[0].mxu0 %v3836
    %v3907 = vpop.f32.mrb[0].mxu0
    %v3908 = vadd.f32 %v3833, %v3907
    %v3909 = vpop.f32.mrb[0].mxu0
    %3910 = vmatprep.mubr.f32.mxu0 0.0
    %3911 = vmatmul.mubr.f32.gmra.mrb[0].mxu0 %v3839
    %v3912 = vpop.f32.mrb[0].mxu0
    %v3913 = vadd.f32 %v3833, %v3912
    %v3914 = vpop.f32.mrb[0].mxu0
    %3915 = vdwg.mxu0
    %v3916 = vmul.f32 %v3908, %v3908
    %v3917 = vmul.f32 %v3913, %v3913
    %v3918 = vsel %vm254, %v3916, 0.0
    %3919 = vadd.xlane.f32.xlu0 %v3918
    %v3920 = vpop.xlane.xlu0 %3919
    %v3921 = vsel %vm254, %v3917, 0.0
    %3922 = vadd.xlane.f32.xlu0 %v3921
    %v3923 = vpop.xlane.xlu0 %3922
    %v3924 = vadd.f32 %v3920, 1e-12
    %v3925 = vadd.f32 %v3923, 1e-12
    %v3926 = vrsqrt.pop %v3924
    %v3927 = vrsqrt.pop %v3925
    %v3928 = vmul.f32 %v3908, %v3926
    %v3929 = vmul.f32 %v3913, %v3927
    %v3930 = vld [vmem:[%s25] sm:$0xff]
    %v3931 = vld [vmem:[%s25 + $0x8] sm:$0xff]
    %v3932 = vld [vmem:[%s25 + $0x10] sm:$0xff]
    %v3933 = vld [vmem:[%s25 + $0x18] sm:$0xff]
    %v3935 = vsel %vm254, %v3928, 0
    %v3938 = vsel %vm254, %v3929, 0
    %3940 = vmatprep.subr.mxu0 0.0
    %3941 = vmatpush1.msra.mxu0 %v3930
    %3942 = vmatprep.subr.mxu0 0.0
    %3943 = vmatpush1.msra.mxu0 %v3931
    %3944 = vmatprep.subr.mxu0 0.0
    %3945 = vmatpush1.msra.mxu0 %v3932
    %3946 = vmatprep.subr.mxu0 0.0
    %3947 = vmatpush1.msra.mxu0 %v3933
    %3948 = vmatprep.subr.mxu0 0.0
    %3949 = vmatpush1.msra.mxu0 0.0
    %3950 = vmatprep.subr.mxu0 0.0
    %3951 = vmatpush1.msra.mxu0 0.0
    %3952 = vmatprep.subr.mxu0 0.0
    %3953 = vmatpush1.msra.mxu0 0.0
    %3954 = vmatprep.subr.mxu0 0.0
    %3955 = vmatpush1.msra.mxu0 0.0
    %3956 = vmatprep.subr.mxu0 0.0
    %3957 = vmatpush1.msra.mxu0 0.0
    %3958 = vmatprep.subr.mxu0 0.0
    %3959 = vmatpush1.msra.mxu0 0.0
    %3960 = vmatprep.subr.mxu0 0.0
    %3961 = vmatpush1.msra.mxu0 0.0
    %3962 = vmatprep.subr.mxu0 0.0
    %3963 = vmatpush1.msra.mxu0 0.0
    %3964 = vmatprep.subr.mxu0 0.0
    %3965 = vmatpush1.msra.mxu0 0.0
    %3966 = vmatprep.subr.mxu0 0.0
    %3967 = vmatpush1.msra.mxu0 0.0
    %3968 = vmatprep.subr.mxu0 0.0
    %3969 = vmatpush1.msra.mxu0 0.0
    %3970 = vmatprep.subr.mxu0 0.0
    %3971 = vmatpush1.msra.mxu0 0.0
    %3972 = vmatprep.subr.mxu0 0.0
    %3973 = vmatpush1.msra.mxu0 0.0
    %3974 = vmatprep.subr.mxu0 0.0
    %3975 = vmatpush1.msra.mxu0 0.0
    %3976 = vmatprep.subr.mxu0 0.0
    %3977 = vmatpush1.msra.mxu0 0.0
    %3978 = vmatprep.subr.mxu0 0.0
    %3979 = vmatpush1.msra.mxu0 0.0
    %3980 = vmatprep.subr.mxu0 0.0
    %3981 = vmatpush1.msra.mxu0 0.0
    %3982 = vmatprep.subr.mxu0 0.0
    %3983 = vmatpush1.msra.mxu0 0.0
    %3984 = vmatprep.subr.mxu0 0.0
    %3985 = vmatpush1.msra.mxu0 0.0
    %3986 = vmatprep.subr.mxu0 0.0
    %3987 = vmatpush1.msra.mxu0 0.0
    %3988 = vmatprep.subr.mxu0 0.0
    %3989 = vmatpush1.msra.mxu0 0.0
    %3990 = vmatprep.subr.mxu0 0.0
    %3991 = vmatpush1.msra.mxu0 0.0
    %3992 = vmatprep.subr.mxu0 0.0
    %3993 = vmatpush1.msra.mxu0 0.0
    %3994 = vmatprep.subr.mxu0 0.0
    %3995 = vmatpush1.msra.mxu0 0.0
    %3996 = vmatprep.subr.mxu0 0.0
    %3997 = vmatpush1.msra.mxu0 0.0
    %3998 = vmatprep.subr.mxu0 0.0
    %3999 = vmatpush1.msra.mxu0 0.0
    %4000 = vmatprep.subr.mxu0 0.0
    %4001 = vmatpush1.msra.mxu0 0.0
    %4002 = vmatprep.subr.mxu0 0.0
    %4003 = vmatpush1.msra.mxu0 0.0
    %4004 = vmatprep.mubr.f32.mxu0 0.0
    %4005 = vmatmul.mubr.f32.gmra.mrb[0].mxu0 %v3935
    %v4006 = vpop.f32.mrb[0].mxu0
    %v4007 = vadd.f32 0.0, %v4006
    %v4008 = vpop.f32.mrb[0].mxu0
    %4009 = vmatprep.mubr.f32.mxu0 0.0
    %4010 = vmatmul.mubr.f32.gmra.mrb[0].mxu0 %v3938
    %v4011 = vpop.f32.mrb[0].mxu0
    %v4012 = vadd.f32 0.0, %v4011
    %v4013 = vpop.f32.mrb[0].mxu0
    %4014 = vdwg.mxu0
    %4015 = vst.msk [vmem:[#allocation13] sm:$0xff] %vm3720, %v4007
    %4016 = vst.msk [vmem:[#allocation13 + $0x8] sm:$0xff] %vm3720, %v4012
    // Predicated region
    $region130: #{network_forward.1} parent=1 // pred_check
      _
    $region131: #{network_forward.1} parent=1 // pred_check_branch
      %4018 = sbr.rel (0) target = $region133
    $region132: #{network_forward.1} parent=1 // pred_region
      %s4020 = ssub.s32 256, 256
      %4021 = vsyncadd [#allocation4], %s4020
      %s4022 = sshll.u32 [#allocation13], 4
      %s4023 = int_to_ptr.vmem [resolvable:$true] %s4022
      %4028 = dma.vmem_to_hbm [thread:$0]  %s4023, 256, %s26, [#allocation4], 128, 128, 8
    $region133: #{network_forward.1} parent=1 // pred_fallthru
      _
    // Predicated region
    $region134: #{network_forward.1} parent=1 // pred_check
      _
    $region135: #{network_forward.1} parent=1 // pred_check_branch
      %4030 = sbr.rel (0) target = $region137
    $region136: #{network_forward.1} parent=1 // pred_region
      %4031 = dma.done [#allocation4], 256
    $region137: #{network_forward.1} parent=1 // pred_fallthru
      _
    %4032 = vsyncpa [#allocation3], 1
    %4033 = vsyncpa [#allocation6], 1
    %4034 = vsyncpa [#allocation9], 1
    %4035 = vsyncpa [#allocation12], 1
    %4036 = vsyncpa [#allocation4], 1

</llo_original>
